<compile_context>
chip_gen: v7x
topology: tpu7x:2x2x1
jax: 0.10.0
libtpu: 0.0.40
codegen_flags: <defaults>
</compile_context>

<pallas_src>
import functools
import math

import jax
import jax.numpy as jnp
from jax.experimental import pallas as pl
from jax.experimental.pallas import tpu as pltpu


# ----------------------------- slab packing (host) -----------------------------

_SLAB_W = 256  # lane width of both slabs (multiple of 128, >= widest operand = 192)


class _SlabPacker:
    """Packs many small 2-D operands into one (rows, _SLAB_W) slab so the kernel
    receives one DMA per slab instead of ~26 tiny, individually padded DMAs."""

    def __init__(self, dtype, row_align):
        self.dtype = dtype
        self.row_align = row_align
        self.rows = 0
        self.blocks = []
        self.index = {}

    def add(self, name, arr):
        arr = jnp.asarray(arr, jnp.float32)
        if arr.ndim == 1:
            arr = arr.reshape(1, -1)
        r, c = arr.shape
        assert c <= _SLAB_W, (name, arr.shape)
        pr = -(-r // self.row_align) * self.row_align          # pad rows for aligned reads
        blk = jnp.zeros((pr, _SLAB_W), self.dtype)
        blk = blk.at[:r, :c].set(arr.astype(self.dtype))
        self.index[name] = (self.rows, r, c)                    # static (offset, rows, cols)
        self.blocks.append(blk)
        self.rows += pr

    def finalize(self):
        return jnp.concatenate(self.blocks, axis=0), self.index


# ----------------------------- parameter packing ------------------------------

def init_params(key, F, H1, Z, Hrec, Hpred):
    """Parameters in PyTorch layout (GRU: W_ih (3H, D), W_hh (3H, H), b (3H,);
    Linear: W (Out, In), b (Out,)); GRU gate order [r | z | n]."""
    keys = iter(jax.random.split(key, 64))

    def unif(shape, k):
        return jax.random.uniform(next(keys), shape, jnp.float32, -k, k)

    def gru_dir(D, H):
        k = 1.0 / math.sqrt(H)
        return (unif((3 * H, D), k), unif((3 * H, H), k),
                unif((3 * H,), k), unif((3 * H,), k))

    def lin(In, Out):
        k = 1.0 / math.sqrt(In)
        return (unif((Out, In), k), unif((Out,), k))

    P = {}
    P['enc_l0_f'] = gru_dir(F, H1)
    P['enc_l0_b'] = gru_dir(F, H1)
    P['enc_l1_f'] = gru_dir(2 * H1, H1)
    P['enc_l1_b'] = gru_dir(2 * H1, H1)
    P['to_mean'] = lin(4 * H1, Z)
    P['to_logvar'] = lin(4 * H1, Z)
    P['dec_l2h'] = lin(Z, 2 * Hrec)
    P['dec_gru_f'] = gru_dir(Z, Hrec)
    P['dec_gru_b'] = gru_dir(Z, Hrec)
    P['dec_h2o'] = lin(2 * Hrec, F)
    P['fut_l2h'] = lin(Z, 2 * Hpred)
    P['fut_gru_f'] = gru_dir(Z, Hpred)
    P['fut_gru_b'] = gru_dir(Z, Hpred)
    P['fut_h2o'] = lin(2 * Hpred, F)
    return P


def _fuse_bigru(p_fwd, p_bwd):
    """Fuse a fwd/bwd GRU pair into the gate-grouped layout used by the kernel.

    Returns (wih (D,6H), whh (2H,6H) block-diagonal per gate, bih (1,6H), bhh (1,6H))
    with columns ordered [r_f r_b | z_f z_b | n_f n_b]; hidden rows are [h_f | h_b].
    """
    wih_f, whh_f, bih_f, bhh_f = p_fwd
    wih_b, whh_b, bih_b, bhh_b = p_bwd
    H = whh_f.shape[1]

    def col_interleave(mf, mb):                         # mf/mb: (In, 3H), torch gate order
        cols = []
        for g in range(3):
            cols.append(mf[:, g * H:(g + 1) * H])
            cols.append(mb[:, g * H:(g + 1) * H])
        return jnp.concatenate(cols, axis=1)            # (In, 6H)

    wih = col_interleave(wih_f.T, wih_b.T)

    zero = jnp.zeros((H, H), jnp.float32)
    whh_fT, whh_bT = whh_f.T, whh_b.T                   # (H, 3H)
    gate_blocks = []
    for g in range(3):
        top = jnp.concatenate([whh_fT[:, g * H:(g + 1) * H], zero], axis=1)   # h_f rows
        bot = jnp.concatenate([zero, whh_bT[:, g * H:(g + 1) * H]], axis=1)   # h_b rows
        gate_blocks.append(jnp.concatenate([top, bot], axis=0))               # (2H, 2H)
    whh = jnp.concatenate(gate_blocks, axis=1)                                # (2H, 6H)

    def b_interleave(bf, bb):
        parts = []
        for g in range(3):
            parts.append(bf[g * H:(g + 1) * H])
            parts.append(bb[g * H:(g + 1) * H])
        return jnp.concatenate(parts).reshape(1, 6 * H)

    return wih, whh, b_interleave(bih_f, bih_b), b_interleave(bhh_f, bhh_b)


def _fuse_linears(*linears):
    """Fuse N PyTorch Linears that share an input into one (In, sum(Out)) weight."""
    w = jnp.concatenate([W.T for W, _ in linears], axis=1)
    b = jnp.concatenate([b for _, b in linears]).reshape(1, -1)
    return w, b


def pack_params(P):
    wp = _SlabPacker(jnp.bfloat16, 16)   # bf16 weights: MXU-native matmul operands
    bp = _SlabPacker(jnp.float32, 8)     # f32 biases: added post-matmul in f32

    def add_gru(prefix, fused):
        wih, whh, bih, bhh = fused
        wp.add(prefix + '_wih', wih)
        wp.add(prefix + '_whh', whh)
        bp.add(prefix + '_bih', bih)
        bp.add(prefix + '_bhh', bhh)

    add_gru('e0', _fuse_bigru(P['enc_l0_f'], P['enc_l0_b']))
    add_gru('e1', _fuse_bigru(P['enc_l1_f'], P['enc_l1_b']))

    w_ml, b_ml = _fuse_linears(P['to_mean'], P['to_logvar'])
    wp.add('w_ml', w_ml); bp.add('b_ml', b_ml)

    w_l2h, b_l2h = _fuse_linears(P['dec_l2h'], P['fut_l2h'])
    wp.add('w_l2h', w_l2h); bp.add('b_l2h', b_l2h)

    add_gru('d', _fuse_bigru(P['dec_gru_f'], P['dec_gru_b']))
    add_gru('f', _fuse_bigru(P['fut_gru_f'], P['fut_gru_b']))

    w_dho, b_dho = _fuse_linears(P['dec_h2o'])
    wp.add('d_who', w_dho); bp.add('d_bho', b_dho)
    w_fho, b_fho = _fuse_linears(P['fut_h2o'])
    wp.add('f_who', w_fho); bp.add('f_bho', b_fho)

    wslab, widx = wp.finalize()
    bslab, bidx = bp.finalize()
    return wslab, widx, bslab, bidx


# ------------------------------ in-kernel helpers ------------------------------

def _torch_view_h0(hid, B, H):
    """Reproduces PyTorch `hid.view(2, B, H)` on a (B, 2H) tensor (a row-major
    re-gather that mixes batch rows, exactly as the reference module does) and
    returns it re-fused as (B, 2H) = [dir0 | dir1].  Implemented with static
    row/col slices (avoids a lane->sublane reshape for lowering robustness);
    runs once per decoder, off the recurrent chain."""
    def direction(d):
        rows = []
        for b in range(B):
            flat = d * B + b
            r, c = flat // 2, (flat % 2) * H
            rows.append(hid[r:r + 1, c:c + H])
        return jnp.concatenate(rows, axis=0)
    return jnp.concatenate([direction(0), direction(1)], axis=1)


# --------------------------------- the kernel ----------------------------------

def _rnn_vae_kernel(x_ref, w_ref, b_ref,
                    mu_ref, logvar_ref, pred_ref, fut_ref,
                    y0_s, yd_s, yf_s,
                    *, T, Tf, B, H1, Hr, Hp, Z, F, widx, bidx):
    f32, bf16 = jnp.float32, jnp.bfloat16

    def W(name):                                   # bf16 weight from the slab
        r0, r, c = widx[name]
        return w_ref[r0:r0 + r, 0:c]

    def Bvec(name):                                # (1, c) f32 bias row
        r0, _, c = bidx[name]
        return b_ref[r0:r0 + 1, 0:c]

    def dotf(a, w):                                # bf16 MXU matmul, f32 accumulate
        return jnp.dot(a.astype(bf16), w, preferred_element_type=f32)

    # Fused fwd+bwd GRU cell; gate-grouped layout [r_f r_b | z_f z_b | n_f n_b],
    # hidden state h = [h_f | h_b].  One sigmoid/tanh/blend covers both directions.
    def cell(gx, gh, h, H):
        r = jax.nn.sigmoid(gx[:, 0:2 * H] + gh[:, 0:2 * H])
        u = jax.nn.sigmoid(gx[:, 2 * H:4 * H] + gh[:, 2 * H:4 * H])
        n = jnp.tanh(gx[:, 4 * H:6 * H] + r * gh[:, 4 * H:6 * H])
        return n + u * (h - n)                     # == (1-u)*n + u*h

    def bi_gru(gx_step, whh_name, bhh_name, h0, steps, H, y_ref):
        whh = W(whh_name)                          # hoisted: one load per layer
        bhh = Bvec(bhh_name)
        h = h0
        for s in range(steps):                     # statically unrolled recurrence
            gh = dotf(h, whh) + bhh                # one MXU push serves both directions
            h = cell(gx_step(s), gh, h, H)
            if y_ref is not None:                  # static-offset scratch stores
                y_ref[s * B:(s + 1) * B, 0:H] = h[:, 0:H]
                y_ref[(steps - 1 - s) * B:(steps - s) * B, H:2 * H] = h[:, H:2 * H]
        return h                                   # [h_f(final) | h_b(final)]

    # Column mask selecting forward-direction columns inside each 2H gate block.
    fwd_cols = (jax.lax.broadcasted_iota(jnp.int32, (B, 6 * H1), 1) % (2 * H1)) < H1

    def enc_step(gx_all):
        def step(s):
            a = gx_all[s * B:(s + 1) * B, :]            # fwd direction: time s
            b = gx_all[(T - 1 - s) * B:(T - s) * B, :]  # bwd direction: time T-1-s
            return jnp.where(fwd_cols, a, b)            # single vselect per step
        return step

    # ---------------- time-major input rows, built once in-kernel ----------------
    x = x_ref[...]                                                        # (B, T, F)
    x_tm = jnp.concatenate([x[:, t, :] for t in range(T)], axis=0)        # (T*B, F)

    # ---------------- Encoder: 2-layer bidirectional GRU ----------------
    gx0 = dotf(x_tm, W('e0_wih')) + Bvec('e0_bih')                        # hoisted input proj
    h0z = jnp.zeros((B, 2 * H1), f32)
    hn0 = bi_gru(enc_step(gx0), 'e0_whh', 'e0_bhh', h0z, T, H1, y0_s)

    gx1 = dotf(y0_s[...], W('e1_wih')) + Bvec('e1_bih')                   # layer-1 input proj
    hn1 = bi_gru(enc_step(gx1), 'e1_whh', 'e1_bhh', h0z, T, H1, None)     # seq output unused

    h_n = jnp.concatenate([hn0, hn1], axis=1)     # torch.cat((h_n[0..3]),1): [l0f|l0b|l1f|l1b]

    # ---------------- Lambda (fused mean / logvar projection) ----------------
    ml = dotf(h_n, W('w_ml')) + Bvec('b_ml')                              # (B, 2Z)
    mu, logvar = ml[:, 0:Z], ml[:, Z:2 * Z]
    mu_ref[...] = mu
    logvar_ref[...] = logvar
    # TODO(synk): training-mode reparameterization (mu + eps*exp(0.5*logvar)) and GRU
    #             inter-layer dropout are not implemented; eval path z = mu is used.
    z = mu

    # -------- latent_to_hidden (decoder + future decoder fused into one matmul) --------
    hid = dotf(z, W('w_l2h')) + Bvec('b_l2h')                             # (B, 2Hr+2Hp)
    h0_dec = _torch_view_h0(hid[:, 0:2 * Hr], B, Hr)                      # torch .view(2,B,H)
    h0_fut = _torch_view_h0(hid[:, 2 * Hr:2 * Hr + 2 * Hp], B, Hp)

    # ---------------- Decoder (input is the constant latent z) ----------------
    gxd = dotf(z, W('d_wih')) + Bvec('d_bih')                             # constant per step
    bi_gru(lambda s: gxd, 'd_whh', 'd_bhh', h0_dec, T, Hr, yd_s)
    pred_tm = dotf(yd_s[...], W('d_who')) + Bvec('d_bho')                 # (T*B, F)
    for t in range(T):                                                    # (B, T*F) output
        pred_ref[:, t * F:(t + 1) * F] = pred_tm[t * B:(t + 1) * B, :]

    # ---------------- Decoder_Future (first Tf steps of the same constant input) ----
    gxf = dotf(z, W('f_wih')) + Bvec('f_bih')
    bi_gru(lambda s: gxf, 'f_whh', 'f_bhh', h0_fut, Tf, Hp, yf_s)
    fut_tm = dotf(yf_s[...], W('f_who')) + Bvec('f_bho')                  # (Tf*B, F)
    for t in range(Tf):
        fut_ref[:, t * F:(t + 1) * F] = fut_tm[t * B:(t + 1) * B, :]


# ----------------------------------- forward ------------------------------------

def rnn_vae_forward(seq, wslab, bslab, widx, bidx, *, seq_len, future_steps,
                    H1, Hrec, Hpred, ZDIMS, num_features):
    B, T, F = seq.shape
    assert T == seq_len and F == num_features

    kernel = functools.partial(_rnn_vae_kernel, T=T, Tf=future_steps, B=B,
                               H1=H1, Hr=Hrec, Hp=Hpred, Z=ZDIMS, F=F,
                               widx=widx, bidx=bidx)
    out_shape = (
        jax.ShapeDtypeStruct((B, ZDIMS), jnp.float32),               # mu
        jax.ShapeDtypeStruct((B, ZDIMS), jnp.float32),               # logvar
        jax.ShapeDtypeStruct((B, T * F), jnp.float32),               # prediction (lane-flat)
        jax.ShapeDtypeStruct((B, future_steps * F), jnp.float32),    # future (lane-flat)
    )
    # No grid: every operand is a whole-array VMEM block; one launch for the model.
    mu, logvar, pred2d, fut2d = pl.pallas_call(
        kernel,
        out_shape=out_shape,
        scratch_shapes=[
            pltpu.VMEM((T * B, 2 * H1), jnp.float32),                # encoder layer-0 seq
            pltpu.VMEM((T * B, 2 * Hrec), jnp.float32),              # decoder seq
            pltpu.VMEM((future_steps * B, 2 * Hpred), jnp.float32),  # future-decoder seq
        ],
        compiler_params=pltpu.CompilerParams(vmem_limit_bytes=16 * 1024 * 1024),
    )(seq.astype(jnp.float32), wslab, bslab)

    # Only free contiguous reshapes remain on the wrapper side (no transposes).
    prediction = pred2d.reshape(B, T, F)
    future = fut2d.reshape(B, future_steps, F)
    z = mu                                                           # eval mode
    return prediction, future, z, mu, logvar


# ------------------------------------ main --------------------------------------

if __name__ == "__main__":
    # Module hyperparameters (small, consistent with RNN_VAE.__init__)
    TEMPORAL_WINDOW = 16
    ZDIMS = 16
    NUM_FEATURES = 12
    FUTURE_DECODER = True
    FUTURE_STEPS = 4
    hidden_size_layer_1 = 32
    hidden_size_layer_2 = 32   # unused by the forward pass (as in the torch module)
    hidden_size_rec = 32
    hidden_size_pred = 32

    seq_len = TEMPORAL_WINDOW // 2
    batch = 2

    key = jax.random.PRNGKey(0)
    k_param, k_data = jax.random.split(key)

    params = init_params(k_param, NUM_FEATURES, hidden_size_layer_1,
                         ZDIMS, hidden_size_rec, hidden_size_pred)
    wslab, widx, bslab, bidx = pack_params(params)

    # Input sequence: (batch, seq_len, NUM_FEATURES), batch-first like PyTorch.
    seq = jax.random.normal(k_data, (batch, seq_len, NUM_FEATURES), jnp.float32)

    prediction, future, z, mu, logvar = rnn_vae_forward(
        seq, wslab, bslab, widx, bidx,
        seq_len=seq_len, future_steps=FUTURE_STEPS,
        H1=hidden_size_layer_1, Hrec=hidden_size_rec, Hpred=hidden_size_pred,
        ZDIMS=ZDIMS, num_features=NUM_FEATURES)

    jax.block_until_ready((prediction, future, z, mu, logvar))

    assert prediction.shape == (batch, seq_len, NUM_FEATURES)
    assert future.shape == (batch, FUTURE_STEPS, NUM_FEATURES)
    assert z.shape == (batch, ZDIMS)
    assert mu.shape == (batch, ZDIMS)
    assert logvar.shape == (batch, ZDIMS)
    assert all(bool(jnp.isfinite(a).all())
               for a in (prediction, future, z, mu, logvar))

    print("KERNEL_OK")
</pallas_src>

<mosaic_0001>
module attributes {stable_mosaic.version = 11 : i64} {
  func.func @_rnn_vae_kernel(%arg0: memref<2x8x12xf32, #tpu.memory_space<vmem>>, %arg1: memref<640x256xbf16, #tpu.memory_space<vmem>>, %arg2: memref<96x256xf32, #tpu.memory_space<vmem>>, %arg3: memref<2x16xf32, #tpu.memory_space<vmem>>, %arg4: memref<2x16xf32, #tpu.memory_space<vmem>>, %arg5: memref<2x96xf32, #tpu.memory_space<vmem>>, %arg6: memref<2x48xf32, #tpu.memory_space<vmem>>, %arg7: memref<16x64xf32, #tpu.memory_space<vmem>>, %arg8: memref<16x64xf32, #tpu.memory_space<vmem>>, %arg9: memref<8x64xf32, #tpu.memory_space<vmem>>) attributes {dimension_semantics = [], scalar_prefetch = 0 : i64, scratch_operands = 3 : i64, tpu.core_type = #tpu.core_type<tc>} {
    %0 = tpu.iota {dimensions = array<i32: 1>} : vector<2x192xi32>
    %c64_i32 = arith.constant 64 : i32
    %c0_i32 = arith.constant 0 : i32
    %1 = arith.cmpi eq, %c64_i32, %c0_i32 : i32
    %c1_i32 = arith.constant 1 : i32
    %2 = arith.select %1, %c1_i32, %c64_i32 : i32
    %3 = vector.broadcast %2 : i32 to vector<2x192xi32>
    %4 = arith.remsi %0, %3 : vector<2x192xi32>
    %c0_i32_0 = arith.constant 0 : i32
    %5 = vector.broadcast %c0_i32_0 : i32 to vector<2x192xi32>
    %6 = arith.cmpi ne, %4, %5 : vector<2x192xi32>
    %c0_i32_1 = arith.constant 0 : i32
    %7 = vector.broadcast %c0_i32_1 : i32 to vector<2x192xi32>
    %8 = arith.cmpi slt, %4, %7 : vector<2x192xi32>
    %c0_i32_2 = arith.constant 0 : i32
    %9 = arith.cmpi slt, %2, %c0_i32_2 : i32
    %10 = vector.broadcast %9 : i1 to vector<2x192xi1>
    %11 = vector.broadcast %10 : vector<2x192xi1> to vector<2x192xi1>
    %12 = arith.xori %8, %11 : vector<2x192xi1>
    %13 = arith.andi %12, %6 : vector<2x192xi1>
    %14 = vector.broadcast %2 : i32 to vector<2x192xi32>
    %15 = arith.addi %4, %14 : vector<2x192xi32>
    %16 = arith.select %13, %15, %4 : vector<2x192xi1>, vector<2x192xi32>
    %c32_i32 = arith.constant 32 : i32
    %17 = vector.broadcast %c32_i32 : i32 to vector<2x192xi32>
    %18 = arith.cmpi slt, %16, %17 : vector<2x192xi32>
    %c0 = arith.constant 0 : index
    %c0_3 = arith.constant 0 : index
    %c0_4 = arith.constant 0 : index
    %19 = vector.load %arg0[%c0, %c0_3, %c0_4] : memref<2x8x12xf32, #tpu.memory_space<vmem>>, vector<2x8x12xf32>
    %20 = vector.extract_strided_slice %19 {offsets = [0, 0, 0], sizes = [2, 1, 12], strides = [1, 1, 1]} : vector<2x8x12xf32> to vector<2x1x12xf32>
    %21 = vector.shape_cast %20 : vector<2x1x12xf32> to vector<2x12xf32>
    %22 = vector.extract_strided_slice %19 {offsets = [0, 1, 0], sizes = [2, 1, 12], strides = [1, 1, 1]} : vector<2x8x12xf32> to vector<2x1x12xf32>
    %23 = vector.shape_cast %22 : vector<2x1x12xf32> to vector<2x12xf32>
    %24 = vector.extract_strided_slice %19 {offsets = [0, 2, 0], sizes = [2, 1, 12], strides = [1, 1, 1]} : vector<2x8x12xf32> to vector<2x1x12xf32>
    %25 = vector.shape_cast %24 : vector<2x1x12xf32> to vector<2x12xf32>
    %26 = vector.extract_strided_slice %19 {offsets = [0, 3, 0], sizes = [2, 1, 12], strides = [1, 1, 1]} : vector<2x8x12xf32> to vector<2x1x12xf32>
    %27 = vector.shape_cast %26 : vector<2x1x12xf32> to vector<2x12xf32>
    %28 = vector.extract_strided_slice %19 {offsets = [0, 4, 0], sizes = [2, 1, 12], strides = [1, 1, 1]} : vector<2x8x12xf32> to vector<2x1x12xf32>
    %29 = vector.shape_cast %28 : vector<2x1x12xf32> to vector<2x12xf32>
    %30 = vector.extract_strided_slice %19 {offsets = [0, 5, 0], sizes = [2, 1, 12], strides = [1, 1, 1]} : vector<2x8x12xf32> to vector<2x1x12xf32>
    %31 = vector.shape_cast %30 : vector<2x1x12xf32> to vector<2x12xf32>
    %32 = vector.extract_strided_slice %19 {offsets = [0, 6, 0], sizes = [2, 1, 12], strides = [1, 1, 1]} : vector<2x8x12xf32> to vector<2x1x12xf32>
    %33 = vector.shape_cast %32 : vector<2x1x12xf32> to vector<2x12xf32>
    %34 = vector.extract_strided_slice %19 {offsets = [0, 7, 0], sizes = [2, 1, 12], strides = [1, 1, 1]} : vector<2x8x12xf32> to vector<2x1x12xf32>
    %35 = vector.shape_cast %34 : vector<2x1x12xf32> to vector<2x12xf32>
    %36 = tpu.concatenate %21, %23, %25, %27, %29, %31, %33, %35 in 0 : vector<2x12xf32>, vector<2x12xf32>, vector<2x12xf32>, vector<2x12xf32>, vector<2x12xf32>, vector<2x12xf32>, vector<2x12xf32>, vector<2x12xf32> -> vector<16x12xf32>
    %c0_5 = arith.constant 0 : index
    %c0_6 = arith.constant 0 : index
    %37 = vector.load %arg1[%c0_5, %c0_6] : memref<640x256xbf16, #tpu.memory_space<vmem>>, vector<12x192xbf16>
    %38 = arith.truncf %36 : vector<16x12xf32> to vector<16x12xbf16>
    %cst = arith.constant dense<0.000000e+00> : vector<16x192xf32>
    %39 = tpu.matmul %38, %37, %cst {dimension_numbers = #tpu.dot_dimension_numbers<[1], [0], [0], [1], [0, 0, 1, 1], [], []>} : vector<16x12xbf16>, vector<12x192xbf16>, vector<16x192xf32> -> vector<16x192xf32>
    %c0_7 = arith.constant 0 : index
    %c0_8 = arith.constant 0 : index
    %40 = vector.load %arg2[%c0_7, %c0_8] : memref<96x256xf32, #tpu.memory_space<vmem>>, vector<1x192xf32>
    %41 = vector.broadcast %40 : vector<1x192xf32> to vector<16x192xf32>
    %42 = arith.addf %39, %41 : vector<16x192xf32>
    %cst_9 = arith.constant 0.000000e+00 : f32
    %43 = vector.broadcast %cst_9 : f32 to vector<2x64xf32>
    %c16 = arith.constant 16 : index
    %c0_10 = arith.constant 0 : index
    %44 = vector.load %arg1[%c16, %c0_10] : memref<640x256xbf16, #tpu.memory_space<vmem>>, vector<64x192xbf16>
    %c8 = arith.constant 8 : index
    %c0_11 = arith.constant 0 : index
    %45 = vector.load %arg2[%c8, %c0_11] : memref<96x256xf32, #tpu.memory_space<vmem>>, vector<1x192xf32>
    %46 = arith.truncf %43 : vector<2x64xf32> to vector<2x64xbf16>
    %cst_12 = arith.constant dense<0.000000e+00> : vector<2x192xf32>
    %47 = tpu.matmul %46, %44, %cst_12 {dimension_numbers = #tpu.dot_dimension_numbers<[1], [0], [0], [1], [0, 0, 1, 1], [], []>} : vector<2x64xbf16>, vector<64x192xbf16>, vector<2x192xf32> -> vector<2x192xf32>
    %48 = vector.broadcast %45 : vector<1x192xf32> to vector<2x192xf32>
    %49 = arith.addf %47, %48 : vector<2x192xf32>
    %50 = vector.extract_strided_slice %42 {offsets = [0, 0], sizes = [2, 192], strides = [1, 1]} : vector<16x192xf32> to vector<2x192xf32>
    %51 = vector.extract_strided_slice %42 {offsets = [14, 0], sizes = [2, 192], strides = [1, 1]} : vector<16x192xf32> to vector<2x192xf32>
    %52 = arith.select %18, %50, %51 : vector<2x192xi1>, vector<2x192xf32>
    %53 = vector.extract_strided_slice %52 {offsets = [0, 0], sizes = [2, 64], strides = [1, 1]} : vector<2x192xf32> to vector<2x64xf32>
    %54 = vector.extract_strided_slice %49 {offsets = [0, 0], sizes = [2, 64], strides = [1, 1]} : vector<2x192xf32> to vector<2x64xf32>
    %55 = arith.addf %53, %54 : vector<2x64xf32>
    %56 = arith.negf %55 : vector<2x64xf32>
    %57 = math.exp %56 : vector<2x64xf32>
    %cst_13 = arith.constant 1.000000e+00 : f32
    %58 = vector.broadcast %cst_13 : f32 to vector<2x64xf32>
    %59 = arith.addf %58, %57 : vector<2x64xf32>
    %60 = arith.divf %58, %59 : vector<2x64xf32>
    %61 = vector.extract_strided_slice %52 {offsets = [0, 64], sizes = [2, 64], strides = [1, 1]} : vector<2x192xf32> to vector<2x64xf32>
    %62 = vector.extract_strided_slice %49 {offsets = [0, 64], sizes = [2, 64], strides = [1, 1]} : vector<2x192xf32> to vector<2x64xf32>
    %63 = arith.addf %61, %62 : vector<2x64xf32>
    %64 = arith.negf %63 : vector<2x64xf32>
    %65 = math.exp %64 : vector<2x64xf32>
    %cst_14 = arith.constant 1.000000e+00 : f32
    %66 = vector.broadcast %cst_14 : f32 to vector<2x64xf32>
    %67 = arith.addf %66, %65 : vector<2x64xf32>
    %68 = arith.divf %66, %67 : vector<2x64xf32>
    %69 = vector.extract_strided_slice %52 {offsets = [0, 128], sizes = [2, 64], strides = [1, 1]} : vector<2x192xf32> to vector<2x64xf32>
    %70 = vector.extract_strided_slice %49 {offsets = [0, 128], sizes = [2, 64], strides = [1, 1]} : vector<2x192xf32> to vector<2x64xf32>
    %71 = arith.mulf %60, %70 : vector<2x64xf32>
    %72 = arith.addf %69, %71 : vector<2x64xf32>
    %73 = math.tanh %72 : vector<2x64xf32>
    %74 = arith.subf %43, %73 : vector<2x64xf32>
    %75 = arith.mulf %68, %74 : vector<2x64xf32>
    %76 = arith.addf %73, %75 : vector<2x64xf32>
    %77 = vector.extract_strided_slice %76 {offsets = [0, 0], sizes = [2, 32], strides = [1, 1]} : vector<2x64xf32> to vector<2x32xf32>
    %c0_15 = arith.constant 0 : index
    %c0_16 = arith.constant 0 : index
    %78 = vector.load %arg7[%c0_15, %c0_16] : memref<16x64xf32, #tpu.memory_space<vmem>>, vector<2x32xf32>
    tpu.vector_store %arg7[%c0_15, %c0_16], %77 {strides = array<i32>} : memref<16x64xf32, #tpu.memory_space<vmem>>, vector<2x32xf32>,
    %79 = vector.extract_strided_slice %76 {offsets = [0, 32], sizes = [2, 32], strides = [1, 1]} : vector<2x64xf32> to vector<2x32xf32>
    %c14 = arith.constant 14 : index
    %c32 = arith.constant 32 : index
    %80 = vector.load %arg7[%c14, %c32] : memref<16x64xf32, #tpu.memory_space<vmem>>, vector<2x32xf32>
    tpu.vector_store %arg7[%c14, %c32], %79 {strides = array<i32>} : memref<16x64xf32, #tpu.memory_space<vmem>>, vector<2x32xf32>,
    %81 = arith.truncf %76 : vector<2x64xf32> to vector<2x64xbf16>
    %cst_17 = arith.constant dense<0.000000e+00> : vector<2x192xf32>
    %82 = tpu.matmul %81, %44, %cst_17 {dimension_numbers = #tpu.dot_dimension_numbers<[1], [0], [0], [1], [0, 0, 1, 1], [], []>} : vector<2x64xbf16>, vector<64x192xbf16>, vector<2x192xf32> -> vector<2x192xf32>
    %83 = vector.broadcast %45 : vector<1x192xf32> to vector<2x192xf32>
    %84 = arith.addf %82, %83 : vector<2x192xf32>
    %85 = vector.extract_strided_slice %42 {offsets = [2, 0], sizes = [2, 192], strides = [1, 1]} : vector<16x192xf32> to vector<2x192xf32>
    %86 = vector.extract_strided_slice %42 {offsets = [12, 0], sizes = [2, 192], strides = [1, 1]} : vector<16x192xf32> to vector<2x192xf32>
    %87 = arith.select %18, %85, %86 : vector<2x192xi1>, vector<2x192xf32>
    %88 = vector.extract_strided_slice %87 {offsets = [0, 0], sizes = [2, 64], strides = [1, 1]} : vector<2x192xf32> to vector<2x64xf32>
    %89 = vector.extract_strided_slice %84 {offsets = [0, 0], sizes = [2, 64], strides = [1, 1]} : vector<2x192xf32> to vector<2x64xf32>
    %90 = arith.addf %88, %89 : vector<2x64xf32>
    %91 = arith.negf %90 : vector<2x64xf32>
    %92 = math.exp %91 : vector<2x64xf32>
    %cst_18 = arith.constant 1.000000e+00 : f32
    %93 = vector.broadcast %cst_18 : f32 to vector<2x64xf32>
    %94 = arith.addf %93, %92 : vector<2x64xf32>
    %95 = arith.divf %93, %94 : vector<2x64xf32>
    %96 = vector.extract_strided_slice %87 {offsets = [0, 64], sizes = [2, 64], strides = [1, 1]} : vector<2x192xf32> to vector<2x64xf32>
    %97 = vector.extract_strided_slice %84 {offsets = [0, 64], sizes = [2, 64], strides = [1, 1]} : vector<2x192xf32> to vector<2x64xf32>
    %98 = arith.addf %96, %97 : vector<2x64xf32>
    %99 = arith.negf %98 : vector<2x64xf32>
    %100 = math.exp %99 : vector<2x64xf32>
    %cst_19 = arith.constant 1.000000e+00 : f32
    %101 = vector.broadcast %cst_19 : f32 to vector<2x64xf32>
    %102 = arith.addf %101, %100 : vector<2x64xf32>
    %103 = arith.divf %101, %102 : vector<2x64xf32>
    %104 = vector.extract_strided_slice %87 {offsets = [0, 128], sizes = [2, 64], strides = [1, 1]} : vector<2x192xf32> to vector<2x64xf32>
    %105 = vector.extract_strided_slice %84 {offsets = [0, 128], sizes = [2, 64], strides = [1, 1]} : vector<2x192xf32> to vector<2x64xf32>
    %106 = arith.mulf %95, %105 : vector<2x64xf32>
    %107 = arith.addf %104, %106 : vector<2x64xf32>
    %108 = math.tanh %107 : vector<2x64xf32>
    %109 = arith.subf %76, %108 : vector<2x64xf32>
    %110 = arith.mulf %103, %109 : vector<2x64xf32>
    %111 = arith.addf %108, %110 : vector<2x64xf32>
    %112 = vector.extract_strided_slice %111 {offsets = [0, 0], sizes = [2, 32], strides = [1, 1]} : vector<2x64xf32> to vector<2x32xf32>
    %c2 = arith.constant 2 : index
    %c0_20 = arith.constant 0 : index
    %113 = vector.load %arg7[%c2, %c0_20] : memref<16x64xf32, #tpu.memory_space<vmem>>, vector<2x32xf32>
    tpu.vector_store %arg7[%c2, %c0_20], %112 {strides = array<i32>} : memref<16x64xf32, #tpu.memory_space<vmem>>, vector<2x32xf32>,
    %114 = vector.extract_strided_slice %111 {offsets = [0, 32], sizes = [2, 32], strides = [1, 1]} : vector<2x64xf32> to vector<2x32xf32>
    %c12 = arith.constant 12 : index
    %c32_21 = arith.constant 32 : index
    %115 = vector.load %arg7[%c12, %c32_21] : memref<16x64xf32, #tpu.memory_space<vmem>>, vector<2x32xf32>
    tpu.vector_store %arg7[%c12, %c32_21], %114 {strides = array<i32>} : memref<16x64xf32, #tpu.memory_space<vmem>>, vector<2x32xf32>,
    %116 = arith.truncf %111 : vector<2x64xf32> to vector<2x64xbf16>
    %cst_22 = arith.constant dense<0.000000e+00> : vector<2x192xf32>
    %117 = tpu.matmul %116, %44, %cst_22 {dimension_numbers = #tpu.dot_dimension_numbers<[1], [0], [0], [1], [0, 0, 1, 1], [], []>} : vector<2x64xbf16>, vector<64x192xbf16>, vector<2x192xf32> -> vector<2x192xf32>
    %118 = vector.broadcast %45 : vector<1x192xf32> to vector<2x192xf32>
    %119 = arith.addf %117, %118 : vector<2x192xf32>
    %120 = vector.extract_strided_slice %42 {offsets = [4, 0], sizes = [2, 192], strides = [1, 1]} : vector<16x192xf32> to vector<2x192xf32>
    %121 = vector.extract_strided_slice %42 {offsets = [10, 0], sizes = [2, 192], strides = [1, 1]} : vector<16x192xf32> to vector<2x192xf32>
    %122 = arith.select %18, %120, %121 : vector<2x192xi1>, vector<2x192xf32>
    %123 = vector.extract_strided_slice %122 {offsets = [0, 0], sizes = [2, 64], strides = [1, 1]} : vector<2x192xf32> to vector<2x64xf32>
    %124 = vector.extract_strided_slice %119 {offsets = [0, 0], sizes = [2, 64], strides = [1, 1]} : vector<2x192xf32> to vector<2x64xf32>
    %125 = arith.addf %123, %124 : vector<2x64xf32>
    %126 = arith.negf %125 : vector<2x64xf32>
    %127 = math.exp %126 : vector<2x64xf32>
    %cst_23 = arith.constant 1.000000e+00 : f32
    %128 = vector.broadcast %cst_23 : f32 to vector<2x64xf32>
    %129 = arith.addf %128, %127 : vector<2x64xf32>
    %130 = arith.divf %128, %129 : vector<2x64xf32>
    %131 = vector.extract_strided_slice %122 {offsets = [0, 64], sizes = [2, 64], strides = [1, 1]} : vector<2x192xf32> to vector<2x64xf32>
    %132 = vector.extract_strided_slice %119 {offsets = [0, 64], sizes = [2, 64], strides = [1, 1]} : vector<2x192xf32> to vector<2x64xf32>
    %133 = arith.addf %131, %132 : vector<2x64xf32>
    %134 = arith.negf %133 : vector<2x64xf32>
    %135 = math.exp %134 : vector<2x64xf32>
    %cst_24 = arith.constant 1.000000e+00 : f32
    %136 = vector.broadcast %cst_24 : f32 to vector<2x64xf32>
    %137 = arith.addf %136, %135 : vector<2x64xf32>
    %138 = arith.divf %136, %137 : vector<2x64xf32>
    %139 = vector.extract_strided_slice %122 {offsets = [0, 128], sizes = [2, 64], strides = [1, 1]} : vector<2x192xf32> to vector<2x64xf32>
    %140 = vector.extract_strided_slice %119 {offsets = [0, 128], sizes = [2, 64], strides = [1, 1]} : vector<2x192xf32> to vector<2x64xf32>
    %141 = arith.mulf %130, %140 : vector<2x64xf32>
    %142 = arith.addf %139, %141 : vector<2x64xf32>
    %143 = math.tanh %142 : vector<2x64xf32>
    %144 = arith.subf %111, %143 : vector<2x64xf32>
    %145 = arith.mulf %138, %144 : vector<2x64xf32>
    %146 = arith.addf %143, %145 : vector<2x64xf32>
    %147 = vector.extract_strided_slice %146 {offsets = [0, 0], sizes = [2, 32], strides = [1, 1]} : vector<2x64xf32> to vector<2x32xf32>
    %c4 = arith.constant 4 : index
    %c0_25 = arith.constant 0 : index
    %148 = vector.load %arg7[%c4, %c0_25] : memref<16x64xf32, #tpu.memory_space<vmem>>, vector<2x32xf32>
    tpu.vector_store %arg7[%c4, %c0_25], %147 {strides = array<i32>} : memref<16x64xf32, #tpu.memory_space<vmem>>, vector<2x32xf32>,
    %149 = vector.extract_strided_slice %146 {offsets = [0, 32], sizes = [2, 32], strides = [1, 1]} : vector<2x64xf32> to vector<2x32xf32>
    %c10 = arith.constant 10 : index
    %c32_26 = arith.constant 32 : index
    %150 = vector.load %arg7[%c10, %c32_26] : memref<16x64xf32, #tpu.memory_space<vmem>>, vector<2x32xf32>
    tpu.vector_store %arg7[%c10, %c32_26], %149 {strides = array<i32>} : memref<16x64xf32, #tpu.memory_space<vmem>>, vector<2x32xf32>,
    %151 = arith.truncf %146 : vector<2x64xf32> to vector<2x64xbf16>
    %cst_27 = arith.constant dense<0.000000e+00> : vector<2x192xf32>
    %152 = tpu.matmul %151, %44, %cst_27 {dimension_numbers = #tpu.dot_dimension_numbers<[1], [0], [0], [1], [0, 0, 1, 1], [], []>} : vector<2x64xbf16>, vector<64x192xbf16>, vector<2x192xf32> -> vector<2x192xf32>
    %153 = vector.broadcast %45 : vector<1x192xf32> to vector<2x192xf32>
    %154 = arith.addf %152, %153 : vector<2x192xf32>
    %155 = vector.extract_strided_slice %42 {offsets = [6, 0], sizes = [2, 192], strides = [1, 1]} : vector<16x192xf32> to vector<2x192xf32>
    %156 = vector.extract_strided_slice %42 {offsets = [8, 0], sizes = [2, 192], strides = [1, 1]} : vector<16x192xf32> to vector<2x192xf32>
    %157 = arith.select %18, %155, %156 : vector<2x192xi1>, vector<2x192xf32>
    %158 = vector.extract_strided_slice %157 {offsets = [0, 0], sizes = [2, 64], strides = [1, 1]} : vector<2x192xf32> to vector<2x64xf32>
    %159 = vector.extract_strided_slice %154 {offsets = [0, 0], sizes = [2, 64], strides = [1, 1]} : vector<2x192xf32> to vector<2x64xf32>
    %160 = arith.addf %158, %159 : vector<2x64xf32>
    %161 = arith.negf %160 : vector<2x64xf32>
    %162 = math.exp %161 : vector<2x64xf32>
    %cst_28 = arith.constant 1.000000e+00 : f32
    %163 = vector.broadcast %cst_28 : f32 to vector<2x64xf32>
    %164 = arith.addf %163, %162 : vector<2x64xf32>
    %165 = arith.divf %163, %164 : vector<2x64xf32>
    %166 = vector.extract_strided_slice %157 {offsets = [0, 64], sizes = [2, 64], strides = [1, 1]} : vector<2x192xf32> to vector<2x64xf32>
    %167 = vector.extract_strided_slice %154 {offsets = [0, 64], sizes = [2, 64], strides = [1, 1]} : vector<2x192xf32> to vector<2x64xf32>
    %168 = arith.addf %166, %167 : vector<2x64xf32>
    %169 = arith.negf %168 : vector<2x64xf32>
    %170 = math.exp %169 : vector<2x64xf32>
    %cst_29 = arith.constant 1.000000e+00 : f32
    %171 = vector.broadcast %cst_29 : f32 to vector<2x64xf32>
    %172 = arith.addf %171, %170 : vector<2x64xf32>
    %173 = arith.divf %171, %172 : vector<2x64xf32>
    %174 = vector.extract_strided_slice %157 {offsets = [0, 128], sizes = [2, 64], strides = [1, 1]} : vector<2x192xf32> to vector<2x64xf32>
    %175 = vector.extract_strided_slice %154 {offsets = [0, 128], sizes = [2, 64], strides = [1, 1]} : vector<2x192xf32> to vector<2x64xf32>
    %176 = arith.mulf %165, %175 : vector<2x64xf32>
    %177 = arith.addf %174, %176 : vector<2x64xf32>
    %178 = math.tanh %177 : vector<2x64xf32>
    %179 = arith.subf %146, %178 : vector<2x64xf32>
    %180 = arith.mulf %173, %179 : vector<2x64xf32>
    %181 = arith.addf %178, %180 : vector<2x64xf32>
    %182 = vector.extract_strided_slice %181 {offsets = [0, 0], sizes = [2, 32], strides = [1, 1]} : vector<2x64xf32> to vector<2x32xf32>
    %c6 = arith.constant 6 : index
    %c0_30 = arith.constant 0 : index
    %183 = vector.load %arg7[%c6, %c0_30] : memref<16x64xf32, #tpu.memory_space<vmem>>, vector<2x32xf32>
    tpu.vector_store %arg7[%c6, %c0_30], %182 {strides = array<i32>} : memref<16x64xf32, #tpu.memory_space<vmem>>, vector<2x32xf32>,
    %184 = vector.extract_strided_slice %181 {offsets = [0, 32], sizes = [2, 32], strides = [1, 1]} : vector<2x64xf32> to vector<2x32xf32>
    %c8_31 = arith.constant 8 : index
    %c32_32 = arith.constant 32 : index
    %185 = vector.load %arg7[%c8_31, %c32_32] : memref<16x64xf32, #tpu.memory_space<vmem>>, vector<2x32xf32>
    tpu.vector_store %arg7[%c8_31, %c32_32], %184 {strides = array<i32>} : memref<16x64xf32, #tpu.memory_space<vmem>>, vector<2x32xf32>,
    %186 = arith.truncf %181 : vector<2x64xf32> to vector<2x64xbf16>
    %cst_33 = arith.constant dense<0.000000e+00> : vector<2x192xf32>
    %187 = tpu.matmul %186, %44, %cst_33 {dimension_numbers = #tpu.dot_dimension_numbers<[1], [0], [0], [1], [0, 0, 1, 1], [], []>} : vector<2x64xbf16>, vector<64x192xbf16>, vector<2x192xf32> -> vector<2x192xf32>
    %188 = vector.broadcast %45 : vector<1x192xf32> to vector<2x192xf32>
    %189 = arith.addf %187, %188 : vector<2x192xf32>
    %190 = vector.extract_strided_slice %42 {offsets = [8, 0], sizes = [2, 192], strides = [1, 1]} : vector<16x192xf32> to vector<2x192xf32>
    %191 = vector.extract_strided_slice %42 {offsets = [6, 0], sizes = [2, 192], strides = [1, 1]} : vector<16x192xf32> to vector<2x192xf32>
    %192 = arith.select %18, %190, %191 : vector<2x192xi1>, vector<2x192xf32>
    %193 = vector.extract_strided_slice %192 {offsets = [0, 0], sizes = [2, 64], strides = [1, 1]} : vector<2x192xf32> to vector<2x64xf32>
    %194 = vector.extract_strided_slice %189 {offsets = [0, 0], sizes = [2, 64], strides = [1, 1]} : vector<2x192xf32> to vector<2x64xf32>
    %195 = arith.addf %193, %194 : vector<2x64xf32>
    %196 = arith.negf %195 : vector<2x64xf32>
    %197 = math.exp %196 : vector<2x64xf32>
    %cst_34 = arith.constant 1.000000e+00 : f32
    %198 = vector.broadcast %cst_34 : f32 to vector<2x64xf32>
    %199 = arith.addf %198, %197 : vector<2x64xf32>
    %200 = arith.divf %198, %199 : vector<2x64xf32>
    %201 = vector.extract_strided_slice %192 {offsets = [0, 64], sizes = [2, 64], strides = [1, 1]} : vector<2x192xf32> to vector<2x64xf32>
    %202 = vector.extract_strided_slice %189 {offsets = [0, 64], sizes = [2, 64], strides = [1, 1]} : vector<2x192xf32> to vector<2x64xf32>
    %203 = arith.addf %201, %202 : vector<2x64xf32>
    %204 = arith.negf %203 : vector<2x64xf32>
    %205 = math.exp %204 : vector<2x64xf32>
    %cst_35 = arith.constant 1.000000e+00 : f32
    %206 = vector.broadcast %cst_35 : f32 to vector<2x64xf32>
    %207 = arith.addf %206, %205 : vector<2x64xf32>
    %208 = arith.divf %206, %207 : vector<2x64xf32>
    %209 = vector.extract_strided_slice %192 {offsets = [0, 128], sizes = [2, 64], strides = [1, 1]} : vector<2x192xf32> to vector<2x64xf32>
    %210 = vector.extract_strided_slice %189 {offsets = [0, 128], sizes = [2, 64], strides = [1, 1]} : vector<2x192xf32> to vector<2x64xf32>
    %211 = arith.mulf %200, %210 : vector<2x64xf32>
    %212 = arith.addf %209, %211 : vector<2x64xf32>
    %213 = math.tanh %212 : vector<2x64xf32>
    %214 = arith.subf %181, %213 : vector<2x64xf32>
    %215 = arith.mulf %208, %214 : vector<2x64xf32>
    %216 = arith.addf %213, %215 : vector<2x64xf32>
    %217 = vector.extract_strided_slice %216 {offsets = [0, 0], sizes = [2, 32], strides = [1, 1]} : vector<2x64xf32> to vector<2x32xf32>
    %c8_36 = arith.constant 8 : index
    %c0_37 = arith.constant 0 : index
    %218 = vector.load %arg7[%c8_36, %c0_37] : memref<16x64xf32, #tpu.memory_space<vmem>>, vector<2x32xf32>
    tpu.vector_store %arg7[%c8_36, %c0_37], %217 {strides = array<i32>} : memref<16x64xf32, #tpu.memory_space<vmem>>, vector<2x32xf32>,
    %219 = vector.extract_strided_slice %216 {offsets = [0, 32], sizes = [2, 32], strides = [1, 1]} : vector<2x64xf32> to vector<2x32xf32>
    %c6_38 = arith.constant 6 : index
    %c32_39 = arith.constant 32 : index
    %220 = vector.load %arg7[%c6_38, %c32_39] : memref<16x64xf32, #tpu.memory_space<vmem>>, vector<2x32xf32>
    tpu.vector_store %arg7[%c6_38, %c32_39], %219 {strides = array<i32>} : memref<16x64xf32, #tpu.memory_space<vmem>>, vector<2x32xf32>,
    %221 = arith.truncf %216 : vector<2x64xf32> to vector<2x64xbf16>
    %cst_40 = arith.constant dense<0.000000e+00> : vector<2x192xf32>
    %222 = tpu.matmul %221, %44, %cst_40 {dimension_numbers = #tpu.dot_dimension_numbers<[1], [0], [0], [1], [0, 0, 1, 1], [], []>} : vector<2x64xbf16>, vector<64x192xbf16>, vector<2x192xf32> -> vector<2x192xf32>
    %223 = vector.broadcast %45 : vector<1x192xf32> to vector<2x192xf32>
    %224 = arith.addf %222, %223 : vector<2x192xf32>
    %225 = vector.extract_strided_slice %42 {offsets = [10, 0], sizes = [2, 192], strides = [1, 1]} : vector<16x192xf32> to vector<2x192xf32>
    %226 = vector.extract_strided_slice %42 {offsets = [4, 0], sizes = [2, 192], strides = [1, 1]} : vector<16x192xf32> to vector<2x192xf32>
    %227 = arith.select %18, %225, %226 : vector<2x192xi1>, vector<2x192xf32>
    %228 = vector.extract_strided_slice %227 {offsets = [0, 0], sizes = [2, 64], strides = [1, 1]} : vector<2x192xf32> to vector<2x64xf32>
    %229 = vector.extract_strided_slice %224 {offsets = [0, 0], sizes = [2, 64], strides = [1, 1]} : vector<2x192xf32> to vector<2x64xf32>
    %230 = arith.addf %228, %229 : vector<2x64xf32>
    %231 = arith.negf %230 : vector<2x64xf32>
    %232 = math.exp %231 : vector<2x64xf32>
    %cst_41 = arith.constant 1.000000e+00 : f32
    %233 = vector.broadcast %cst_41 : f32 to vector<2x64xf32>
    %234 = arith.addf %233, %232 : vector<2x64xf32>
    %235 = arith.divf %233, %234 : vector<2x64xf32>
    %236 = vector.extract_strided_slice %227 {offsets = [0, 64], sizes = [2, 64], strides = [1, 1]} : vector<2x192xf32> to vector<2x64xf32>
    %237 = vector.extract_strided_slice %224 {offsets = [0, 64], sizes = [2, 64], strides = [1, 1]} : vector<2x192xf32> to vector<2x64xf32>
    %238 = arith.addf %236, %237 : vector<2x64xf32>
    %239 = arith.negf %238 : vector<2x64xf32>
    %240 = math.exp %239 : vector<2x64xf32>
    %cst_42 = arith.constant 1.000000e+00 : f32
    %241 = vector.broadcast %cst_42 : f32 to vector<2x64xf32>
    %242 = arith.addf %241, %240 : vector<2x64xf32>
    %243 = arith.divf %241, %242 : vector<2x64xf32>
    %244 = vector.extract_strided_slice %227 {offsets = [0, 128], sizes = [2, 64], strides = [1, 1]} : vector<2x192xf32> to vector<2x64xf32>
    %245 = vector.extract_strided_slice %224 {offsets = [0, 128], sizes = [2, 64], strides = [1, 1]} : vector<2x192xf32> to vector<2x64xf32>
    %246 = arith.mulf %235, %245 : vector<2x64xf32>
    %247 = arith.addf %244, %246 : vector<2x64xf32>
    %248 = math.tanh %247 : vector<2x64xf32>
    %249 = arith.subf %216, %248 : vector<2x64xf32>
    %250 = arith.mulf %243, %249 : vector<2x64xf32>
    %251 = arith.addf %248, %250 : vector<2x64xf32>
    %252 = vector.extract_strided_slice %251 {offsets = [0, 0], sizes = [2, 32], strides = [1, 1]} : vector<2x64xf32> to vector<2x32xf32>
    %c10_43 = arith.constant 10 : index
    %c0_44 = arith.constant 0 : index
    %253 = vector.load %arg7[%c10_43, %c0_44] : memref<16x64xf32, #tpu.memory_space<vmem>>, vector<2x32xf32>
    tpu.vector_store %arg7[%c10_43, %c0_44], %252 {strides = array<i32>} : memref<16x64xf32, #tpu.memory_space<vmem>>, vector<2x32xf32>,
    %254 = vector.extract_strided_slice %251 {offsets = [0, 32], sizes = [2, 32], strides = [1, 1]} : vector<2x64xf32> to vector<2x32xf32>
    %c4_45 = arith.constant 4 : index
    %c32_46 = arith.constant 32 : index
    %255 = vector.load %arg7[%c4_45, %c32_46] : memref<16x64xf32, #tpu.memory_space<vmem>>, vector<2x32xf32>
    tpu.vector_store %arg7[%c4_45, %c32_46], %254 {strides = array<i32>} : memref<16x64xf32, #tpu.memory_space<vmem>>, vector<2x32xf32>,
    %256 = arith.truncf %251 : vector<2x64xf32> to vector<2x64xbf16>
    %cst_47 = arith.constant dense<0.000000e+00> : vector<2x192xf32>
    %257 = tpu.matmul %256, %44, %cst_47 {dimension_numbers = #tpu.dot_dimension_numbers<[1], [0], [0], [1], [0, 0, 1, 1], [], []>} : vector<2x64xbf16>, vector<64x192xbf16>, vector<2x192xf32> -> vector<2x192xf32>
    %258 = vector.broadcast %45 : vector<1x192xf32> to vector<2x192xf32>
    %259 = arith.addf %257, %258 : vector<2x192xf32>
    %260 = vector.extract_strided_slice %42 {offsets = [12, 0], sizes = [2, 192], strides = [1, 1]} : vector<16x192xf32> to vector<2x192xf32>
    %261 = vector.extract_strided_slice %42 {offsets = [2, 0], sizes = [2, 192], strides = [1, 1]} : vector<16x192xf32> to vector<2x192xf32>
    %262 = arith.select %18, %260, %261 : vector<2x192xi1>, vector<2x192xf32>
    %263 = vector.extract_strided_slice %262 {offsets = [0, 0], sizes = [2, 64], strides = [1, 1]} : vector<2x192xf32> to vector<2x64xf32>
    %264 = vector.extract_strided_slice %259 {offsets = [0, 0], sizes = [2, 64], strides = [1, 1]} : vector<2x192xf32> to vector<2x64xf32>
    %265 = arith.addf %263, %264 : vector<2x64xf32>
    %266 = arith.negf %265 : vector<2x64xf32>
    %267 = math.exp %266 : vector<2x64xf32>
    %cst_48 = arith.constant 1.000000e+00 : f32
    %268 = vector.broadcast %cst_48 : f32 to vector<2x64xf32>
    %269 = arith.addf %268, %267 : vector<2x64xf32>
    %270 = arith.divf %268, %269 : vector<2x64xf32>
    %271 = vector.extract_strided_slice %262 {offsets = [0, 64], sizes = [2, 64], strides = [1, 1]} : vector<2x192xf32> to vector<2x64xf32>
    %272 = vector.extract_strided_slice %259 {offsets = [0, 64], sizes = [2, 64], strides = [1, 1]} : vector<2x192xf32> to vector<2x64xf32>
    %273 = arith.addf %271, %272 : vector<2x64xf32>
    %274 = arith.negf %273 : vector<2x64xf32>
    %275 = math.exp %274 : vector<2x64xf32>
    %cst_49 = arith.constant 1.000000e+00 : f32
    %276 = vector.broadcast %cst_49 : f32 to vector<2x64xf32>
    %277 = arith.addf %276, %275 : vector<2x64xf32>
    %278 = arith.divf %276, %277 : vector<2x64xf32>
    %279 = vector.extract_strided_slice %262 {offsets = [0, 128], sizes = [2, 64], strides = [1, 1]} : vector<2x192xf32> to vector<2x64xf32>
    %280 = vector.extract_strided_slice %259 {offsets = [0, 128], sizes = [2, 64], strides = [1, 1]} : vector<2x192xf32> to vector<2x64xf32>
    %281 = arith.mulf %270, %280 : vector<2x64xf32>
    %282 = arith.addf %279, %281 : vector<2x64xf32>
    %283 = math.tanh %282 : vector<2x64xf32>
    %284 = arith.subf %251, %283 : vector<2x64xf32>
    %285 = arith.mulf %278, %284 : vector<2x64xf32>
    %286 = arith.addf %283, %285 : vector<2x64xf32>
    %287 = vector.extract_strided_slice %286 {offsets = [0, 0], sizes = [2, 32], strides = [1, 1]} : vector<2x64xf32> to vector<2x32xf32>
    %c12_50 = arith.constant 12 : index
    %c0_51 = arith.constant 0 : index
    %288 = vector.load %arg7[%c12_50, %c0_51] : memref<16x64xf32, #tpu.memory_space<vmem>>, vector<2x32xf32>
    tpu.vector_store %arg7[%c12_50, %c0_51], %287 {strides = array<i32>} : memref<16x64xf32, #tpu.memory_space<vmem>>, vector<2x32xf32>,
    %289 = vector.extract_strided_slice %286 {offsets = [0, 32], sizes = [2, 32], strides = [1, 1]} : vector<2x64xf32> to vector<2x32xf32>
    %c2_52 = arith.constant 2 : index
    %c32_53 = arith.constant 32 : index
    %290 = vector.load %arg7[%c2_52, %c32_53] : memref<16x64xf32, #tpu.memory_space<vmem>>, vector<2x32xf32>
    tpu.vector_store %arg7[%c2_52, %c32_53], %289 {strides = array<i32>} : memref<16x64xf32, #tpu.memory_space<vmem>>, vector<2x32xf32>,
    %291 = arith.truncf %286 : vector<2x64xf32> to vector<2x64xbf16>
    %cst_54 = arith.constant dense<0.000000e+00> : vector<2x192xf32>
    %292 = tpu.matmul %291, %44, %cst_54 {dimension_numbers = #tpu.dot_dimension_numbers<[1], [0], [0], [1], [0, 0, 1, 1], [], []>} : vector<2x64xbf16>, vector<64x192xbf16>, vector<2x192xf32> -> vector<2x192xf32>
    %293 = vector.broadcast %45 : vector<1x192xf32> to vector<2x192xf32>
    %294 = arith.addf %292, %293 : vector<2x192xf32>
    %295 = vector.extract_strided_slice %42 {offsets = [14, 0], sizes = [2, 192], strides = [1, 1]} : vector<16x192xf32> to vector<2x192xf32>
    %296 = vector.extract_strided_slice %42 {offsets = [0, 0], sizes = [2, 192], strides = [1, 1]} : vector<16x192xf32> to vector<2x192xf32>
    %297 = arith.select %18, %295, %296 : vector<2x192xi1>, vector<2x192xf32>
    %298 = vector.extract_strided_slice %297 {offsets = [0, 0], sizes = [2, 64], strides = [1, 1]} : vector<2x192xf32> to vector<2x64xf32>
    %299 = vector.extract_strided_slice %294 {offsets = [0, 0], sizes = [2, 64], strides = [1, 1]} : vector<2x192xf32> to vector<2x64xf32>
    %300 = arith.addf %298, %299 : vector<2x64xf32>
    %301 = arith.negf %300 : vector<2x64xf32>
    %302 = math.exp %301 : vector<2x64xf32>
    %cst_55 = arith.constant 1.000000e+00 : f32
    %303 = vector.broadcast %cst_55 : f32 to vector<2x64xf32>
    %304 = arith.addf %303, %302 : vector<2x64xf32>
    %305 = arith.divf %303, %304 : vector<2x64xf32>
    %306 = vector.extract_strided_slice %297 {offsets = [0, 64], sizes = [2, 64], strides = [1, 1]} : vector<2x192xf32> to vector<2x64xf32>
    %307 = vector.extract_strided_slice %294 {offsets = [0, 64], sizes = [2, 64], strides = [1, 1]} : vector<2x192xf32> to vector<2x64xf32>
    %308 = arith.addf %306, %307 : vector<2x64xf32>
    %309 = arith.negf %308 : vector<2x64xf32>
    %310 = math.exp %309 : vector<2x64xf32>
    %cst_56 = arith.constant 1.000000e+00 : f32
    %311 = vector.broadcast %cst_56 : f32 to vector<2x64xf32>
    %312 = arith.addf %311, %310 : vector<2x64xf32>
    %313 = arith.divf %311, %312 : vector<2x64xf32>
    %314 = vector.extract_strided_slice %297 {offsets = [0, 128], sizes = [2, 64], strides = [1, 1]} : vector<2x192xf32> to vector<2x64xf32>
    %315 = vector.extract_strided_slice %294 {offsets = [0, 128], sizes = [2, 64], strides = [1, 1]} : vector<2x192xf32> to vector<2x64xf32>
    %316 = arith.mulf %305, %315 : vector<2x64xf32>
    %317 = arith.addf %314, %316 : vector<2x64xf32>
    %318 = math.tanh %317 : vector<2x64xf32>
    %319 = arith.subf %286, %318 : vector<2x64xf32>
    %320 = arith.mulf %313, %319 : vector<2x64xf32>
    %321 = arith.addf %318, %320 : vector<2x64xf32>
    %322 = vector.extract_strided_slice %321 {offsets = [0, 0], sizes = [2, 32], strides = [1, 1]} : vector<2x64xf32> to vector<2x32xf32>
    %c14_57 = arith.constant 14 : index
    %c0_58 = arith.constant 0 : index
    %323 = vector.load %arg7[%c14_57, %c0_58] : memref<16x64xf32, #tpu.memory_space<vmem>>, vector<2x32xf32>
    tpu.vector_store %arg7[%c14_57, %c0_58], %322 {strides = array<i32>} : memref<16x64xf32, #tpu.memory_space<vmem>>, vector<2x32xf32>,
    %324 = vector.extract_strided_slice %321 {offsets = [0, 32], sizes = [2, 32], strides = [1, 1]} : vector<2x64xf32> to vector<2x32xf32>
    %c0_59 = arith.constant 0 : index
    %c32_60 = arith.constant 32 : index
    %325 = vector.load %arg7[%c0_59, %c32_60] : memref<16x64xf32, #tpu.memory_space<vmem>>, vector<2x32xf32>
    tpu.vector_store %arg7[%c0_59, %c32_60], %324 {strides = array<i32>} : memref<16x64xf32, #tpu.memory_space<vmem>>, vector<2x32xf32>,
    %c0_61 = arith.constant 0 : index
    %c0_62 = arith.constant 0 : index
    %326 = vector.load %arg7[%c0_61, %c0_62] : memref<16x64xf32, #tpu.memory_space<vmem>>, vector<16x64xf32>
    %c80 = arith.constant 80 : index
    %c0_63 = arith.constant 0 : index
    %327 = vector.load %arg1[%c80, %c0_63] : memref<640x256xbf16, #tpu.memory_space<vmem>>, vector<64x192xbf16>
    %328 = arith.truncf %326 : vector<16x64xf32> to vector<16x64xbf16>
    %cst_64 = arith.constant dense<0.000000e+00> : vector<16x192xf32>
    %329 = tpu.matmul %328, %327, %cst_64 {dimension_numbers = #tpu.dot_dimension_numbers<[1], [0], [0], [1], [0, 0, 1, 1], [], []>} : vector<16x64xbf16>, vector<64x192xbf16>, vector<16x192xf32> -> vector<16x192xf32>
    %c16_65 = arith.constant 16 : index
    %c0_66 = arith.constant 0 : index
    %330 = vector.load %arg2[%c16_65, %c0_66] : memref<96x256xf32, #tpu.memory_space<vmem>>, vector<1x192xf32>
    %331 = vector.broadcast %330 : vector<1x192xf32> to vector<16x192xf32>
    %332 = arith.addf %329, %331 : vector<16x192xf32>
    %c144 = arith.constant 144 : index
    %c0_67 = arith.constant 0 : index
    %333 = vector.load %arg1[%c144, %c0_67] : memref<640x256xbf16, #tpu.memory_space<vmem>>, vector<64x192xbf16>
    %c24 = arith.constant 24 : index
    %c0_68 = arith.constant 0 : index
    %334 = vector.load %arg2[%c24, %c0_68] : memref<96x256xf32, #tpu.memory_space<vmem>>, vector<1x192xf32>
    %335 = arith.truncf %43 : vector<2x64xf32> to vector<2x64xbf16>
    %cst_69 = arith.constant dense<0.000000e+00> : vector<2x192xf32>
    %336 = tpu.matmul %335, %333, %cst_69 {dimension_numbers = #tpu.dot_dimension_numbers<[1], [0], [0], [1], [0, 0, 1, 1], [], []>} : vector<2x64xbf16>, vector<64x192xbf16>, vector<2x192xf32> -> vector<2x192xf32>
    %337 = vector.broadcast %334 : vector<1x192xf32> to vector<2x192xf32>
    %338 = arith.addf %336, %337 : vector<2x192xf32>
    %339 = vector.extract_strided_slice %332 {offsets = [0, 0], sizes = [2, 192], strides = [1, 1]} : vector<16x192xf32> to vector<2x192xf32>
    %340 = vector.extract_strided_slice %332 {offsets = [14, 0], sizes = [2, 192], strides = [1, 1]} : vector<16x192xf32> to vector<2x192xf32>
    %341 = arith.select %18, %339, %340 : vector<2x192xi1>, vector<2x192xf32>
    %342 = vector.extract_strided_slice %341 {offsets = [0, 0], sizes = [2, 64], strides = [1, 1]} : vector<2x192xf32> to vector<2x64xf32>
    %343 = vector.extract_strided_slice %338 {offsets = [0, 0], sizes = [2, 64], strides = [1, 1]} : vector<2x192xf32> to vector<2x64xf32>
    %344 = arith.addf %342, %343 : vector<2x64xf32>
    %345 = arith.negf %344 : vector<2x64xf32>
    %346 = math.exp %345 : vector<2x64xf32>
    %cst_70 = arith.constant 1.000000e+00 : f32
    %347 = vector.broadcast %cst_70 : f32 to vector<2x64xf32>
    %348 = arith.addf %347, %346 : vector<2x64xf32>
    %349 = arith.divf %347, %348 : vector<2x64xf32>
    %350 = vector.extract_strided_slice %341 {offsets = [0, 64], sizes = [2, 64], strides = [1, 1]} : vector<2x192xf32> to vector<2x64xf32>
    %351 = vector.extract_strided_slice %338 {offsets = [0, 64], sizes = [2, 64], strides = [1, 1]} : vector<2x192xf32> to vector<2x64xf32>
    %352 = arith.addf %350, %351 : vector<2x64xf32>
    %353 = arith.negf %352 : vector<2x64xf32>
    %354 = math.exp %353 : vector<2x64xf32>
    %cst_71 = arith.constant 1.000000e+00 : f32
    %355 = vector.broadcast %cst_71 : f32 to vector<2x64xf32>
    %356 = arith.addf %355, %354 : vector<2x64xf32>
    %357 = arith.divf %355, %356 : vector<2x64xf32>
    %358 = vector.extract_strided_slice %341 {offsets = [0, 128], sizes = [2, 64], strides = [1, 1]} : vector<2x192xf32> to vector<2x64xf32>
    %359 = vector.extract_strided_slice %338 {offsets = [0, 128], sizes = [2, 64], strides = [1, 1]} : vector<2x192xf32> to vector<2x64xf32>
    %360 = arith.mulf %349, %359 : vector<2x64xf32>
    %361 = arith.addf %358, %360 : vector<2x64xf32>
    %362 = math.tanh %361 : vector<2x64xf32>
    %363 = arith.subf %43, %362 : vector<2x64xf32>
    %364 = arith.mulf %357, %363 : vector<2x64xf32>
    %365 = arith.addf %362, %364 : vector<2x64xf32>
    %366 = arith.truncf %365 : vector<2x64xf32> to vector<2x64xbf16>
    %cst_72 = arith.constant dense<0.000000e+00> : vector<2x192xf32>
    %367 = tpu.matmul %366, %333, %cst_72 {dimension_numbers = #tpu.dot_dimension_numbers<[1], [0], [0], [1], [0, 0, 1, 1], [], []>} : vector<2x64xbf16>, vector<64x192xbf16>, vector<2x192xf32> -> vector<2x192xf32>
    %368 = vector.broadcast %334 : vector<1x192xf32> to vector<2x192xf32>
    %369 = arith.addf %367, %368 : vector<2x192xf32>
    %370 = vector.extract_strided_slice %332 {offsets = [2, 0], sizes = [2, 192], strides = [1, 1]} : vector<16x192xf32> to vector<2x192xf32>
    %371 = vector.extract_strided_slice %332 {offsets = [12, 0], sizes = [2, 192], strides = [1, 1]} : vector<16x192xf32> to vector<2x192xf32>
    %372 = arith.select %18, %370, %371 : vector<2x192xi1>, vector<2x192xf32>
    %373 = vector.extract_strided_slice %372 {offsets = [0, 0], sizes = [2, 64], strides = [1, 1]} : vector<2x192xf32> to vector<2x64xf32>
    %374 = vector.extract_strided_slice %369 {offsets = [0, 0], sizes = [2, 64], strides = [1, 1]} : vector<2x192xf32> to vector<2x64xf32>
    %375 = arith.addf %373, %374 : vector<2x64xf32>
    %376 = arith.negf %375 : vector<2x64xf32>
    %377 = math.exp %376 : vector<2x64xf32>
    %cst_73 = arith.constant 1.000000e+00 : f32
    %378 = vector.broadcast %cst_73 : f32 to vector<2x64xf32>
    %379 = arith.addf %378, %377 : vector<2x64xf32>
    %380 = arith.divf %378, %379 : vector<2x64xf32>
    %381 = vector.extract_strided_slice %372 {offsets = [0, 64], sizes = [2, 64], strides = [1, 1]} : vector<2x192xf32> to vector<2x64xf32>
    %382 = vector.extract_strided_slice %369 {offsets = [0, 64], sizes = [2, 64], strides = [1, 1]} : vector<2x192xf32> to vector<2x64xf32>
    %383 = arith.addf %381, %382 : vector<2x64xf32>
    %384 = arith.negf %383 : vector<2x64xf32>
    %385 = math.exp %384 : vector<2x64xf32>
    %cst_74 = arith.constant 1.000000e+00 : f32
    %386 = vector.broadcast %cst_74 : f32 to vector<2x64xf32>
    %387 = arith.addf %386, %385 : vector<2x64xf32>
    %388 = arith.divf %386, %387 : vector<2x64xf32>
    %389 = vector.extract_strided_slice %372 {offsets = [0, 128], sizes = [2, 64], strides = [1, 1]} : vector<2x192xf32> to vector<2x64xf32>
    %390 = vector.extract_strided_slice %369 {offsets = [0, 128], sizes = [2, 64], strides = [1, 1]} : vector<2x192xf32> to vector<2x64xf32>
    %391 = arith.mulf %380, %390 : vector<2x64xf32>
    %392 = arith.addf %389, %391 : vector<2x64xf32>
    %393 = math.tanh %392 : vector<2x64xf32>
    %394 = arith.subf %365, %393 : vector<2x64xf32>
    %395 = arith.mulf %388, %394 : vector<2x64xf32>
    %396 = arith.addf %393, %395 : vector<2x64xf32>
    %397 = arith.truncf %396 : vector<2x64xf32> to vector<2x64xbf16>
    %cst_75 = arith.constant dense<0.000000e+00> : vector<2x192xf32>
    %398 = tpu.matmul %397, %333, %cst_75 {dimension_numbers = #tpu.dot_dimension_numbers<[1], [0], [0], [1], [0, 0, 1, 1], [], []>} : vector<2x64xbf16>, vector<64x192xbf16>, vector<2x192xf32> -> vector<2x192xf32>
    %399 = vector.broadcast %334 : vector<1x192xf32> to vector<2x192xf32>
    %400 = arith.addf %398, %399 : vector<2x192xf32>
    %401 = vector.extract_strided_slice %332 {offsets = [4, 0], sizes = [2, 192], strides = [1, 1]} : vector<16x192xf32> to vector<2x192xf32>
    %402 = vector.extract_strided_slice %332 {offsets = [10, 0], sizes = [2, 192], strides = [1, 1]} : vector<16x192xf32> to vector<2x192xf32>
    %403 = arith.select %18, %401, %402 : vector<2x192xi1>, vector<2x192xf32>
    %404 = vector.extract_strided_slice %403 {offsets = [0, 0], sizes = [2, 64], strides = [1, 1]} : vector<2x192xf32> to vector<2x64xf32>
    %405 = vector.extract_strided_slice %400 {offsets = [0, 0], sizes = [2, 64], strides = [1, 1]} : vector<2x192xf32> to vector<2x64xf32>
    %406 = arith.addf %404, %405 : vector<2x64xf32>
    %407 = arith.negf %406 : vector<2x64xf32>
    %408 = math.exp %407 : vector<2x64xf32>
    %cst_76 = arith.constant 1.000000e+00 : f32
    %409 = vector.broadcast %cst_76 : f32 to vector<2x64xf32>
    %410 = arith.addf %409, %408 : vector<2x64xf32>
    %411 = arith.divf %409, %410 : vector<2x64xf32>
    %412 = vector.extract_strided_slice %403 {offsets = [0, 64], sizes = [2, 64], strides = [1, 1]} : vector<2x192xf32> to vector<2x64xf32>
    %413 = vector.extract_strided_slice %400 {offsets = [0, 64], sizes = [2, 64], strides = [1, 1]} : vector<2x192xf32> to vector<2x64xf32>
    %414 = arith.addf %412, %413 : vector<2x64xf32>
    %415 = arith.negf %414 : vector<2x64xf32>
    %416 = math.exp %415 : vector<2x64xf32>
    %cst_77 = arith.constant 1.000000e+00 : f32
    %417 = vector.broadcast %cst_77 : f32 to vector<2x64xf32>
    %418 = arith.addf %417, %416 : vector<2x64xf32>
    %419 = arith.divf %417, %418 : vector<2x64xf32>
    %420 = vector.extract_strided_slice %403 {offsets = [0, 128], sizes = [2, 64], strides = [1, 1]} : vector<2x192xf32> to vector<2x64xf32>
    %421 = vector.extract_strided_slice %400 {offsets = [0, 128], sizes = [2, 64], strides = [1, 1]} : vector<2x192xf32> to vector<2x64xf32>
    %422 = arith.mulf %411, %421 : vector<2x64xf32>
    %423 = arith.addf %420, %422 : vector<2x64xf32>
    %424 = math.tanh %423 : vector<2x64xf32>
    %425 = arith.subf %396, %424 : vector<2x64xf32>
    %426 = arith.mulf %419, %425 : vector<2x64xf32>
    %427 = arith.addf %424, %426 : vector<2x64xf32>
    %428 = arith.truncf %427 : vector<2x64xf32> to vector<2x64xbf16>
    %cst_78 = arith.constant dense<0.000000e+00> : vector<2x192xf32>
    %429 = tpu.matmul %428, %333, %cst_78 {dimension_numbers = #tpu.dot_dimension_numbers<[1], [0], [0], [1], [0, 0, 1, 1], [], []>} : vector<2x64xbf16>, vector<64x192xbf16>, vector<2x192xf32> -> vector<2x192xf32>
    %430 = vector.broadcast %334 : vector<1x192xf32> to vector<2x192xf32>
    %431 = arith.addf %429, %430 : vector<2x192xf32>
    %432 = vector.extract_strided_slice %332 {offsets = [6, 0], sizes = [2, 192], strides = [1, 1]} : vector<16x192xf32> to vector<2x192xf32>
    %433 = vector.extract_strided_slice %332 {offsets = [8, 0], sizes = [2, 192], strides = [1, 1]} : vector<16x192xf32> to vector<2x192xf32>
    %434 = arith.select %18, %432, %433 : vector<2x192xi1>, vector<2x192xf32>
    %435 = vector.extract_strided_slice %434 {offsets = [0, 0], sizes = [2, 64], strides = [1, 1]} : vector<2x192xf32> to vector<2x64xf32>
    %436 = vector.extract_strided_slice %431 {offsets = [0, 0], sizes = [2, 64], strides = [1, 1]} : vector<2x192xf32> to vector<2x64xf32>
    %437 = arith.addf %435, %436 : vector<2x64xf32>
    %438 = arith.negf %437 : vector<2x64xf32>
    %439 = math.exp %438 : vector<2x64xf32>
    %cst_79 = arith.constant 1.000000e+00 : f32
    %440 = vector.broadcast %cst_79 : f32 to vector<2x64xf32>
    %441 = arith.addf %440, %439 : vector<2x64xf32>
    %442 = arith.divf %440, %441 : vector<2x64xf32>
    %443 = vector.extract_strided_slice %434 {offsets = [0, 64], sizes = [2, 64], strides = [1, 1]} : vector<2x192xf32> to vector<2x64xf32>
    %444 = vector.extract_strided_slice %431 {offsets = [0, 64], sizes = [2, 64], strides = [1, 1]} : vector<2x192xf32> to vector<2x64xf32>
    %445 = arith.addf %443, %444 : vector<2x64xf32>
    %446 = arith.negf %445 : vector<2x64xf32>
    %447 = math.exp %446 : vector<2x64xf32>
    %cst_80 = arith.constant 1.000000e+00 : f32
    %448 = vector.broadcast %cst_80 : f32 to vector<2x64xf32>
    %449 = arith.addf %448, %447 : vector<2x64xf32>
    %450 = arith.divf %448, %449 : vector<2x64xf32>
    %451 = vector.extract_strided_slice %434 {offsets = [0, 128], sizes = [2, 64], strides = [1, 1]} : vector<2x192xf32> to vector<2x64xf32>
    %452 = vector.extract_strided_slice %431 {offsets = [0, 128], sizes = [2, 64], strides = [1, 1]} : vector<2x192xf32> to vector<2x64xf32>
    %453 = arith.mulf %442, %452 : vector<2x64xf32>
    %454 = arith.addf %451, %453 : vector<2x64xf32>
    %455 = math.tanh %454 : vector<2x64xf32>
    %456 = arith.subf %427, %455 : vector<2x64xf32>
    %457 = arith.mulf %450, %456 : vector<2x64xf32>
    %458 = arith.addf %455, %457 : vector<2x64xf32>
    %459 = arith.truncf %458 : vector<2x64xf32> to vector<2x64xbf16>
    %cst_81 = arith.constant dense<0.000000e+00> : vector<2x192xf32>
    %460 = tpu.matmul %459, %333, %cst_81 {dimension_numbers = #tpu.dot_dimension_numbers<[1], [0], [0], [1], [0, 0, 1, 1], [], []>} : vector<2x64xbf16>, vector<64x192xbf16>, vector<2x192xf32> -> vector<2x192xf32>
    %461 = vector.broadcast %334 : vector<1x192xf32> to vector<2x192xf32>
    %462 = arith.addf %460, %461 : vector<2x192xf32>
    %463 = vector.extract_strided_slice %332 {offsets = [8, 0], sizes = [2, 192], strides = [1, 1]} : vector<16x192xf32> to vector<2x192xf32>
    %464 = vector.extract_strided_slice %332 {offsets = [6, 0], sizes = [2, 192], strides = [1, 1]} : vector<16x192xf32> to vector<2x192xf32>
    %465 = arith.select %18, %463, %464 : vector<2x192xi1>, vector<2x192xf32>
    %466 = vector.extract_strided_slice %465 {offsets = [0, 0], sizes = [2, 64], strides = [1, 1]} : vector<2x192xf32> to vector<2x64xf32>
    %467 = vector.extract_strided_slice %462 {offsets = [0, 0], sizes = [2, 64], strides = [1, 1]} : vector<2x192xf32> to vector<2x64xf32>
    %468 = arith.addf %466, %467 : vector<2x64xf32>
    %469 = arith.negf %468 : vector<2x64xf32>
    %470 = math.exp %469 : vector<2x64xf32>
    %cst_82 = arith.constant 1.000000e+00 : f32
    %471 = vector.broadcast %cst_82 : f32 to vector<2x64xf32>
    %472 = arith.addf %471, %470 : vector<2x64xf32>
    %473 = arith.divf %471, %472 : vector<2x64xf32>
    %474 = vector.extract_strided_slice %465 {offsets = [0, 64], sizes = [2, 64], strides = [1, 1]} : vector<2x192xf32> to vector<2x64xf32>
    %475 = vector.extract_strided_slice %462 {offsets = [0, 64], sizes = [2, 64], strides = [1, 1]} : vector<2x192xf32> to vector<2x64xf32>
    %476 = arith.addf %474, %475 : vector<2x64xf32>
    %477 = arith.negf %476 : vector<2x64xf32>
    %478 = math.exp %477 : vector<2x64xf32>
    %cst_83 = arith.constant 1.000000e+00 : f32
    %479 = vector.broadcast %cst_83 : f32 to vector<2x64xf32>
    %480 = arith.addf %479, %478 : vector<2x64xf32>
    %481 = arith.divf %479, %480 : vector<2x64xf32>
    %482 = vector.extract_strided_slice %465 {offsets = [0, 128], sizes = [2, 64], strides = [1, 1]} : vector<2x192xf32> to vector<2x64xf32>
    %483 = vector.extract_strided_slice %462 {offsets = [0, 128], sizes = [2, 64], strides = [1, 1]} : vector<2x192xf32> to vector<2x64xf32>
    %484 = arith.mulf %473, %483 : vector<2x64xf32>
    %485 = arith.addf %482, %484 : vector<2x64xf32>
    %486 = math.tanh %485 : vector<2x64xf32>
    %487 = arith.subf %458, %486 : vector<2x64xf32>
    %488 = arith.mulf %481, %487 : vector<2x64xf32>
    %489 = arith.addf %486, %488 : vector<2x64xf32>
    %490 = arith.truncf %489 : vector<2x64xf32> to vector<2x64xbf16>
    %cst_84 = arith.constant dense<0.000000e+00> : vector<2x192xf32>
    %491 = tpu.matmul %490, %333, %cst_84 {dimension_numbers = #tpu.dot_dimension_numbers<[1], [0], [0], [1], [0, 0, 1, 1], [], []>} : vector<2x64xbf16>, vector<64x192xbf16>, vector<2x192xf32> -> vector<2x192xf32>
    %492 = vector.broadcast %334 : vector<1x192xf32> to vector<2x192xf32>
    %493 = arith.addf %491, %492 : vector<2x192xf32>
    %494 = vector.extract_strided_slice %332 {offsets = [10, 0], sizes = [2, 192], strides = [1, 1]} : vector<16x192xf32> to vector<2x192xf32>
    %495 = vector.extract_strided_slice %332 {offsets = [4, 0], sizes = [2, 192], strides = [1, 1]} : vector<16x192xf32> to vector<2x192xf32>
    %496 = arith.select %18, %494, %495 : vector<2x192xi1>, vector<2x192xf32>
    %497 = vector.extract_strided_slice %496 {offsets = [0, 0], sizes = [2, 64], strides = [1, 1]} : vector<2x192xf32> to vector<2x64xf32>
    %498 = vector.extract_strided_slice %493 {offsets = [0, 0], sizes = [2, 64], strides = [1, 1]} : vector<2x192xf32> to vector<2x64xf32>
    %499 = arith.addf %497, %498 : vector<2x64xf32>
    %500 = arith.negf %499 : vector<2x64xf32>
    %501 = math.exp %500 : vector<2x64xf32>
    %cst_85 = arith.constant 1.000000e+00 : f32
    %502 = vector.broadcast %cst_85 : f32 to vector<2x64xf32>
    %503 = arith.addf %502, %501 : vector<2x64xf32>
    %504 = arith.divf %502, %503 : vector<2x64xf32>
    %505 = vector.extract_strided_slice %496 {offsets = [0, 64], sizes = [2, 64], strides = [1, 1]} : vector<2x192xf32> to vector<2x64xf32>
    %506 = vector.extract_strided_slice %493 {offsets = [0, 64], sizes = [2, 64], strides = [1, 1]} : vector<2x192xf32> to vector<2x64xf32>
    %507 = arith.addf %505, %506 : vector<2x64xf32>
    %508 = arith.negf %507 : vector<2x64xf32>
    %509 = math.exp %508 : vector<2x64xf32>
    %cst_86 = arith.constant 1.000000e+00 : f32
    %510 = vector.broadcast %cst_86 : f32 to vector<2x64xf32>
    %511 = arith.addf %510, %509 : vector<2x64xf32>
    %512 = arith.divf %510, %511 : vector<2x64xf32>
    %513 = vector.extract_strided_slice %496 {offsets = [0, 128], sizes = [2, 64], strides = [1, 1]} : vector<2x192xf32> to vector<2x64xf32>
    %514 = vector.extract_strided_slice %493 {offsets = [0, 128], sizes = [2, 64], strides = [1, 1]} : vector<2x192xf32> to vector<2x64xf32>
    %515 = arith.mulf %504, %514 : vector<2x64xf32>
    %516 = arith.addf %513, %515 : vector<2x64xf32>
    %517 = math.tanh %516 : vector<2x64xf32>
    %518 = arith.subf %489, %517 : vector<2x64xf32>
    %519 = arith.mulf %512, %518 : vector<2x64xf32>
    %520 = arith.addf %517, %519 : vector<2x64xf32>
    %521 = arith.truncf %520 : vector<2x64xf32> to vector<2x64xbf16>
    %cst_87 = arith.constant dense<0.000000e+00> : vector<2x192xf32>
    %522 = tpu.matmul %521, %333, %cst_87 {dimension_numbers = #tpu.dot_dimension_numbers<[1], [0], [0], [1], [0, 0, 1, 1], [], []>} : vector<2x64xbf16>, vector<64x192xbf16>, vector<2x192xf32> -> vector<2x192xf32>
    %523 = vector.broadcast %334 : vector<1x192xf32> to vector<2x192xf32>
    %524 = arith.addf %522, %523 : vector<2x192xf32>
    %525 = vector.extract_strided_slice %332 {offsets = [12, 0], sizes = [2, 192], strides = [1, 1]} : vector<16x192xf32> to vector<2x192xf32>
    %526 = vector.extract_strided_slice %332 {offsets = [2, 0], sizes = [2, 192], strides = [1, 1]} : vector<16x192xf32> to vector<2x192xf32>
    %527 = arith.select %18, %525, %526 : vector<2x192xi1>, vector<2x192xf32>
    %528 = vector.extract_strided_slice %527 {offsets = [0, 0], sizes = [2, 64], strides = [1, 1]} : vector<2x192xf32> to vector<2x64xf32>
    %529 = vector.extract_strided_slice %524 {offsets = [0, 0], sizes = [2, 64], strides = [1, 1]} : vector<2x192xf32> to vector<2x64xf32>
    %530 = arith.addf %528, %529 : vector<2x64xf32>
    %531 = arith.negf %530 : vector<2x64xf32>
    %532 = math.exp %531 : vector<2x64xf32>
    %cst_88 = arith.constant 1.000000e+00 : f32
    %533 = vector.broadcast %cst_88 : f32 to vector<2x64xf32>
    %534 = arith.addf %533, %532 : vector<2x64xf32>
    %535 = arith.divf %533, %534 : vector<2x64xf32>
    %536 = vector.extract_strided_slice %527 {offsets = [0, 64], sizes = [2, 64], strides = [1, 1]} : vector<2x192xf32> to vector<2x64xf32>
    %537 = vector.extract_strided_slice %524 {offsets = [0, 64], sizes = [2, 64], strides = [1, 1]} : vector<2x192xf32> to vector<2x64xf32>
    %538 = arith.addf %536, %537 : vector<2x64xf32>
    %539 = arith.negf %538 : vector<2x64xf32>
    %540 = math.exp %539 : vector<2x64xf32>
    %cst_89 = arith.constant 1.000000e+00 : f32
    %541 = vector.broadcast %cst_89 : f32 to vector<2x64xf32>
    %542 = arith.addf %541, %540 : vector<2x64xf32>
    %543 = arith.divf %541, %542 : vector<2x64xf32>
    %544 = vector.extract_strided_slice %527 {offsets = [0, 128], sizes = [2, 64], strides = [1, 1]} : vector<2x192xf32> to vector<2x64xf32>
    %545 = vector.extract_strided_slice %524 {offsets = [0, 128], sizes = [2, 64], strides = [1, 1]} : vector<2x192xf32> to vector<2x64xf32>
    %546 = arith.mulf %535, %545 : vector<2x64xf32>
    %547 = arith.addf %544, %546 : vector<2x64xf32>
    %548 = math.tanh %547 : vector<2x64xf32>
    %549 = arith.subf %520, %548 : vector<2x64xf32>
    %550 = arith.mulf %543, %549 : vector<2x64xf32>
    %551 = arith.addf %548, %550 : vector<2x64xf32>
    %552 = arith.truncf %551 : vector<2x64xf32> to vector<2x64xbf16>
    %cst_90 = arith.constant dense<0.000000e+00> : vector<2x192xf32>
    %553 = tpu.matmul %552, %333, %cst_90 {dimension_numbers = #tpu.dot_dimension_numbers<[1], [0], [0], [1], [0, 0, 1, 1], [], []>} : vector<2x64xbf16>, vector<64x192xbf16>, vector<2x192xf32> -> vector<2x192xf32>
    %554 = vector.broadcast %334 : vector<1x192xf32> to vector<2x192xf32>
    %555 = arith.addf %553, %554 : vector<2x192xf32>
    %556 = vector.extract_strided_slice %332 {offsets = [14, 0], sizes = [2, 192], strides = [1, 1]} : vector<16x192xf32> to vector<2x192xf32>
    %557 = vector.extract_strided_slice %332 {offsets = [0, 0], sizes = [2, 192], strides = [1, 1]} : vector<16x192xf32> to vector<2x192xf32>
    %558 = arith.select %18, %556, %557 : vector<2x192xi1>, vector<2x192xf32>
    %559 = vector.extract_strided_slice %558 {offsets = [0, 0], sizes = [2, 64], strides = [1, 1]} : vector<2x192xf32> to vector<2x64xf32>
    %560 = vector.extract_strided_slice %555 {offsets = [0, 0], sizes = [2, 64], strides = [1, 1]} : vector<2x192xf32> to vector<2x64xf32>
    %561 = arith.addf %559, %560 : vector<2x64xf32>
    %562 = arith.negf %561 : vector<2x64xf32>
    %563 = math.exp %562 : vector<2x64xf32>
    %cst_91 = arith.constant 1.000000e+00 : f32
    %564 = vector.broadcast %cst_91 : f32 to vector<2x64xf32>
    %565 = arith.addf %564, %563 : vector<2x64xf32>
    %566 = arith.divf %564, %565 : vector<2x64xf32>
    %567 = vector.extract_strided_slice %558 {offsets = [0, 64], sizes = [2, 64], strides = [1, 1]} : vector<2x192xf32> to vector<2x64xf32>
    %568 = vector.extract_strided_slice %555 {offsets = [0, 64], sizes = [2, 64], strides = [1, 1]} : vector<2x192xf32> to vector<2x64xf32>
    %569 = arith.addf %567, %568 : vector<2x64xf32>
    %570 = arith.negf %569 : vector<2x64xf32>
    %571 = math.exp %570 : vector<2x64xf32>
    %cst_92 = arith.constant 1.000000e+00 : f32
    %572 = vector.broadcast %cst_92 : f32 to vector<2x64xf32>
    %573 = arith.addf %572, %571 : vector<2x64xf32>
    %574 = arith.divf %572, %573 : vector<2x64xf32>
    %575 = vector.extract_strided_slice %558 {offsets = [0, 128], sizes = [2, 64], strides = [1, 1]} : vector<2x192xf32> to vector<2x64xf32>
    %576 = vector.extract_strided_slice %555 {offsets = [0, 128], sizes = [2, 64], strides = [1, 1]} : vector<2x192xf32> to vector<2x64xf32>
    %577 = arith.mulf %566, %576 : vector<2x64xf32>
    %578 = arith.addf %575, %577 : vector<2x64xf32>
    %579 = math.tanh %578 : vector<2x64xf32>
    %580 = arith.subf %551, %579 : vector<2x64xf32>
    %581 = arith.mulf %574, %580 : vector<2x64xf32>
    %582 = arith.addf %579, %581 : vector<2x64xf32>
    %583 = tpu.concatenate %321, %582 in 1 : vector<2x64xf32>, vector<2x64xf32> -> vector<2x128xf32>
    %c208 = arith.constant 208 : index
    %c0_93 = arith.constant 0 : index
    %584 = vector.load %arg1[%c208, %c0_93] : memref<640x256xbf16, #tpu.memory_space<vmem>>, vector<128x32xbf16>
    %585 = arith.truncf %583 : vector<2x128xf32> to vector<2x128xbf16>
    %cst_94 = arith.constant dense<0.000000e+00> : vector<2x32xf32>
    %586 = tpu.matmul %585, %584, %cst_94 {dimension_numbers = #tpu.dot_dimension_numbers<[1], [0], [0], [1], [0, 0, 1, 1], [], []>} : vector<2x128xbf16>, vector<128x32xbf16>, vector<2x32xf32> -> vector<2x32xf32>
    %c32_95 = arith.constant 32 : index
    %c0_96 = arith.constant 0 : index
    %587 = vector.load %arg2[%c32_95, %c0_96] : memref<96x256xf32, #tpu.memory_space<vmem>>, vector<1x32xf32>
    %588 = vector.broadcast %587 : vector<1x32xf32> to vector<2x32xf32>
    %589 = arith.addf %586, %588 : vector<2x32xf32>
    %590 = vector.extract_strided_slice %589 {offsets = [0, 0], sizes = [2, 16], strides = [1, 1]} : vector<2x32xf32> to vector<2x16xf32>
    %591 = vector.extract_strided_slice %589 {offsets = [0, 16], sizes = [2, 16], strides = [1, 1]} : vector<2x32xf32> to vector<2x16xf32>
    %c0_97 = arith.constant 0 : index
    %c0_98 = arith.constant 0 : index
    %592 = vector.load %arg3[%c0_97, %c0_98] : memref<2x16xf32, #tpu.memory_space<vmem>>, vector<2x16xf32>
    tpu.vector_store %arg3[%c0_97, %c0_98], %590 {strides = array<i32>} : memref<2x16xf32, #tpu.memory_space<vmem>>, vector<2x16xf32>,
    %c0_99 = arith.constant 0 : index
    %c0_100 = arith.constant 0 : index
    %593 = vector.load %arg4[%c0_99, %c0_100] : memref<2x16xf32, #tpu.memory_space<vmem>>, vector<2x16xf32>
    tpu.vector_store %arg4[%c0_99, %c0_100], %591 {strides = array<i32>} : memref<2x16xf32, #tpu.memory_space<vmem>>, vector<2x16xf32>,
    %c336 = arith.constant 336 : index
    %c0_101 = arith.constant 0 : index
    %594 = vector.load %arg1[%c336, %c0_101] : memref<640x256xbf16, #tpu.memory_space<vmem>>, vector<16x128xbf16>
    %595 = arith.truncf %590 : vector<2x16xf32> to vector<2x16xbf16>
    %cst_102 = arith.constant dense<0.000000e+00> : vector<2x128xf32>
    %596 = tpu.matmul %595, %594, %cst_102 {dimension_numbers = #tpu.dot_dimension_numbers<[1], [0], [0], [1], [0, 0, 1, 1], [], []>} : vector<2x16xbf16>, vector<16x128xbf16>, vector<2x128xf32> -> vector<2x128xf32>
    %c40 = arith.constant 40 : index
    %c0_103 = arith.constant 0 : index
    %597 = vector.load %arg2[%c40, %c0_103] : memref<96x256xf32, #tpu.memory_space<vmem>>, vector<1x128xf32>
    %598 = vector.broadcast %597 : vector<1x128xf32> to vector<2x128xf32>
    %599 = arith.addf %596, %598 : vector<2x128xf32>
    %600 = vector.extract_strided_slice %599 {offsets = [0, 0], sizes = [2, 64], strides = [1, 1]} : vector<2x128xf32> to vector<2x64xf32>
    %601 = vector.extract_strided_slice %600 {offsets = [0, 0], sizes = [1, 32], strides = [1, 1]} : vector<2x64xf32> to vector<1x32xf32>
    %602 = vector.extract_strided_slice %600 {offsets = [0, 32], sizes = [1, 32], strides = [1, 1]} : vector<2x64xf32> to vector<1x32xf32>
    %603 = tpu.concatenate %601, %602 in 0 : vector<1x32xf32>, vector<1x32xf32> -> vector<2x32xf32>
    %604 = vector.extract_strided_slice %600 {offsets = [1, 0], sizes = [1, 32], strides = [1, 1]} : vector<2x64xf32> to vector<1x32xf32>
    %605 = vector.extract_strided_slice %600 {offsets = [1, 32], sizes = [1, 32], strides = [1, 1]} : vector<2x64xf32> to vector<1x32xf32>
    %606 = tpu.concatenate %604, %605 in 0 : vector<1x32xf32>, vector<1x32xf32> -> vector<2x32xf32>
    %607 = tpu.concatenate %603, %606 in 1 : vector<2x32xf32>, vector<2x32xf32> -> vector<2x64xf32>
    %608 = vector.extract_strided_slice %599 {offsets = [0, 64], sizes = [2, 64], strides = [1, 1]} : vector<2x128xf32> to vector<2x64xf32>
    %609 = vector.extract_strided_slice %608 {offsets = [0, 0], sizes = [1, 32], strides = [1, 1]} : vector<2x64xf32> to vector<1x32xf32>
    %610 = vector.extract_strided_slice %608 {offsets = [0, 32], sizes = [1, 32], strides = [1, 1]} : vector<2x64xf32> to vector<1x32xf32>
    %611 = tpu.concatenate %609, %610 in 0 : vector<1x32xf32>, vector<1x32xf32> -> vector<2x32xf32>
    %612 = vector.extract_strided_slice %608 {offsets = [1, 0], sizes = [1, 32], strides = [1, 1]} : vector<2x64xf32> to vector<1x32xf32>
    %613 = vector.extract_strided_slice %608 {offsets = [1, 32], sizes = [1, 32], strides = [1, 1]} : vector<2x64xf32> to vector<1x32xf32>
    %614 = tpu.concatenate %612, %613 in 0 : vector<1x32xf32>, vector<1x32xf32> -> vector<2x32xf32>
    %615 = tpu.concatenate %611, %614 in 1 : vector<2x32xf32>, vector<2x32xf32> -> vector<2x64xf32>
    %c352 = arith.constant 352 : index
    %c0_104 = arith.constant 0 : index
    %616 = vector.load %arg1[%c352, %c0_104] : memref<640x256xbf16, #tpu.memory_space<vmem>>, vector<16x192xbf16>
    %617 = arith.truncf %590 : vector<2x16xf32> to vector<2x16xbf16>
    %cst_105 = arith.constant dense<0.000000e+00> : vector<2x192xf32>
    %618 = tpu.matmul %617, %616, %cst_105 {dimension_numbers = #tpu.dot_dimension_numbers<[1], [0], [0], [1], [0, 0, 1, 1], [], []>} : vector<2x16xbf16>, vector<16x192xbf16>, vector<2x192xf32> -> vector<2x192xf32>
    %c48 = arith.constant 48 : index
    %c0_106 = arith.constant 0 : index
    %619 = vector.load %arg2[%c48, %c0_106] : memref<96x256xf32, #tpu.memory_space<vmem>>, vector<1x192xf32>
    %620 = vector.broadcast %619 : vector<1x192xf32> to vector<2x192xf32>
    %621 = arith.addf %618, %620 : vector<2x192xf32>
    %c368 = arith.constant 368 : index
    %c0_107 = arith.constant 0 : index
    %622 = vector.load %arg1[%c368, %c0_107] : memref<640x256xbf16, #tpu.memory_space<vmem>>, vector<64x192xbf16>
    %c56 = arith.constant 56 : index
    %c0_108 = arith.constant 0 : index
    %623 = vector.load %arg2[%c56, %c0_108] : memref<96x256xf32, #tpu.memory_space<vmem>>, vector<1x192xf32>
    %624 = arith.truncf %607 : vector<2x64xf32> to vector<2x64xbf16>
    %cst_109 = arith.constant dense<0.000000e+00> : vector<2x192xf32>
    %625 = tpu.matmul %624, %622, %cst_109 {dimension_numbers = #tpu.dot_dimension_numbers<[1], [0], [0], [1], [0, 0, 1, 1], [], []>} : vector<2x64xbf16>, vector<64x192xbf16>, vector<2x192xf32> -> vector<2x192xf32>
    %626 = vector.broadcast %623 : vector<1x192xf32> to vector<2x192xf32>
    %627 = arith.addf %625, %626 : vector<2x192xf32>
    %628 = vector.extract_strided_slice %621 {offsets = [0, 0], sizes = [2, 64], strides = [1, 1]} : vector<2x192xf32> to vector<2x64xf32>
    %629 = vector.extract_strided_slice %627 {offsets = [0, 0], sizes = [2, 64], strides = [1, 1]} : vector<2x192xf32> to vector<2x64xf32>
    %630 = arith.addf %628, %629 : vector<2x64xf32>
    %631 = arith.negf %630 : vector<2x64xf32>
    %632 = math.exp %631 : vector<2x64xf32>
    %cst_110 = arith.constant 1.000000e+00 : f32
    %633 = vector.broadcast %cst_110 : f32 to vector<2x64xf32>
    %634 = arith.addf %633, %632 : vector<2x64xf32>
    %635 = arith.divf %633, %634 : vector<2x64xf32>
    %636 = vector.extract_strided_slice %621 {offsets = [0, 64], sizes = [2, 64], strides = [1, 1]} : vector<2x192xf32> to vector<2x64xf32>
    %637 = vector.extract_strided_slice %627 {offsets = [0, 64], sizes = [2, 64], strides = [1, 1]} : vector<2x192xf32> to vector<2x64xf32>
    %638 = arith.addf %636, %637 : vector<2x64xf32>
    %639 = arith.negf %638 : vector<2x64xf32>
    %640 = math.exp %639 : vector<2x64xf32>
    %cst_111 = arith.constant 1.000000e+00 : f32
    %641 = vector.broadcast %cst_111 : f32 to vector<2x64xf32>
    %642 = arith.addf %641, %640 : vector<2x64xf32>
    %643 = arith.divf %641, %642 : vector<2x64xf32>
    %644 = vector.extract_strided_slice %621 {offsets = [0, 128], sizes = [2, 64], strides = [1, 1]} : vector<2x192xf32> to vector<2x64xf32>
    %645 = vector.extract_strided_slice %627 {offsets = [0, 128], sizes = [2, 64], strides = [1, 1]} : vector<2x192xf32> to vector<2x64xf32>
    %646 = arith.mulf %635, %645 : vector<2x64xf32>
    %647 = arith.addf %644, %646 : vector<2x64xf32>
    %648 = math.tanh %647 : vector<2x64xf32>
    %649 = arith.subf %607, %648 : vector<2x64xf32>
    %650 = arith.mulf %643, %649 : vector<2x64xf32>
    %651 = arith.addf %648, %650 : vector<2x64xf32>
    %652 = vector.extract_strided_slice %651 {offsets = [0, 0], sizes = [2, 32], strides = [1, 1]} : vector<2x64xf32> to vector<2x32xf32>
    %c0_112 = arith.constant 0 : index
    %c0_113 = arith.constant 0 : index
    %653 = vector.load %arg8[%c0_112, %c0_113] : memref<16x64xf32, #tpu.memory_space<vmem>>, vector<2x32xf32>
    tpu.vector_store %arg8[%c0_112, %c0_113], %652 {strides = array<i32>} : memref<16x64xf32, #tpu.memory_space<vmem>>, vector<2x32xf32>,
    %654 = vector.extract_strided_slice %651 {offsets = [0, 32], sizes = [2, 32], strides = [1, 1]} : vector<2x64xf32> to vector<2x32xf32>
    %c14_114 = arith.constant 14 : index
    %c32_115 = arith.constant 32 : index
    %655 = vector.load %arg8[%c14_114, %c32_115] : memref<16x64xf32, #tpu.memory_space<vmem>>, vector<2x32xf32>
    tpu.vector_store %arg8[%c14_114, %c32_115], %654 {strides = array<i32>} : memref<16x64xf32, #tpu.memory_space<vmem>>, vector<2x32xf32>,
    %656 = arith.truncf %651 : vector<2x64xf32> to vector<2x64xbf16>
    %cst_116 = arith.constant dense<0.000000e+00> : vector<2x192xf32>
    %657 = tpu.matmul %656, %622, %cst_116 {dimension_numbers = #tpu.dot_dimension_numbers<[1], [0], [0], [1], [0, 0, 1, 1], [], []>} : vector<2x64xbf16>, vector<64x192xbf16>, vector<2x192xf32> -> vector<2x192xf32>
    %658 = vector.broadcast %623 : vector<1x192xf32> to vector<2x192xf32>
    %659 = arith.addf %657, %658 : vector<2x192xf32>
    %660 = vector.extract_strided_slice %621 {offsets = [0, 0], sizes = [2, 64], strides = [1, 1]} : vector<2x192xf32> to vector<2x64xf32>
    %661 = vector.extract_strided_slice %659 {offsets = [0, 0], sizes = [2, 64], strides = [1, 1]} : vector<2x192xf32> to vector<2x64xf32>
    %662 = arith.addf %660, %661 : vector<2x64xf32>
    %663 = arith.negf %662 : vector<2x64xf32>
    %664 = math.exp %663 : vector<2x64xf32>
    %cst_117 = arith.constant 1.000000e+00 : f32
    %665 = vector.broadcast %cst_117 : f32 to vector<2x64xf32>
    %666 = arith.addf %665, %664 : vector<2x64xf32>
    %667 = arith.divf %665, %666 : vector<2x64xf32>
    %668 = vector.extract_strided_slice %621 {offsets = [0, 64], sizes = [2, 64], strides = [1, 1]} : vector<2x192xf32> to vector<2x64xf32>
    %669 = vector.extract_strided_slice %659 {offsets = [0, 64], sizes = [2, 64], strides = [1, 1]} : vector<2x192xf32> to vector<2x64xf32>
    %670 = arith.addf %668, %669 : vector<2x64xf32>
    %671 = arith.negf %670 : vector<2x64xf32>
    %672 = math.exp %671 : vector<2x64xf32>
    %cst_118 = arith.constant 1.000000e+00 : f32
    %673 = vector.broadcast %cst_118 : f32 to vector<2x64xf32>
    %674 = arith.addf %673, %672 : vector<2x64xf32>
    %675 = arith.divf %673, %674 : vector<2x64xf32>
    %676 = vector.extract_strided_slice %621 {offsets = [0, 128], sizes = [2, 64], strides = [1, 1]} : vector<2x192xf32> to vector<2x64xf32>
    %677 = vector.extract_strided_slice %659 {offsets = [0, 128], sizes = [2, 64], strides = [1, 1]} : vector<2x192xf32> to vector<2x64xf32>
    %678 = arith.mulf %667, %677 : vector<2x64xf32>
    %679 = arith.addf %676, %678 : vector<2x64xf32>
    %680 = math.tanh %679 : vector<2x64xf32>
    %681 = arith.subf %651, %680 : vector<2x64xf32>
    %682 = arith.mulf %675, %681 : vector<2x64xf32>
    %683 = arith.addf %680, %682 : vector<2x64xf32>
    %684 = vector.extract_strided_slice %683 {offsets = [0, 0], sizes = [2, 32], strides = [1, 1]} : vector<2x64xf32> to vector<2x32xf32>
    %c2_119 = arith.constant 2 : index
    %c0_120 = arith.constant 0 : index
    %685 = vector.load %arg8[%c2_119, %c0_120] : memref<16x64xf32, #tpu.memory_space<vmem>>, vector<2x32xf32>
    tpu.vector_store %arg8[%c2_119, %c0_120], %684 {strides = array<i32>} : memref<16x64xf32, #tpu.memory_space<vmem>>, vector<2x32xf32>,
    %686 = vector.extract_strided_slice %683 {offsets = [0, 32], sizes = [2, 32], strides = [1, 1]} : vector<2x64xf32> to vector<2x32xf32>
    %c12_121 = arith.constant 12 : index
    %c32_122 = arith.constant 32 : index
    %687 = vector.load %arg8[%c12_121, %c32_122] : memref<16x64xf32, #tpu.memory_space<vmem>>, vector<2x32xf32>
    tpu.vector_store %arg8[%c12_121, %c32_122], %686 {strides = array<i32>} : memref<16x64xf32, #tpu.memory_space<vmem>>, vector<2x32xf32>,
    %688 = arith.truncf %683 : vector<2x64xf32> to vector<2x64xbf16>
    %cst_123 = arith.constant dense<0.000000e+00> : vector<2x192xf32>
    %689 = tpu.matmul %688, %622, %cst_123 {dimension_numbers = #tpu.dot_dimension_numbers<[1], [0], [0], [1], [0, 0, 1, 1], [], []>} : vector<2x64xbf16>, vector<64x192xbf16>, vector<2x192xf32> -> vector<2x192xf32>
    %690 = vector.broadcast %623 : vector<1x192xf32> to vector<2x192xf32>
    %691 = arith.addf %689, %690 : vector<2x192xf32>
    %692 = vector.extract_strided_slice %621 {offsets = [0, 0], sizes = [2, 64], strides = [1, 1]} : vector<2x192xf32> to vector<2x64xf32>
    %693 = vector.extract_strided_slice %691 {offsets = [0, 0], sizes = [2, 64], strides = [1, 1]} : vector<2x192xf32> to vector<2x64xf32>
    %694 = arith.addf %692, %693 : vector<2x64xf32>
    %695 = arith.negf %694 : vector<2x64xf32>
    %696 = math.exp %695 : vector<2x64xf32>
    %cst_124 = arith.constant 1.000000e+00 : f32
    %697 = vector.broadcast %cst_124 : f32 to vector<2x64xf32>
    %698 = arith.addf %697, %696 : vector<2x64xf32>
    %699 = arith.divf %697, %698 : vector<2x64xf32>
    %700 = vector.extract_strided_slice %621 {offsets = [0, 64], sizes = [2, 64], strides = [1, 1]} : vector<2x192xf32> to vector<2x64xf32>
    %701 = vector.extract_strided_slice %691 {offsets = [0, 64], sizes = [2, 64], strides = [1, 1]} : vector<2x192xf32> to vector<2x64xf32>
    %702 = arith.addf %700, %701 : vector<2x64xf32>
    %703 = arith.negf %702 : vector<2x64xf32>
    %704 = math.exp %703 : vector<2x64xf32>
    %cst_125 = arith.constant 1.000000e+00 : f32
    %705 = vector.broadcast %cst_125 : f32 to vector<2x64xf32>
    %706 = arith.addf %705, %704 : vector<2x64xf32>
    %707 = arith.divf %705, %706 : vector<2x64xf32>
    %708 = vector.extract_strided_slice %621 {offsets = [0, 128], sizes = [2, 64], strides = [1, 1]} : vector<2x192xf32> to vector<2x64xf32>
    %709 = vector.extract_strided_slice %691 {offsets = [0, 128], sizes = [2, 64], strides = [1, 1]} : vector<2x192xf32> to vector<2x64xf32>
    %710 = arith.mulf %699, %709 : vector<2x64xf32>
    %711 = arith.addf %708, %710 : vector<2x64xf32>
    %712 = math.tanh %711 : vector<2x64xf32>
    %713 = arith.subf %683, %712 : vector<2x64xf32>
    %714 = arith.mulf %707, %713 : vector<2x64xf32>
    %715 = arith.addf %712, %714 : vector<2x64xf32>
    %716 = vector.extract_strided_slice %715 {offsets = [0, 0], sizes = [2, 32], strides = [1, 1]} : vector<2x64xf32> to vector<2x32xf32>
    %c4_126 = arith.constant 4 : index
    %c0_127 = arith.constant 0 : index
    %717 = vector.load %arg8[%c4_126, %c0_127] : memref<16x64xf32, #tpu.memory_space<vmem>>, vector<2x32xf32>
    tpu.vector_store %arg8[%c4_126, %c0_127], %716 {strides = array<i32>} : memref<16x64xf32, #tpu.memory_space<vmem>>, vector<2x32xf32>,
    %718 = vector.extract_strided_slice %715 {offsets = [0, 32], sizes = [2, 32], strides = [1, 1]} : vector<2x64xf32> to vector<2x32xf32>
    %c10_128 = arith.constant 10 : index
    %c32_129 = arith.constant 32 : index
    %719 = vector.load %arg8[%c10_128, %c32_129] : memref<16x64xf32, #tpu.memory_space<vmem>>, vector<2x32xf32>
    tpu.vector_store %arg8[%c10_128, %c32_129], %718 {strides = array<i32>} : memref<16x64xf32, #tpu.memory_space<vmem>>, vector<2x32xf32>,
    %720 = arith.truncf %715 : vector<2x64xf32> to vector<2x64xbf16>
    %cst_130 = arith.constant dense<0.000000e+00> : vector<2x192xf32>
    %721 = tpu.matmul %720, %622, %cst_130 {dimension_numbers = #tpu.dot_dimension_numbers<[1], [0], [0], [1], [0, 0, 1, 1], [], []>} : vector<2x64xbf16>, vector<64x192xbf16>, vector<2x192xf32> -> vector<2x192xf32>
    %722 = vector.broadcast %623 : vector<1x192xf32> to vector<2x192xf32>
    %723 = arith.addf %721, %722 : vector<2x192xf32>
    %724 = vector.extract_strided_slice %621 {offsets = [0, 0], sizes = [2, 64], strides = [1, 1]} : vector<2x192xf32> to vector<2x64xf32>
    %725 = vector.extract_strided_slice %723 {offsets = [0, 0], sizes = [2, 64], strides = [1, 1]} : vector<2x192xf32> to vector<2x64xf32>
    %726 = arith.addf %724, %725 : vector<2x64xf32>
    %727 = arith.negf %726 : vector<2x64xf32>
    %728 = math.exp %727 : vector<2x64xf32>
    %cst_131 = arith.constant 1.000000e+00 : f32
    %729 = vector.broadcast %cst_131 : f32 to vector<2x64xf32>
    %730 = arith.addf %729, %728 : vector<2x64xf32>
    %731 = arith.divf %729, %730 : vector<2x64xf32>
    %732 = vector.extract_strided_slice %621 {offsets = [0, 64], sizes = [2, 64], strides = [1, 1]} : vector<2x192xf32> to vector<2x64xf32>
    %733 = vector.extract_strided_slice %723 {offsets = [0, 64], sizes = [2, 64], strides = [1, 1]} : vector<2x192xf32> to vector<2x64xf32>
    %734 = arith.addf %732, %733 : vector<2x64xf32>
    %735 = arith.negf %734 : vector<2x64xf32>
    %736 = math.exp %735 : vector<2x64xf32>
    %cst_132 = arith.constant 1.000000e+00 : f32
    %737 = vector.broadcast %cst_132 : f32 to vector<2x64xf32>
    %738 = arith.addf %737, %736 : vector<2x64xf32>
    %739 = arith.divf %737, %738 : vector<2x64xf32>
    %740 = vector.extract_strided_slice %621 {offsets = [0, 128], sizes = [2, 64], strides = [1, 1]} : vector<2x192xf32> to vector<2x64xf32>
    %741 = vector.extract_strided_slice %723 {offsets = [0, 128], sizes = [2, 64], strides = [1, 1]} : vector<2x192xf32> to vector<2x64xf32>
    %742 = arith.mulf %731, %741 : vector<2x64xf32>
    %743 = arith.addf %740, %742 : vector<2x64xf32>
    %744 = math.tanh %743 : vector<2x64xf32>
    %745 = arith.subf %715, %744 : vector<2x64xf32>
    %746 = arith.mulf %739, %745 : vector<2x64xf32>
    %747 = arith.addf %744, %746 : vector<2x64xf32>
    %748 = vector.extract_strided_slice %747 {offsets = [0, 0], sizes = [2, 32], strides = [1, 1]} : vector<2x64xf32> to vector<2x32xf32>
    %c6_133 = arith.constant 6 : index
    %c0_134 = arith.constant 0 : index
    %749 = vector.load %arg8[%c6_133, %c0_134] : memref<16x64xf32, #tpu.memory_space<vmem>>, vector<2x32xf32>
    tpu.vector_store %arg8[%c6_133, %c0_134], %748 {strides = array<i32>} : memref<16x64xf32, #tpu.memory_space<vmem>>, vector<2x32xf32>,
    %750 = vector.extract_strided_slice %747 {offsets = [0, 32], sizes = [2, 32], strides = [1, 1]} : vector<2x64xf32> to vector<2x32xf32>
    %c8_135 = arith.constant 8 : index
    %c32_136 = arith.constant 32 : index
    %751 = vector.load %arg8[%c8_135, %c32_136] : memref<16x64xf32, #tpu.memory_space<vmem>>, vector<2x32xf32>
    tpu.vector_store %arg8[%c8_135, %c32_136], %750 {strides = array<i32>} : memref<16x64xf32, #tpu.memory_space<vmem>>, vector<2x32xf32>,
    %752 = arith.truncf %747 : vector<2x64xf32> to vector<2x64xbf16>
    %cst_137 = arith.constant dense<0.000000e+00> : vector<2x192xf32>
    %753 = tpu.matmul %752, %622, %cst_137 {dimension_numbers = #tpu.dot_dimension_numbers<[1], [0], [0], [1], [0, 0, 1, 1], [], []>} : vector<2x64xbf16>, vector<64x192xbf16>, vector<2x192xf32> -> vector<2x192xf32>
    %754 = vector.broadcast %623 : vector<1x192xf32> to vector<2x192xf32>
    %755 = arith.addf %753, %754 : vector<2x192xf32>
    %756 = vector.extract_strided_slice %621 {offsets = [0, 0], sizes = [2, 64], strides = [1, 1]} : vector<2x192xf32> to vector<2x64xf32>
    %757 = vector.extract_strided_slice %755 {offsets = [0, 0], sizes = [2, 64], strides = [1, 1]} : vector<2x192xf32> to vector<2x64xf32>
    %758 = arith.addf %756, %757 : vector<2x64xf32>
    %759 = arith.negf %758 : vector<2x64xf32>
    %760 = math.exp %759 : vector<2x64xf32>
    %cst_138 = arith.constant 1.000000e+00 : f32
    %761 = vector.broadcast %cst_138 : f32 to vector<2x64xf32>
    %762 = arith.addf %761, %760 : vector<2x64xf32>
    %763 = arith.divf %761, %762 : vector<2x64xf32>
    %764 = vector.extract_strided_slice %621 {offsets = [0, 64], sizes = [2, 64], strides = [1, 1]} : vector<2x192xf32> to vector<2x64xf32>
    %765 = vector.extract_strided_slice %755 {offsets = [0, 64], sizes = [2, 64], strides = [1, 1]} : vector<2x192xf32> to vector<2x64xf32>
    %766 = arith.addf %764, %765 : vector<2x64xf32>
    %767 = arith.negf %766 : vector<2x64xf32>
    %768 = math.exp %767 : vector<2x64xf32>
    %cst_139 = arith.constant 1.000000e+00 : f32
    %769 = vector.broadcast %cst_139 : f32 to vector<2x64xf32>
    %770 = arith.addf %769, %768 : vector<2x64xf32>
    %771 = arith.divf %769, %770 : vector<2x64xf32>
    %772 = vector.extract_strided_slice %621 {offsets = [0, 128], sizes = [2, 64], strides = [1, 1]} : vector<2x192xf32> to vector<2x64xf32>
    %773 = vector.extract_strided_slice %755 {offsets = [0, 128], sizes = [2, 64], strides = [1, 1]} : vector<2x192xf32> to vector<2x64xf32>
    %774 = arith.mulf %763, %773 : vector<2x64xf32>
    %775 = arith.addf %772, %774 : vector<2x64xf32>
    %776 = math.tanh %775 : vector<2x64xf32>
    %777 = arith.subf %747, %776 : vector<2x64xf32>
    %778 = arith.mulf %771, %777 : vector<2x64xf32>
    %779 = arith.addf %776, %778 : vector<2x64xf32>
    %780 = vector.extract_strided_slice %779 {offsets = [0, 0], sizes = [2, 32], strides = [1, 1]} : vector<2x64xf32> to vector<2x32xf32>
    %c8_140 = arith.constant 8 : index
    %c0_141 = arith.constant 0 : index
    %781 = vector.load %arg8[%c8_140, %c0_141] : memref<16x64xf32, #tpu.memory_space<vmem>>, vector<2x32xf32>
    tpu.vector_store %arg8[%c8_140, %c0_141], %780 {strides = array<i32>} : memref<16x64xf32, #tpu.memory_space<vmem>>, vector<2x32xf32>,
    %782 = vector.extract_strided_slice %779 {offsets = [0, 32], sizes = [2, 32], strides = [1, 1]} : vector<2x64xf32> to vector<2x32xf32>
    %c6_142 = arith.constant 6 : index
    %c32_143 = arith.constant 32 : index
    %783 = vector.load %arg8[%c6_142, %c32_143] : memref<16x64xf32, #tpu.memory_space<vmem>>, vector<2x32xf32>
    tpu.vector_store %arg8[%c6_142, %c32_143], %782 {strides = array<i32>} : memref<16x64xf32, #tpu.memory_space<vmem>>, vector<2x32xf32>,
    %784 = arith.truncf %779 : vector<2x64xf32> to vector<2x64xbf16>
    %cst_144 = arith.constant dense<0.000000e+00> : vector<2x192xf32>
    %785 = tpu.matmul %784, %622, %cst_144 {dimension_numbers = #tpu.dot_dimension_numbers<[1], [0], [0], [1], [0, 0, 1, 1], [], []>} : vector<2x64xbf16>, vector<64x192xbf16>, vector<2x192xf32> -> vector<2x192xf32>
    %786 = vector.broadcast %623 : vector<1x192xf32> to vector<2x192xf32>
    %787 = arith.addf %785, %786 : vector<2x192xf32>
    %788 = vector.extract_strided_slice %621 {offsets = [0, 0], sizes = [2, 64], strides = [1, 1]} : vector<2x192xf32> to vector<2x64xf32>
    %789 = vector.extract_strided_slice %787 {offsets = [0, 0], sizes = [2, 64], strides = [1, 1]} : vector<2x192xf32> to vector<2x64xf32>
    %790 = arith.addf %788, %789 : vector<2x64xf32>
    %791 = arith.negf %790 : vector<2x64xf32>
    %792 = math.exp %791 : vector<2x64xf32>
    %cst_145 = arith.constant 1.000000e+00 : f32
    %793 = vector.broadcast %cst_145 : f32 to vector<2x64xf32>
    %794 = arith.addf %793, %792 : vector<2x64xf32>
    %795 = arith.divf %793, %794 : vector<2x64xf32>
    %796 = vector.extract_strided_slice %621 {offsets = [0, 64], sizes = [2, 64], strides = [1, 1]} : vector<2x192xf32> to vector<2x64xf32>
    %797 = vector.extract_strided_slice %787 {offsets = [0, 64], sizes = [2, 64], strides = [1, 1]} : vector<2x192xf32> to vector<2x64xf32>
    %798 = arith.addf %796, %797 : vector<2x64xf32>
    %799 = arith.negf %798 : vector<2x64xf32>
    %800 = math.exp %799 : vector<2x64xf32>
    %cst_146 = arith.constant 1.000000e+00 : f32
    %801 = vector.broadcast %cst_146 : f32 to vector<2x64xf32>
    %802 = arith.addf %801, %800 : vector<2x64xf32>
    %803 = arith.divf %801, %802 : vector<2x64xf32>
    %804 = vector.extract_strided_slice %621 {offsets = [0, 128], sizes = [2, 64], strides = [1, 1]} : vector<2x192xf32> to vector<2x64xf32>
    %805 = vector.extract_strided_slice %787 {offsets = [0, 128], sizes = [2, 64], strides = [1, 1]} : vector<2x192xf32> to vector<2x64xf32>
    %806 = arith.mulf %795, %805 : vector<2x64xf32>
    %807 = arith.addf %804, %806 : vector<2x64xf32>
    %808 = math.tanh %807 : vector<2x64xf32>
    %809 = arith.subf %779, %808 : vector<2x64xf32>
    %810 = arith.mulf %803, %809 : vector<2x64xf32>
    %811 = arith.addf %808, %810 : vector<2x64xf32>
    %812 = vector.extract_strided_slice %811 {offsets = [0, 0], sizes = [2, 32], strides = [1, 1]} : vector<2x64xf32> to vector<2x32xf32>
    %c10_147 = arith.constant 10 : index
    %c0_148 = arith.constant 0 : index
    %813 = vector.load %arg8[%c10_147, %c0_148] : memref<16x64xf32, #tpu.memory_space<vmem>>, vector<2x32xf32>
    tpu.vector_store %arg8[%c10_147, %c0_148], %812 {strides = array<i32>} : memref<16x64xf32, #tpu.memory_space<vmem>>, vector<2x32xf32>,
    %814 = vector.extract_strided_slice %811 {offsets = [0, 32], sizes = [2, 32], strides = [1, 1]} : vector<2x64xf32> to vector<2x32xf32>
    %c4_149 = arith.constant 4 : index
    %c32_150 = arith.constant 32 : index
    %815 = vector.load %arg8[%c4_149, %c32_150] : memref<16x64xf32, #tpu.memory_space<vmem>>, vector<2x32xf32>
    tpu.vector_store %arg8[%c4_149, %c32_150], %814 {strides = array<i32>} : memref<16x64xf32, #tpu.memory_space<vmem>>, vector<2x32xf32>,
    %816 = arith.truncf %811 : vector<2x64xf32> to vector<2x64xbf16>
    %cst_151 = arith.constant dense<0.000000e+00> : vector<2x192xf32>
    %817 = tpu.matmul %816, %622, %cst_151 {dimension_numbers = #tpu.dot_dimension_numbers<[1], [0], [0], [1], [0, 0, 1, 1], [], []>} : vector<2x64xbf16>, vector<64x192xbf16>, vector<2x192xf32> -> vector<2x192xf32>
    %818 = vector.broadcast %623 : vector<1x192xf32> to vector<2x192xf32>
    %819 = arith.addf %817, %818 : vector<2x192xf32>
    %820 = vector.extract_strided_slice %621 {offsets = [0, 0], sizes = [2, 64], strides = [1, 1]} : vector<2x192xf32> to vector<2x64xf32>
    %821 = vector.extract_strided_slice %819 {offsets = [0, 0], sizes = [2, 64], strides = [1, 1]} : vector<2x192xf32> to vector<2x64xf32>
    %822 = arith.addf %820, %821 : vector<2x64xf32>
    %823 = arith.negf %822 : vector<2x64xf32>
    %824 = math.exp %823 : vector<2x64xf32>
    %cst_152 = arith.constant 1.000000e+00 : f32
    %825 = vector.broadcast %cst_152 : f32 to vector<2x64xf32>
    %826 = arith.addf %825, %824 : vector<2x64xf32>
    %827 = arith.divf %825, %826 : vector<2x64xf32>
    %828 = vector.extract_strided_slice %621 {offsets = [0, 64], sizes = [2, 64], strides = [1, 1]} : vector<2x192xf32> to vector<2x64xf32>
    %829 = vector.extract_strided_slice %819 {offsets = [0, 64], sizes = [2, 64], strides = [1, 1]} : vector<2x192xf32> to vector<2x64xf32>
    %830 = arith.addf %828, %829 : vector<2x64xf32>
    %831 = arith.negf %830 : vector<2x64xf32>
    %832 = math.exp %831 : vector<2x64xf32>
    %cst_153 = arith.constant 1.000000e+00 : f32
    %833 = vector.broadcast %cst_153 : f32 to vector<2x64xf32>
    %834 = arith.addf %833, %832 : vector<2x64xf32>
    %835 = arith.divf %833, %834 : vector<2x64xf32>
    %836 = vector.extract_strided_slice %621 {offsets = [0, 128], sizes = [2, 64], strides = [1, 1]} : vector<2x192xf32> to vector<2x64xf32>
    %837 = vector.extract_strided_slice %819 {offsets = [0, 128], sizes = [2, 64], strides = [1, 1]} : vector<2x192xf32> to vector<2x64xf32>
    %838 = arith.mulf %827, %837 : vector<2x64xf32>
    %839 = arith.addf %836, %838 : vector<2x64xf32>
    %840 = math.tanh %839 : vector<2x64xf32>
    %841 = arith.subf %811, %840 : vector<2x64xf32>
    %842 = arith.mulf %835, %841 : vector<2x64xf32>
    %843 = arith.addf %840, %842 : vector<2x64xf32>
    %844 = vector.extract_strided_slice %843 {offsets = [0, 0], sizes = [2, 32], strides = [1, 1]} : vector<2x64xf32> to vector<2x32xf32>
    %c12_154 = arith.constant 12 : index
    %c0_155 = arith.constant 0 : index
    %845 = vector.load %arg8[%c12_154, %c0_155] : memref<16x64xf32, #tpu.memory_space<vmem>>, vector<2x32xf32>
    tpu.vector_store %arg8[%c12_154, %c0_155], %844 {strides = array<i32>} : memref<16x64xf32, #tpu.memory_space<vmem>>, vector<2x32xf32>,
    %846 = vector.extract_strided_slice %843 {offsets = [0, 32], sizes = [2, 32], strides = [1, 1]} : vector<2x64xf32> to vector<2x32xf32>
    %c2_156 = arith.constant 2 : index
    %c32_157 = arith.constant 32 : index
    %847 = vector.load %arg8[%c2_156, %c32_157] : memref<16x64xf32, #tpu.memory_space<vmem>>, vector<2x32xf32>
    tpu.vector_store %arg8[%c2_156, %c32_157], %846 {strides = array<i32>} : memref<16x64xf32, #tpu.memory_space<vmem>>, vector<2x32xf32>,
    %848 = arith.truncf %843 : vector<2x64xf32> to vector<2x64xbf16>
    %cst_158 = arith.constant dense<0.000000e+00> : vector<2x192xf32>
    %849 = tpu.matmul %848, %622, %cst_158 {dimension_numbers = #tpu.dot_dimension_numbers<[1], [0], [0], [1], [0, 0, 1, 1], [], []>} : vector<2x64xbf16>, vector<64x192xbf16>, vector<2x192xf32> -> vector<2x192xf32>
    %850 = vector.broadcast %623 : vector<1x192xf32> to vector<2x192xf32>
    %851 = arith.addf %849, %850 : vector<2x192xf32>
    %852 = vector.extract_strided_slice %621 {offsets = [0, 0], sizes = [2, 64], strides = [1, 1]} : vector<2x192xf32> to vector<2x64xf32>
    %853 = vector.extract_strided_slice %851 {offsets = [0, 0], sizes = [2, 64], strides = [1, 1]} : vector<2x192xf32> to vector<2x64xf32>
    %854 = arith.addf %852, %853 : vector<2x64xf32>
    %855 = arith.negf %854 : vector<2x64xf32>
    %856 = math.exp %855 : vector<2x64xf32>
    %cst_159 = arith.constant 1.000000e+00 : f32
    %857 = vector.broadcast %cst_159 : f32 to vector<2x64xf32>
    %858 = arith.addf %857, %856 : vector<2x64xf32>
    %859 = arith.divf %857, %858 : vector<2x64xf32>
    %860 = vector.extract_strided_slice %621 {offsets = [0, 64], sizes = [2, 64], strides = [1, 1]} : vector<2x192xf32> to vector<2x64xf32>
    %861 = vector.extract_strided_slice %851 {offsets = [0, 64], sizes = [2, 64], strides = [1, 1]} : vector<2x192xf32> to vector<2x64xf32>
    %862 = arith.addf %860, %861 : vector<2x64xf32>
    %863 = arith.negf %862 : vector<2x64xf32>
    %864 = math.exp %863 : vector<2x64xf32>
    %cst_160 = arith.constant 1.000000e+00 : f32
    %865 = vector.broadcast %cst_160 : f32 to vector<2x64xf32>
    %866 = arith.addf %865, %864 : vector<2x64xf32>
    %867 = arith.divf %865, %866 : vector<2x64xf32>
    %868 = vector.extract_strided_slice %621 {offsets = [0, 128], sizes = [2, 64], strides = [1, 1]} : vector<2x192xf32> to vector<2x64xf32>
    %869 = vector.extract_strided_slice %851 {offsets = [0, 128], sizes = [2, 64], strides = [1, 1]} : vector<2x192xf32> to vector<2x64xf32>
    %870 = arith.mulf %859, %869 : vector<2x64xf32>
    %871 = arith.addf %868, %870 : vector<2x64xf32>
    %872 = math.tanh %871 : vector<2x64xf32>
    %873 = arith.subf %843, %872 : vector<2x64xf32>
    %874 = arith.mulf %867, %873 : vector<2x64xf32>
    %875 = arith.addf %872, %874 : vector<2x64xf32>
    %876 = vector.extract_strided_slice %875 {offsets = [0, 0], sizes = [2, 32], strides = [1, 1]} : vector<2x64xf32> to vector<2x32xf32>
    %c14_161 = arith.constant 14 : index
    %c0_162 = arith.constant 0 : index
    %877 = vector.load %arg8[%c14_161, %c0_162] : memref<16x64xf32, #tpu.memory_space<vmem>>, vector<2x32xf32>
    tpu.vector_store %arg8[%c14_161, %c0_162], %876 {strides = array<i32>} : memref<16x64xf32, #tpu.memory_space<vmem>>, vector<2x32xf32>,
    %878 = vector.extract_strided_slice %875 {offsets = [0, 32], sizes = [2, 32], strides = [1, 1]} : vector<2x64xf32> to vector<2x32xf32>
    %c0_163 = arith.constant 0 : index
    %c32_164 = arith.constant 32 : index
    %879 = vector.load %arg8[%c0_163, %c32_164] : memref<16x64xf32, #tpu.memory_space<vmem>>, vector<2x32xf32>
    tpu.vector_store %arg8[%c0_163, %c32_164], %878 {strides = array<i32>} : memref<16x64xf32, #tpu.memory_space<vmem>>, vector<2x32xf32>,
    %c0_165 = arith.constant 0 : index
    %c0_166 = arith.constant 0 : index
    %880 = vector.load %arg8[%c0_165, %c0_166] : memref<16x64xf32, #tpu.memory_space<vmem>>, vector<16x64xf32>
    %c512 = arith.constant 512 : index
    %c0_167 = arith.constant 0 : index
    %881 = vector.load %arg1[%c512, %c0_167] : memref<640x256xbf16, #tpu.memory_space<vmem>>, vector<64x12xbf16>
    %882 = arith.truncf %880 : vector<16x64xf32> to vector<16x64xbf16>
    %cst_168 = arith.constant dense<0.000000e+00> : vector<16x12xf32>
    %883 = tpu.matmul %882, %881, %cst_168 {dimension_numbers = #tpu.dot_dimension_numbers<[1], [0], [0], [1], [0, 0, 1, 1], [], []>} : vector<16x64xbf16>, vector<64x12xbf16>, vector<16x12xf32> -> vector<16x12xf32>
    %c80_169 = arith.constant 80 : index
    %c0_170 = arith.constant 0 : index
    %884 = vector.load %arg2[%c80_169, %c0_170] : memref<96x256xf32, #tpu.memory_space<vmem>>, vector<1x12xf32>
    %885 = vector.broadcast %884 : vector<1x12xf32> to vector<16x12xf32>
    %886 = arith.addf %883, %885 : vector<16x12xf32>
    %887 = vector.extract_strided_slice %886 {offsets = [0, 0], sizes = [2, 12], strides = [1, 1]} : vector<16x12xf32> to vector<2x12xf32>
    %c0_171 = arith.constant 0 : index
    %c0_172 = arith.constant 0 : index
    %888 = vector.load %arg5[%c0_171, %c0_172] : memref<2x96xf32, #tpu.memory_space<vmem>>, vector<2x12xf32>
    tpu.vector_store %arg5[%c0_171, %c0_172], %887 {strides = array<i32>} : memref<2x96xf32, #tpu.memory_space<vmem>>, vector<2x12xf32>,
    %889 = vector.extract_strided_slice %886 {offsets = [2, 0], sizes = [2, 12], strides = [1, 1]} : vector<16x12xf32> to vector<2x12xf32>
    %c0_173 = arith.constant 0 : index
    %c12_174 = arith.constant 12 : index
    %890 = vector.load %arg5[%c0_173, %c12_174] : memref<2x96xf32, #tpu.memory_space<vmem>>, vector<2x12xf32>
    tpu.vector_store %arg5[%c0_173, %c12_174], %889 {strides = array<i32>} : memref<2x96xf32, #tpu.memory_space<vmem>>, vector<2x12xf32>,
    %891 = vector.extract_strided_slice %886 {offsets = [4, 0], sizes = [2, 12], strides = [1, 1]} : vector<16x12xf32> to vector<2x12xf32>
    %c0_175 = arith.constant 0 : index
    %c24_176 = arith.constant 24 : index
    %892 = vector.load %arg5[%c0_175, %c24_176] : memref<2x96xf32, #tpu.memory_space<vmem>>, vector<2x12xf32>
    tpu.vector_store %arg5[%c0_175, %c24_176], %891 {strides = array<i32>} : memref<2x96xf32, #tpu.memory_space<vmem>>, vector<2x12xf32>,
    %893 = vector.extract_strided_slice %886 {offsets = [6, 0], sizes = [2, 12], strides = [1, 1]} : vector<16x12xf32> to vector<2x12xf32>
    %c0_177 = arith.constant 0 : index
    %c36 = arith.constant 36 : index
    %894 = vector.load %arg5[%c0_177, %c36] : memref<2x96xf32, #tpu.memory_space<vmem>>, vector<2x12xf32>
    tpu.vector_store %arg5[%c0_177, %c36], %893 {strides = array<i32>} : memref<2x96xf32, #tpu.memory_space<vmem>>, vector<2x12xf32>,
    %895 = vector.extract_strided_slice %886 {offsets = [8, 0], sizes = [2, 12], strides = [1, 1]} : vector<16x12xf32> to vector<2x12xf32>
    %c0_178 = arith.constant 0 : index
    %c48_179 = arith.constant 48 : index
    %896 = vector.load %arg5[%c0_178, %c48_179] : memref<2x96xf32, #tpu.memory_space<vmem>>, vector<2x12xf32>
    tpu.vector_store %arg5[%c0_178, %c48_179], %895 {strides = array<i32>} : memref<2x96xf32, #tpu.memory_space<vmem>>, vector<2x12xf32>,
    %897 = vector.extract_strided_slice %886 {offsets = [10, 0], sizes = [2, 12], strides = [1, 1]} : vector<16x12xf32> to vector<2x12xf32>
    %c0_180 = arith.constant 0 : index
    %c60 = arith.constant 60 : index
    %898 = vector.load %arg5[%c0_180, %c60] : memref<2x96xf32, #tpu.memory_space<vmem>>, vector<2x12xf32>
    tpu.vector_store %arg5[%c0_180, %c60], %897 {strides = array<i32>} : memref<2x96xf32, #tpu.memory_space<vmem>>, vector<2x12xf32>,
    %899 = vector.extract_strided_slice %886 {offsets = [12, 0], sizes = [2, 12], strides = [1, 1]} : vector<16x12xf32> to vector<2x12xf32>
    %c0_181 = arith.constant 0 : index
    %c72 = arith.constant 72 : index
    %900 = vector.load %arg5[%c0_181, %c72] : memref<2x96xf32, #tpu.memory_space<vmem>>, vector<2x12xf32>
    tpu.vector_store %arg5[%c0_181, %c72], %899 {strides = array<i32>} : memref<2x96xf32, #tpu.memory_space<vmem>>, vector<2x12xf32>,
    %901 = vector.extract_strided_slice %886 {offsets = [14, 0], sizes = [2, 12], strides = [1, 1]} : vector<16x12xf32> to vector<2x12xf32>
    %c0_182 = arith.constant 0 : index
    %c84 = arith.constant 84 : index
    %902 = vector.load %arg5[%c0_182, %c84] : memref<2x96xf32, #tpu.memory_space<vmem>>, vector<2x12xf32>
    tpu.vector_store %arg5[%c0_182, %c84], %901 {strides = array<i32>} : memref<2x96xf32, #tpu.memory_space<vmem>>, vector<2x12xf32>,
    %c432 = arith.constant 432 : index
    %c0_183 = arith.constant 0 : index
    %903 = vector.load %arg1[%c432, %c0_183] : memref<640x256xbf16, #tpu.memory_space<vmem>>, vector<16x192xbf16>
    %904 = arith.truncf %590 : vector<2x16xf32> to vector<2x16xbf16>
    %cst_184 = arith.constant dense<0.000000e+00> : vector<2x192xf32>
    %905 = tpu.matmul %904, %903, %cst_184 {dimension_numbers = #tpu.dot_dimension_numbers<[1], [0], [0], [1], [0, 0, 1, 1], [], []>} : vector<2x16xbf16>, vector<16x192xbf16>, vector<2x192xf32> -> vector<2x192xf32>
    %c64 = arith.constant 64 : index
    %c0_185 = arith.constant 0 : index
    %906 = vector.load %arg2[%c64, %c0_185] : memref<96x256xf32, #tpu.memory_space<vmem>>, vector<1x192xf32>
    %907 = vector.broadcast %906 : vector<1x192xf32> to vector<2x192xf32>
    %908 = arith.addf %905, %907 : vector<2x192xf32>
    %c448 = arith.constant 448 : index
    %c0_186 = arith.constant 0 : index
    %909 = vector.load %arg1[%c448, %c0_186] : memref<640x256xbf16, #tpu.memory_space<vmem>>, vector<64x192xbf16>
    %c72_187 = arith.constant 72 : index
    %c0_188 = arith.constant 0 : index
    %910 = vector.load %arg2[%c72_187, %c0_188] : memref<96x256xf32, #tpu.memory_space<vmem>>, vector<1x192xf32>
    %911 = arith.truncf %615 : vector<2x64xf32> to vector<2x64xbf16>
    %cst_189 = arith.constant dense<0.000000e+00> : vector<2x192xf32>
    %912 = tpu.matmul %911, %909, %cst_189 {dimension_numbers = #tpu.dot_dimension_numbers<[1], [0], [0], [1], [0, 0, 1, 1], [], []>} : vector<2x64xbf16>, vector<64x192xbf16>, vector<2x192xf32> -> vector<2x192xf32>
    %913 = vector.broadcast %910 : vector<1x192xf32> to vector<2x192xf32>
    %914 = arith.addf %912, %913 : vector<2x192xf32>
    %915 = vector.extract_strided_slice %908 {offsets = [0, 0], sizes = [2, 64], strides = [1, 1]} : vector<2x192xf32> to vector<2x64xf32>
    %916 = vector.extract_strided_slice %914 {offsets = [0, 0], sizes = [2, 64], strides = [1, 1]} : vector<2x192xf32> to vector<2x64xf32>
    %917 = arith.addf %915, %916 : vector<2x64xf32>
    %918 = arith.negf %917 : vector<2x64xf32>
    %919 = math.exp %918 : vector<2x64xf32>
    %cst_190 = arith.constant 1.000000e+00 : f32
    %920 = vector.broadcast %cst_190 : f32 to vector<2x64xf32>
    %921 = arith.addf %920, %919 : vector<2x64xf32>
    %922 = arith.divf %920, %921 : vector<2x64xf32>
    %923 = vector.extract_strided_slice %908 {offsets = [0, 64], sizes = [2, 64], strides = [1, 1]} : vector<2x192xf32> to vector<2x64xf32>
    %924 = vector.extract_strided_slice %914 {offsets = [0, 64], sizes = [2, 64], strides = [1, 1]} : vector<2x192xf32> to vector<2x64xf32>
    %925 = arith.addf %923, %924 : vector<2x64xf32>
    %926 = arith.negf %925 : vector<2x64xf32>
    %927 = math.exp %926 : vector<2x64xf32>
    %cst_191 = arith.constant 1.000000e+00 : f32
    %928 = vector.broadcast %cst_191 : f32 to vector<2x64xf32>
    %929 = arith.addf %928, %927 : vector<2x64xf32>
    %930 = arith.divf %928, %929 : vector<2x64xf32>
    %931 = vector.extract_strided_slice %908 {offsets = [0, 128], sizes = [2, 64], strides = [1, 1]} : vector<2x192xf32> to vector<2x64xf32>
    %932 = vector.extract_strided_slice %914 {offsets = [0, 128], sizes = [2, 64], strides = [1, 1]} : vector<2x192xf32> to vector<2x64xf32>
    %933 = arith.mulf %922, %932 : vector<2x64xf32>
    %934 = arith.addf %931, %933 : vector<2x64xf32>
    %935 = math.tanh %934 : vector<2x64xf32>
    %936 = arith.subf %615, %935 : vector<2x64xf32>
    %937 = arith.mulf %930, %936 : vector<2x64xf32>
    %938 = arith.addf %935, %937 : vector<2x64xf32>
    %939 = vector.extract_strided_slice %938 {offsets = [0, 0], sizes = [2, 32], strides = [1, 1]} : vector<2x64xf32> to vector<2x32xf32>
    %c0_192 = arith.constant 0 : index
    %c0_193 = arith.constant 0 : index
    %940 = vector.load %arg9[%c0_192, %c0_193] : memref<8x64xf32, #tpu.memory_space<vmem>>, vector<2x32xf32>
    tpu.vector_store %arg9[%c0_192, %c0_193], %939 {strides = array<i32>} : memref<8x64xf32, #tpu.memory_space<vmem>>, vector<2x32xf32>,
    %941 = vector.extract_strided_slice %938 {offsets = [0, 32], sizes = [2, 32], strides = [1, 1]} : vector<2x64xf32> to vector<2x32xf32>
    %c6_194 = arith.constant 6 : index
    %c32_195 = arith.constant 32 : index
    %942 = vector.load %arg9[%c6_194, %c32_195] : memref<8x64xf32, #tpu.memory_space<vmem>>, vector<2x32xf32>
    tpu.vector_store %arg9[%c6_194, %c32_195], %941 {strides = array<i32>} : memref<8x64xf32, #tpu.memory_space<vmem>>, vector<2x32xf32>,
    %943 = arith.truncf %938 : vector<2x64xf32> to vector<2x64xbf16>
    %cst_196 = arith.constant dense<0.000000e+00> : vector<2x192xf32>
    %944 = tpu.matmul %943, %909, %cst_196 {dimension_numbers = #tpu.dot_dimension_numbers<[1], [0], [0], [1], [0, 0, 1, 1], [], []>} : vector<2x64xbf16>, vector<64x192xbf16>, vector<2x192xf32> -> vector<2x192xf32>
    %945 = vector.broadcast %910 : vector<1x192xf32> to vector<2x192xf32>
    %946 = arith.addf %944, %945 : vector<2x192xf32>
    %947 = vector.extract_strided_slice %908 {offsets = [0, 0], sizes = [2, 64], strides = [1, 1]} : vector<2x192xf32> to vector<2x64xf32>
    %948 = vector.extract_strided_slice %946 {offsets = [0, 0], sizes = [2, 64], strides = [1, 1]} : vector<2x192xf32> to vector<2x64xf32>
    %949 = arith.addf %947, %948 : vector<2x64xf32>
    %950 = arith.negf %949 : vector<2x64xf32>
    %951 = math.exp %950 : vector<2x64xf32>
    %cst_197 = arith.constant 1.000000e+00 : f32
    %952 = vector.broadcast %cst_197 : f32 to vector<2x64xf32>
    %953 = arith.addf %952, %951 : vector<2x64xf32>
    %954 = arith.divf %952, %953 : vector<2x64xf32>
    %955 = vector.extract_strided_slice %908 {offsets = [0, 64], sizes = [2, 64], strides = [1, 1]} : vector<2x192xf32> to vector<2x64xf32>
    %956 = vector.extract_strided_slice %946 {offsets = [0, 64], sizes = [2, 64], strides = [1, 1]} : vector<2x192xf32> to vector<2x64xf32>
    %957 = arith.addf %955, %956 : vector<2x64xf32>
    %958 = arith.negf %957 : vector<2x64xf32>
    %959 = math.exp %958 : vector<2x64xf32>
    %cst_198 = arith.constant 1.000000e+00 : f32
    %960 = vector.broadcast %cst_198 : f32 to vector<2x64xf32>
    %961 = arith.addf %960, %959 : vector<2x64xf32>
    %962 = arith.divf %960, %961 : vector<2x64xf32>
    %963 = vector.extract_strided_slice %908 {offsets = [0, 128], sizes = [2, 64], strides = [1, 1]} : vector<2x192xf32> to vector<2x64xf32>
    %964 = vector.extract_strided_slice %946 {offsets = [0, 128], sizes = [2, 64], strides = [1, 1]} : vector<2x192xf32> to vector<2x64xf32>
    %965 = arith.mulf %954, %964 : vector<2x64xf32>
    %966 = arith.addf %963, %965 : vector<2x64xf32>
    %967 = math.tanh %966 : vector<2x64xf32>
    %968 = arith.subf %938, %967 : vector<2x64xf32>
    %969 = arith.mulf %962, %968 : vector<2x64xf32>
    %970 = arith.addf %967, %969 : vector<2x64xf32>
    %971 = vector.extract_strided_slice %970 {offsets = [0, 0], sizes = [2, 32], strides = [1, 1]} : vector<2x64xf32> to vector<2x32xf32>
    %c2_199 = arith.constant 2 : index
    %c0_200 = arith.constant 0 : index
    %972 = vector.load %arg9[%c2_199, %c0_200] : memref<8x64xf32, #tpu.memory_space<vmem>>, vector<2x32xf32>
    tpu.vector_store %arg9[%c2_199, %c0_200], %971 {strides = array<i32>} : memref<8x64xf32, #tpu.memory_space<vmem>>, vector<2x32xf32>,
    %973 = vector.extract_strided_slice %970 {offsets = [0, 32], sizes = [2, 32], strides = [1, 1]} : vector<2x64xf32> to vector<2x32xf32>
    %c4_201 = arith.constant 4 : index
    %c32_202 = arith.constant 32 : index
    %974 = vector.load %arg9[%c4_201, %c32_202] : memref<8x64xf32, #tpu.memory_space<vmem>>, vector<2x32xf32>
    tpu.vector_store %arg9[%c4_201, %c32_202], %973 {strides = array<i32>} : memref<8x64xf32, #tpu.memory_space<vmem>>, vector<2x32xf32>,
    %975 = arith.truncf %970 : vector<2x64xf32> to vector<2x64xbf16>
    %cst_203 = arith.constant dense<0.000000e+00> : vector<2x192xf32>
    %976 = tpu.matmul %975, %909, %cst_203 {dimension_numbers = #tpu.dot_dimension_numbers<[1], [0], [0], [1], [0, 0, 1, 1], [], []>} : vector<2x64xbf16>, vector<64x192xbf16>, vector<2x192xf32> -> vector<2x192xf32>
    %977 = vector.broadcast %910 : vector<1x192xf32> to vector<2x192xf32>
    %978 = arith.addf %976, %977 : vector<2x192xf32>
    %979 = vector.extract_strided_slice %908 {offsets = [0, 0], sizes = [2, 64], strides = [1, 1]} : vector<2x192xf32> to vector<2x64xf32>
    %980 = vector.extract_strided_slice %978 {offsets = [0, 0], sizes = [2, 64], strides = [1, 1]} : vector<2x192xf32> to vector<2x64xf32>
    %981 = arith.addf %979, %980 : vector<2x64xf32>
    %982 = arith.negf %981 : vector<2x64xf32>
    %983 = math.exp %982 : vector<2x64xf32>
    %cst_204 = arith.constant 1.000000e+00 : f32
    %984 = vector.broadcast %cst_204 : f32 to vector<2x64xf32>
    %985 = arith.addf %984, %983 : vector<2x64xf32>
    %986 = arith.divf %984, %985 : vector<2x64xf32>
    %987 = vector.extract_strided_slice %908 {offsets = [0, 64], sizes = [2, 64], strides = [1, 1]} : vector<2x192xf32> to vector<2x64xf32>
    %988 = vector.extract_strided_slice %978 {offsets = [0, 64], sizes = [2, 64], strides = [1, 1]} : vector<2x192xf32> to vector<2x64xf32>
    %989 = arith.addf %987, %988 : vector<2x64xf32>
    %990 = arith.negf %989 : vector<2x64xf32>
    %991 = math.exp %990 : vector<2x64xf32>
    %cst_205 = arith.constant 1.000000e+00 : f32
    %992 = vector.broadcast %cst_205 : f32 to vector<2x64xf32>
    %993 = arith.addf %992, %991 : vector<2x64xf32>
    %994 = arith.divf %992, %993 : vector<2x64xf32>
    %995 = vector.extract_strided_slice %908 {offsets = [0, 128], sizes = [2, 64], strides = [1, 1]} : vector<2x192xf32> to vector<2x64xf32>
    %996 = vector.extract_strided_slice %978 {offsets = [0, 128], sizes = [2, 64], strides = [1, 1]} : vector<2x192xf32> to vector<2x64xf32>
    %997 = arith.mulf %986, %996 : vector<2x64xf32>
    %998 = arith.addf %995, %997 : vector<2x64xf32>
    %999 = math.tanh %998 : vector<2x64xf32>
    %1000 = arith.subf %970, %999 : vector<2x64xf32>
    %1001 = arith.mulf %994, %1000 : vector<2x64xf32>
    %1002 = arith.addf %999, %1001 : vector<2x64xf32>
    %1003 = vector.extract_strided_slice %1002 {offsets = [0, 0], sizes = [2, 32], strides = [1, 1]} : vector<2x64xf32> to vector<2x32xf32>
    %c4_206 = arith.constant 4 : index
    %c0_207 = arith.constant 0 : index
    %1004 = vector.load %arg9[%c4_206, %c0_207] : memref<8x64xf32, #tpu.memory_space<vmem>>, vector<2x32xf32>
    tpu.vector_store %arg9[%c4_206, %c0_207], %1003 {strides = array<i32>} : memref<8x64xf32, #tpu.memory_space<vmem>>, vector<2x32xf32>,
    %1005 = vector.extract_strided_slice %1002 {offsets = [0, 32], sizes = [2, 32], strides = [1, 1]} : vector<2x64xf32> to vector<2x32xf32>
    %c2_208 = arith.constant 2 : index
    %c32_209 = arith.constant 32 : index
    %1006 = vector.load %arg9[%c2_208, %c32_209] : memref<8x64xf32, #tpu.memory_space<vmem>>, vector<2x32xf32>
    tpu.vector_store %arg9[%c2_208, %c32_209], %1005 {strides = array<i32>} : memref<8x64xf32, #tpu.memory_space<vmem>>, vector<2x32xf32>,
    %1007 = arith.truncf %1002 : vector<2x64xf32> to vector<2x64xbf16>
    %cst_210 = arith.constant dense<0.000000e+00> : vector<2x192xf32>
    %1008 = tpu.matmul %1007, %909, %cst_210 {dimension_numbers = #tpu.dot_dimension_numbers<[1], [0], [0], [1], [0, 0, 1, 1], [], []>} : vector<2x64xbf16>, vector<64x192xbf16>, vector<2x192xf32> -> vector<2x192xf32>
    %1009 = vector.broadcast %910 : vector<1x192xf32> to vector<2x192xf32>
    %1010 = arith.addf %1008, %1009 : vector<2x192xf32>
    %1011 = vector.extract_strided_slice %908 {offsets = [0, 0], sizes = [2, 64], strides = [1, 1]} : vector<2x192xf32> to vector<2x64xf32>
    %1012 = vector.extract_strided_slice %1010 {offsets = [0, 0], sizes = [2, 64], strides = [1, 1]} : vector<2x192xf32> to vector<2x64xf32>
    %1013 = arith.addf %1011, %1012 : vector<2x64xf32>
    %1014 = arith.negf %1013 : vector<2x64xf32>
    %1015 = math.exp %1014 : vector<2x64xf32>
    %cst_211 = arith.constant 1.000000e+00 : f32
    %1016 = vector.broadcast %cst_211 : f32 to vector<2x64xf32>
    %1017 = arith.addf %1016, %1015 : vector<2x64xf32>
    %1018 = arith.divf %1016, %1017 : vector<2x64xf32>
    %1019 = vector.extract_strided_slice %908 {offsets = [0, 64], sizes = [2, 64], strides = [1, 1]} : vector<2x192xf32> to vector<2x64xf32>
    %1020 = vector.extract_strided_slice %1010 {offsets = [0, 64], sizes = [2, 64], strides = [1, 1]} : vector<2x192xf32> to vector<2x64xf32>
    %1021 = arith.addf %1019, %1020 : vector<2x64xf32>
    %1022 = arith.negf %1021 : vector<2x64xf32>
    %1023 = math.exp %1022 : vector<2x64xf32>
    %cst_212 = arith.constant 1.000000e+00 : f32
    %1024 = vector.broadcast %cst_212 : f32 to vector<2x64xf32>
    %1025 = arith.addf %1024, %1023 : vector<2x64xf32>
    %1026 = arith.divf %1024, %1025 : vector<2x64xf32>
    %1027 = vector.extract_strided_slice %908 {offsets = [0, 128], sizes = [2, 64], strides = [1, 1]} : vector<2x192xf32> to vector<2x64xf32>
    %1028 = vector.extract_strided_slice %1010 {offsets = [0, 128], sizes = [2, 64], strides = [1, 1]} : vector<2x192xf32> to vector<2x64xf32>
    %1029 = arith.mulf %1018, %1028 : vector<2x64xf32>
    %1030 = arith.addf %1027, %1029 : vector<2x64xf32>
    %1031 = math.tanh %1030 : vector<2x64xf32>
    %1032 = arith.subf %1002, %1031 : vector<2x64xf32>
    %1033 = arith.mulf %1026, %1032 : vector<2x64xf32>
    %1034 = arith.addf %1031, %1033 : vector<2x64xf32>
    %1035 = vector.extract_strided_slice %1034 {offsets = [0, 0], sizes = [2, 32], strides = [1, 1]} : vector<2x64xf32> to vector<2x32xf32>
    %c6_213 = arith.constant 6 : index
    %c0_214 = arith.constant 0 : index
    %1036 = vector.load %arg9[%c6_213, %c0_214] : memref<8x64xf32, #tpu.memory_space<vmem>>, vector<2x32xf32>
    tpu.vector_store %arg9[%c6_213, %c0_214], %1035 {strides = array<i32>} : memref<8x64xf32, #tpu.memory_space<vmem>>, vector<2x32xf32>,
    %1037 = vector.extract_strided_slice %1034 {offsets = [0, 32], sizes = [2, 32], strides = [1, 1]} : vector<2x64xf32> to vector<2x32xf32>
    %c0_215 = arith.constant 0 : index
    %c32_216 = arith.constant 32 : index
    %1038 = vector.load %arg9[%c0_215, %c32_216] : memref<8x64xf32, #tpu.memory_space<vmem>>, vector<2x32xf32>
    tpu.vector_store %arg9[%c0_215, %c32_216], %1037 {strides = array<i32>} : memref<8x64xf32, #tpu.memory_space<vmem>>, vector<2x32xf32>,
    %c0_217 = arith.constant 0 : index
    %c0_218 = arith.constant 0 : index
    %1039 = vector.load %arg9[%c0_217, %c0_218] : memref<8x64xf32, #tpu.memory_space<vmem>>, vector<8x64xf32>
    %c576 = arith.constant 576 : index
    %c0_219 = arith.constant 0 : index
    %1040 = vector.load %arg1[%c576, %c0_219] : memref<640x256xbf16, #tpu.memory_space<vmem>>, vector<64x12xbf16>
    %1041 = arith.truncf %1039 : vector<8x64xf32> to vector<8x64xbf16>
    %cst_220 = arith.constant dense<0.000000e+00> : vector<8x12xf32>
    %1042 = tpu.matmul %1041, %1040, %cst_220 {dimension_numbers = #tpu.dot_dimension_numbers<[1], [0], [0], [1], [0, 0, 1, 1], [], []>} : vector<8x64xbf16>, vector<64x12xbf16>, vector<8x12xf32> -> vector<8x12xf32>
    %c88 = arith.constant 88 : index
    %c0_221 = arith.constant 0 : index
    %1043 = vector.load %arg2[%c88, %c0_221] : memref<96x256xf32, #tpu.memory_space<vmem>>, vector<1x12xf32>
    %1044 = vector.broadcast %1043 : vector<1x12xf32> to vector<8x12xf32>
    %1045 = arith.addf %1042, %1044 : vector<8x12xf32>
    %1046 = vector.extract_strided_slice %1045 {offsets = [0, 0], sizes = [2, 12], strides = [1, 1]} : vector<8x12xf32> to vector<2x12xf32>
    %c0_222 = arith.constant 0 : index
    %c0_223 = arith.constant 0 : index
    %1047 = vector.load %arg6[%c0_222, %c0_223] : memref<2x48xf32, #tpu.memory_space<vmem>>, vector<2x12xf32>
    tpu.vector_store %arg6[%c0_222, %c0_223], %1046 {strides = array<i32>} : memref<2x48xf32, #tpu.memory_space<vmem>>, vector<2x12xf32>,
    %1048 = vector.extract_strided_slice %1045 {offsets = [2, 0], sizes = [2, 12], strides = [1, 1]} : vector<8x12xf32> to vector<2x12xf32>
    %c0_224 = arith.constant 0 : index
    %c12_225 = arith.constant 12 : index
    %1049 = vector.load %arg6[%c0_224, %c12_225] : memref<2x48xf32, #tpu.memory_space<vmem>>, vector<2x12xf32>
    tpu.vector_store %arg6[%c0_224, %c12_225], %1048 {strides = array<i32>} : memref<2x48xf32, #tpu.memory_space<vmem>>, vector<2x12xf32>,
    %1050 = vector.extract_strided_slice %1045 {offsets = [4, 0], sizes = [2, 12], strides = [1, 1]} : vector<8x12xf32> to vector<2x12xf32>
    %c0_226 = arith.constant 0 : index
    %c24_227 = arith.constant 24 : index
    %1051 = vector.load %arg6[%c0_226, %c24_227] : memref<2x48xf32, #tpu.memory_space<vmem>>, vector<2x12xf32>
    tpu.vector_store %arg6[%c0_226, %c24_227], %1050 {strides = array<i32>} : memref<2x48xf32, #tpu.memory_space<vmem>>, vector<2x12xf32>,
    %1052 = vector.extract_strided_slice %1045 {offsets = [6, 0], sizes = [2, 12], strides = [1, 1]} : vector<8x12xf32> to vector<2x12xf32>
    %c0_228 = arith.constant 0 : index
    %c36_229 = arith.constant 36 : index
    %1053 = vector.load %arg6[%c0_228, %c36_229] : memref<2x48xf32, #tpu.memory_space<vmem>>, vector<2x12xf32>
    tpu.vector_store %arg6[%c0_228, %c36_229], %1052 {strides = array<i32>} : memref<2x48xf32, #tpu.memory_space<vmem>>, vector<2x12xf32>,
    return
  }
}

</mosaic_0001>

<llo_original>
// kernel: tpu_custom_call.1
$region0: #{tpu_custom_call.1}
  #allocation0 [shape = 'u32[]', space=smem, size = 0x4, offset = 0x4, fixed_abs, tag = 'smem constant byte address 0x4 - core index']
  #allocation1 [shape = 'u32[144,128]{1,0:T(1,128)}', space=vmem, size = 0x12000, scoped, tag = 'internal scratch']
  #allocation2 [shape = 'f32[16,64]{1,0:T(8,128)}', space=vmem, size = 0x2000, scoped, tag = 'scratch operand']
  #allocation3 [shape = 'f32[16,64]{1,0:T(8,128)}', space=vmem, size = 0x2000, scoped, tag = 'scratch operand']
  #allocation4 [shape = 'f32[8,64]{1,0:T(8,128)}', space=vmem, size = 0x1000, scoped, tag = 'scratch operand']
  %s0 = inlined_call_operand.hbm [shape: f32[2,8,12], index: 0, kind: input, shape index: {}]
  %s1 = inlined_call_operand.hbm [shape: bf16[640,256], index: 1, kind: input, shape index: {}]
  %s2 = inlined_call_operand.hbm [shape: f32[96,256], index: 2, kind: input, shape index: {}]
  %s3 = inlined_call_operand.hbm [shape: f32[2,16], index: 3, kind: output, shape index: {0}]
  %s4 = inlined_call_operand.hbm [shape: f32[2,16], index: 4, kind: output, shape index: {1}]
  %s5 = inlined_call_operand.hbm [shape: f32[2,96], index: 5, kind: output, shape index: {2}]
  %s6 = inlined_call_operand.hbm [shape: f32[2,48], index: 6, kind: output, shape index: {3}]
  %7 = xla_tuple %s3, %s4, %s5, %s6
  %s8 = sld [smem:[#allocation0]]
  $region58: #{tpu_custom_call.1} parent=0
    _
  %s10 = ssub.s32 1, %s8
  %s11 = scalar_select 0, %s10, %s8
  $region1: #{tpu_custom_call.1} parent=0
    #allocation5 [shape = 'u8[8192]{0}', space=vmem, size = 0x2000, scoped, tag = 'input window, operand 0, single buffered']
    #allocation6 [shape = 's32[1]{0}', space=sflag, size = 0x4, scoped, tag = 'scoped memory for tpu_custom_call.1']
    #allocation7 [shape = 's32[1]{0}', space=sflag, size = 0x4, scoped, tag = 'scoped memory for tpu_custom_call.1']
    #allocation8 [shape = 'u8[327680]{0}', space=vmem, size = 0x50000, scoped, tag = 'input window, operand 1, single buffered']
    #allocation9 [shape = 's32[1]{0}', space=sflag, size = 0x4, scoped, tag = 'scoped memory for tpu_custom_call.1']
    #allocation10 [shape = 'u8[98304]{0}', space=vmem, size = 0x18000, scoped, tag = 'input window, operand 2, single buffered']
    #allocation11 [shape = 'u8[1024]{0}', space=vmem, size = 0x400, scoped, tag = 'output window, operand 0, single buffered']
    #allocation12 [shape = 'u8[1024]{0}', space=vmem, size = 0x400, scoped, tag = 'output window, operand 1, single buffered']
    #allocation13 [shape = 's32[1]{0}', space=sflag, size = 0x4, scoped, tag = 'scoped memory for tpu_custom_call.1']
    #allocation14 [shape = 'u8[1024]{0}', space=vmem, size = 0x400, scoped, tag = 'output window, operand 2, single buffered']
    #allocation15 [shape = 'u8[1024]{0}', space=vmem, size = 0x400, scoped, tag = 'output window, operand 3, single buffered']
    #allocation16 [shape = 's32[1]{0}', space=sflag, size = 0x4, scoped, tag = 'scoped memory for tpu_custom_call.1']
    %12 = vsyncpa [#allocation6], 0
    %13 = vsyncpa [#allocation9], 0
    %14 = vsyncpa [#allocation7], 0
    %15 = vsyncpa [#allocation13], 0
    %16 = vsyncpa [#allocation16], 0
    // Predicated region
    $region2: #{tpu_custom_call.1} parent=1 // pred_check
      _
    $region3: #{tpu_custom_call.1} parent=1 // pred_check_branch
      %18 = sbr.rel (0) target = $region5
    $region4: #{tpu_custom_call.1} parent=1 // pred_region
      %s20 = ssub.s32 256, 256
      %21 = vsyncadd [#allocation6], %s20
      %s22 = sshll.u32 [#allocation5], 4
      %s23 = int_to_ptr.vmem [resolvable:$true] %s22
      %28 = dma.hbm_to_vmem [thread:$0]  %s0, 256, %s23, [#allocation6], 128, 128, 8
    $region5: #{tpu_custom_call.1} parent=1 // pred_fallthru
      _
    // Predicated region
    $region6: #{tpu_custom_call.1} parent=1 // pred_check
      _
    $region7: #{tpu_custom_call.1} parent=1 // pred_check_branch
      %30 = sbr.rel (0) target = $region9
    $region8: #{tpu_custom_call.1} parent=1 // pred_region
      %s32 = ssub.s32 10240, 10240
      %33 = vsyncadd [#allocation9], %s32
      %s34 = sshll.u32 [#allocation8], 4
      %s35 = int_to_ptr.vmem [resolvable:$true] %s34
      %40 = dma.hbm_to_vmem [thread:$0]  %s1, 10240, %s35, [#allocation9], 128, 128, 8
    $region9: #{tpu_custom_call.1} parent=1 // pred_fallthru
      _
    // Predicated region
    $region10: #{tpu_custom_call.1} parent=1 // pred_check
      _
    $region11: #{tpu_custom_call.1} parent=1 // pred_check_branch
      %42 = sbr.rel (0) target = $region13
    $region12: #{tpu_custom_call.1} parent=1 // pred_region
      %s44 = ssub.s32 3072, 3072
      %45 = vsyncadd [#allocation9], %s44
      %s46 = sshll.u32 [#allocation10], 4
      %s47 = int_to_ptr.vmem [resolvable:$true] %s46
      %52 = dma.hbm_to_vmem [thread:$0]  %s2, 3072, %s47, [#allocation9], 256, 256, 16
    $region13: #{tpu_custom_call.1} parent=1 // pred_fallthru
      _
    // Predicated region
    $region14: #{tpu_custom_call.1} parent=1 // pred_check
      _
    $region15: #{tpu_custom_call.1} parent=1 // pred_check_branch
      %54 = sbr.rel (0) target = $region17
    $region16: #{tpu_custom_call.1} parent=1 // pred_region
      %55 = dma.done [#allocation6], 256
    $region17: #{tpu_custom_call.1} parent=1 // pred_fallthru
      _
    // Predicated region
    $region18: #{tpu_custom_call.1} parent=1 // pred_check
      _
    $region19: #{tpu_custom_call.1} parent=1 // pred_check_branch
      %57 = sbr.rel (0) target = $region21
    $region20: #{tpu_custom_call.1} parent=1 // pred_region
      %58 = dma.done [#allocation9], 10240
    $region21: #{tpu_custom_call.1} parent=1 // pred_fallthru
      _
    // Predicated region
    $region22: #{tpu_custom_call.1} parent=1 // pred_check
      _
    $region23: #{tpu_custom_call.1} parent=1 // pred_check_branch
      %60 = sbr.rel (0) target = $region25
    $region24: #{tpu_custom_call.1} parent=1 // pred_region
      %61 = dma.done [#allocation9], 3072
    $region25: #{tpu_custom_call.1} parent=1 // pred_fallthru
      _
    %v63 = vlaneseq
    %v64 = vand.u32 %v63, 127
    %v65 = vadd.s32 %v64, 128
    %vm66 = vcmp.lt.s32.totalorder %v64, 0
    %v67 = vsub.s32 0, %v64
    %v68 = vsel %vm66, %v67, %v64
    %v69 = vshrl.u32 %v68, 6
    %v70 = vand.u32 %v68, 63
    %v71 = vsub.s32 0, %v70
    %v72 = vsel %vm66, %v71, %v70
    %vm73 = vcmp.lt.s32.totalorder %v65, 0
    %v74 = vsub.s32 0, %v65
    %v75 = vsel %vm73, %v74, %v65
    %v76 = vshrl.u32 %v75, 6
    %v77 = vand.u32 %v75, 63
    %v78 = vsub.s32 0, %v77
    %v79 = vsel %vm73, %v78, %v77
    %vm80 = vcmp.ne.s32.totalorder %v72, 0
    %vm81 = vcmp.ne.s32.totalorder %v79, 0
    %vm82 = vcmp.lt.s32.totalorder %v72, 0
    %vm83 = vcmp.lt.s32.totalorder %v79, 0
    %vm84 = vmand %vm82, %vm80
    %vm85 = vmand %vm83, %vm81
    %v86 = vadd.s32 %v72, 64
    %v87 = vadd.s32 %v79, 64
    %v88 = vsel %vm84, %v86, %v72
    %v89 = vsel %vm85, %v87, %v79
    %vm90 = vcmp.lt.s32.totalorder %v88, 32
    %vm91 = vcmp.lt.s32.totalorder %v89, 32
    %v92 = vld [vmem:[#allocation5] sm:$0xff]
    %v93 = vld [vmem:[#allocation5 + $0x8] sm:$0xff]
    %v96 = vrot.slane %v93, 7
    %vm97 = vcmask 1041409
    %v98 = vsel %vm97, %v96, %v92
    %v100 = vrot.slane %v92, 7
    %v101 = vrot.slane %v93, 6
    %vm102 = vcmask 1043459
    %v103 = vsel %vm102, %v101, %v100
    %v105 = vrot.slane %v92, 6
    %v106 = vrot.slane %v93, 5
    %vm107 = vcmask 1045509
    %v108 = vsel %vm107, %v106, %v105
    %v110 = vrot.slane %v92, 5
    %v111 = vrot.slane %v93, 4
    %vm112 = vcmask 1047559
    %v113 = vsel %vm112, %v111, %v110
    %v115 = vrot.slane %v92, 4
    %v116 = vrot.slane %v93, 3
    %v117 = vsel %vm97, %v116, %v115
    %v119 = vrot.slane %v92, 3
    %v120 = vrot.slane %v93, 2
    %v121 = vsel %vm102, %v120, %v119
    %v123 = vrot.slane %v92, 2
    %v124 = vrot.slane %v93, 1
    %v125 = vsel %vm107, %v124, %v123
    %v127 = vrot.slane %v92, 1
    %v128 = vsel %vm112, %v93, %v127
    %vm130 = vcmask 1041408
    %v131 = vsel %vm130, %v98, %v103
    %vm132 = vcmask 1043456
    %v133 = vsel %vm132, %v131, %v108
    %vm134 = vcmask 1045504
    %v135 = vsel %vm134, %v133, %v113
    %v136 = vsel %vm130, %v117, %v121
    %v137 = vsel %vm132, %v136, %v125
    %v138 = vsel %vm134, %v137, %v128
    %v139 = vld [vmem:[#allocation8] sm:$0xff]
    %v140 = vld [vmem:[#allocation8 + $0x8] sm:$0x33]
    %v141 = vpack.c.bf16 %v138, %v135
    %v142 = vld [vmem:[#allocation10] ss:$8 sm:$0x3]
    %v144 = vlaneseq
    %v145 = vshrl.u32 %v144, 7
    %v146 = vsub.s32 0, %v145
    %v147 = vrot.slane %v142, %v146
    %v148 = vlaneseq
    %v149 = vshrl.u32 %v148, 7
    %v150 = vsub.s32 1, %v149
    %v151 = vrot.slane %v142, %v150
    %v156 = vunpack.c.l.b16 %v139
    %v157 = vunpack.c.h.b16 %v139
    %v158 = vunpack.c.l.b16 %v140
    %v159 = vunpack.c.h.b16 %v140
    %v160 = vpack.c.b16 %v158, %v156
    %v161 = vpack.c.b16 %v159, %v157
    %vm162 = vcmask 97280
    %v164 = vsel %vm162, %v141, 0
    %v167 = vsel %vm134, %v160, 0
    %v170 = vsel %vm134, %v161, 0
    %172 = vmatprep.subr.bf16.mxu0 %v170
    %173 = vmatpush1.bf16.msra.mxu0 %v167
    %174 = vmatprep.subr.bf16.mxu0 0
    %175 = vmatpush1.bf16.msra.mxu0 0
    %176 = vmatprep.subr.bf16.mxu0 0
    %177 = vmatpush1.bf16.msra.mxu0 0
    %178 = vmatprep.subr.bf16.mxu0 0
    %179 = vmatpush1.bf16.msra.mxu0 0
    %180 = vmatprep.subr.bf16.mxu0 0
    %181 = vmatpush1.bf16.msra.mxu0 0
    %182 = vmatprep.subr.bf16.mxu0 0
    %183 = vmatpush1.bf16.msra.mxu0 0
    %184 = vmatprep.subr.bf16.mxu0 0
    %185 = vmatpush1.bf16.msra.mxu0 0
    %186 = vmatprep.subr.bf16.mxu0 0
    %187 = vmatpush1.bf16.msra.mxu0 0
    %188 = vmatprep.subr.bf16.mxu0 0
    %189 = vmatpush1.bf16.msra.mxu0 0
    %190 = vmatprep.subr.bf16.mxu0 0
    %191 = vmatpush1.bf16.msra.mxu0 0
    %192 = vmatprep.subr.bf16.mxu0 0
    %193 = vmatpush1.bf16.msra.mxu0 0
    %194 = vmatprep.subr.bf16.mxu0 0
    %195 = vmatpush1.bf16.msra.mxu0 0
    %196 = vmatprep.subr.bf16.mxu0 0
    %197 = vmatpush1.bf16.msra.mxu0 0
    %198 = vmatprep.subr.bf16.mxu0 0
    %199 = vmatpush1.bf16.msra.mxu0 0
    %200 = vmatprep.subr.bf16.mxu0 0
    %201 = vmatpush1.bf16.msra.mxu0 0
    %202 = vmatprep.subr.bf16.mxu0 0
    %203 = vmatpush1.bf16.msra.mxu0 0
    %204 = vmatprep.mubr.bf16.mxu0 0
    %205 = vmatmul.mubr.bf16.gmra.mrb[0].mxu0 %v164
    %v206 = vpop.f32.mrb[0].mxu0
    %v207 = vadd.f32 %v147, %v206
    %v208 = vpop.f32.mrb[0].mxu0
    %v209 = vadd.f32 %v151, %v208
    %v210 = vpop.f32.mrb[0].mxu0
    %v211 = vadd.f32 %v147, %v210
    %v212 = vpop.f32.mrb[0].mxu0
    %v213 = vadd.f32 %v151, %v212
    %214 = vdwg.mxu0
    %v215 = vld [vmem:[#allocation8 + $0x10] sm:$0xff]
    %v216 = vld [vmem:[#allocation8 + $0x18] sm:$0xff]
    %v217 = vld [vmem:[#allocation8 + $0x20] sm:$0xff]
    %v218 = vld [vmem:[#allocation8 + $0x28] sm:$0xff]
    %v219 = vld [vmem:[#allocation8 + $0x30] sm:$0xff]
    %v220 = vld [vmem:[#allocation8 + $0x38] sm:$0xff]
    %v221 = vld [vmem:[#allocation8 + $0x40] sm:$0xff]
    %v222 = vld [vmem:[#allocation8 + $0x48] sm:$0xff]
    %s223 = scalar_lea.vmem [#allocation10], 16
    %v224 = vld [vmem:[%s223] ss:$8 sm:$0x3]
    %v226 = vlaneseq
    %v227 = vshrl.u32 %v226, 7
    %v228 = vsub.s32 0, %v227
    %v229 = vrot.slane %v224, %v228
    %v230 = vlaneseq
    %v231 = vshrl.u32 %v230, 7
    %v232 = vsub.s32 1, %v231
    %v233 = vrot.slane %v224, %v232
    %v244 = vunpack.c.l.b16 %v215
    %v245 = vunpack.c.h.b16 %v215
    %v246 = vunpack.c.l.b16 %v216
    %v247 = vunpack.c.h.b16 %v216
    %v248 = vunpack.c.l.b16 %v217
    %v249 = vunpack.c.h.b16 %v217
    %v250 = vunpack.c.l.b16 %v218
    %v251 = vunpack.c.h.b16 %v218
    %v252 = vunpack.c.l.b16 %v219
    %v253 = vunpack.c.h.b16 %v219
    %v254 = vunpack.c.l.b16 %v220
    %v255 = vunpack.c.h.b16 %v220
    %v256 = vunpack.c.l.b16 %v221
    %v257 = vunpack.c.h.b16 %v221
    %v258 = vunpack.c.l.b16 %v222
    %v259 = vunpack.c.h.b16 %v222
    %v260 = vpack.c.b16 %v246, %v244
    %v261 = vpack.c.b16 %v247, %v245
    %v262 = vpack.c.b16 %v250, %v248
    %v263 = vpack.c.b16 %v251, %v249
    %v264 = vpack.c.b16 %v254, %v252
    %v265 = vpack.c.b16 %v255, %v253
    %v266 = vpack.c.b16 %v258, %v256
    %v267 = vpack.c.b16 %v259, %v257
    %vm276 = vcmask 523264
    %v278 = vsel %vm276, 0, 0
    %280 = vmatprep.subr.bf16.mxu0 %v261
    %281 = vmatpush1.bf16.msra.mxu0 %v260
    %282 = vmatprep.subr.bf16.mxu0 %v263
    %283 = vmatpush1.bf16.msra.mxu0 %v262
    %284 = vmatprep.subr.bf16.mxu0 %v265
    %285 = vmatpush1.bf16.msra.mxu0 %v264
    %286 = vmatprep.subr.bf16.mxu0 %v267
    %287 = vmatpush1.bf16.msra.mxu0 %v266
    %288 = vmatprep.subr.bf16.mxu0 0
    %289 = vmatpush1.bf16.msra.mxu0 0
    %290 = vmatprep.subr.bf16.mxu0 0
    %291 = vmatpush1.bf16.msra.mxu0 0
    %292 = vmatprep.subr.bf16.mxu0 0
    %293 = vmatpush1.bf16.msra.mxu0 0
    %294 = vmatprep.subr.bf16.mxu0 0
    %295 = vmatpush1.bf16.msra.mxu0 0
    %296 = vmatprep.subr.bf16.mxu0 0
    %297 = vmatpush1.bf16.msra.mxu0 0
    %298 = vmatprep.subr.bf16.mxu0 0
    %299 = vmatpush1.bf16.msra.mxu0 0
    %300 = vmatprep.subr.bf16.mxu0 0
    %301 = vmatpush1.bf16.msra.mxu0 0
    %302 = vmatprep.subr.bf16.mxu0 0
    %303 = vmatpush1.bf16.msra.mxu0 0
    %304 = vmatprep.subr.bf16.mxu0 0
    %305 = vmatpush1.bf16.msra.mxu0 0
    %306 = vmatprep.subr.bf16.mxu0 0
    %307 = vmatpush1.bf16.msra.mxu0 0
    %308 = vmatprep.subr.bf16.mxu0 0
    %309 = vmatpush1.bf16.msra.mxu0 0
    %310 = vmatprep.subr.bf16.mxu0 0
    %311 = vmatpush1.bf16.msra.mxu0 0
    %312 = vmatprep.mubr.bf16.mxu0 0
    %313 = vmatmul.mubr.bf16.gmra.mrb[0].mxu0 %v278
    %v314 = vpop.f32.mrb[0].mxu0
    %v315 = vadd.f32 %v229, %v314
    %v316 = vpop.f32.mrb[0].mxu0
    %v317 = vadd.f32 %v233, %v316
    %v318 = vpop.f32.mrb[0].mxu0
    %v319 = vpop.f32.mrb[0].mxu0
    %320 = vdwg.mxu0
    %v323 = vrot.slane %v211, 6
    %v324 = vrot.slane %v213, 6
    %v327 = vsel %vm90, %v207, %v323
    %v328 = vsel %vm91, %v209, %v324
    %v329 = vadd.f32 %v327, %v315
    %v330 = vxor.u32 %v329, 2147483648
    %v331 = vmul.f32 %v330, 1.442695
    %v332 = vpow.pop %v331
    %v333 = vadd.f32 %v332, 1.0
    %v334 = vrcp.pop %v333
    %v335 = vmul.f32 1.0, %v334
    %v336 = vmul.f32 %v335, %v317
    %v337 = vadd.f32 %v328, %v336
    %v338 = vtanh.pop %v337
    %v339 = vsub.f32 0.0, %v338
    %341 = vrot.lane.b32.xlu0 %v339, 64
    %v342 = vpop.permute.xlu0 %341
    %v344 = vmul.f32 %v335, %v342
    %346 = vrot.lane.b32.xlu0 %v344, 64
    %v347 = vpop.permute.xlu0 %346
    %v349 = vadd.f32 %v338, %v347
    %vm350 = vcmask 254976
    %351 = vst.msk [vmem:[#allocation2] sm:$0x3] %vm350, %v349
    %vm352 = vcmask 517376
    %353 = vst.msk [vmem:[#allocation2 + $0xe] sm:$0x3] %vm352, %v349
    %v354 = vpack.c.bf16 %v349, %v349
    %v356 = vsel %vm276, %v354, 0
    %358 = vmatprep.subr.bf16.mxu0 %v261
    %359 = vmatpush1.bf16.msra.mxu0 %v260
    %360 = vmatprep.subr.bf16.mxu0 %v263
    %361 = vmatpush1.bf16.msra.mxu0 %v262
    %362 = vmatprep.subr.bf16.mxu0 %v265
    %363 = vmatpush1.bf16.msra.mxu0 %v264
    %364 = vmatprep.subr.bf16.mxu0 %v267
    %365 = vmatpush1.bf16.msra.mxu0 %v266
    %366 = vmatprep.subr.bf16.mxu0 0
    %367 = vmatpush1.bf16.msra.mxu0 0
    %368 = vmatprep.subr.bf16.mxu0 0
    %369 = vmatpush1.bf16.msra.mxu0 0
    %370 = vmatprep.subr.bf16.mxu0 0
    %371 = vmatpush1.bf16.msra.mxu0 0
    %372 = vmatprep.subr.bf16.mxu0 0
    %373 = vmatpush1.bf16.msra.mxu0 0
    %374 = vmatprep.subr.bf16.mxu0 0
    %375 = vmatpush1.bf16.msra.mxu0 0
    %376 = vmatprep.subr.bf16.mxu0 0
    %377 = vmatpush1.bf16.msra.mxu0 0
    %378 = vmatprep.subr.bf16.mxu0 0
    %379 = vmatpush1.bf16.msra.mxu0 0
    %380 = vmatprep.subr.bf16.mxu0 0
    %381 = vmatpush1.bf16.msra.mxu0 0
    %382 = vmatprep.subr.bf16.mxu0 0
    %383 = vmatpush1.bf16.msra.mxu0 0
    %384 = vmatprep.subr.bf16.mxu0 0
    %385 = vmatpush1.bf16.msra.mxu0 0
    %386 = vmatprep.subr.bf16.mxu0 0
    %387 = vmatpush1.bf16.msra.mxu0 0
    %388 = vmatprep.subr.bf16.mxu0 0
    %389 = vmatpush1.bf16.msra.mxu0 0
    %390 = vmatprep.mubr.bf16.mxu0 0
    %391 = vmatmul.mubr.bf16.gmra.mrb[0].mxu0 %v356
    %v392 = vpop.f32.mrb[0].mxu0
    %v393 = vadd.f32 %v229, %v392
    %v394 = vpop.f32.mrb[0].mxu0
    %v395 = vadd.f32 %v233, %v394
    %v396 = vpop.f32.mrb[0].mxu0
    %v397 = vpop.f32.mrb[0].mxu0
    %398 = vdwg.mxu0
    %v399 = vrot.slane %v211, 2
    %v400 = vrot.slane %v213, 2
    %v403 = vsel %vm90, %v207, %v399
    %v404 = vsel %vm91, %v209, %v400
    %v406 = vrot.slane %v393, 6
    %v408 = vadd.f32 %v403, %v406
    %v409 = vxor.u32 %v408, 2147483648
    %v410 = vmul.f32 %v409, 1.442695
    %v411 = vpow.pop %v410
    %v412 = vadd.f32 %v411, 1.0
    %v413 = vrcp.pop %v412
    %v414 = vmul.f32 1.0, %v413
    %v416 = vrot.slane %v395, 6
    %v418 = vmul.f32 %v414, %v416
    %v419 = vadd.f32 %v404, %v418
    %v420 = vtanh.pop %v419
    %v422 = vrot.slane %v420, 2
    %v424 = vsub.f32 %v349, %v422
    %v426 = vrot.slane %v424, 6
    %427 = vrot.lane.b32.xlu0 %v426, 64
    %v428 = vpop.permute.xlu0 %427
    %v430 = vmul.f32 %v414, %v428
    %432 = vrot.lane.b32.xlu0 %v430, 64
    %v433 = vpop.permute.xlu0 %432
    %v435 = vadd.f32 %v420, %v433
    %vm436 = vcmask 257026
    %437 = vst.msk [vmem:[#allocation2] sm:$0xc] %vm436, %v435
    %vm438 = vcmask 519426
    %439 = vst.msk [vmem:[#allocation2 + $0xa] sm:$0xc] %vm438, %v435
    %v440 = vpack.c.bf16 %v435, %v435
    %v442 = vrot.slane %v440, 1
    %v444 = vsel %vm276, %v442, 0
    %446 = vmatprep.subr.bf16.mxu0 %v261
    %447 = vmatpush1.bf16.msra.mxu0 %v260
    %448 = vmatprep.subr.bf16.mxu0 %v263
    %449 = vmatpush1.bf16.msra.mxu0 %v262
    %450 = vmatprep.subr.bf16.mxu0 %v265
    %451 = vmatpush1.bf16.msra.mxu0 %v264
    %452 = vmatprep.subr.bf16.mxu0 %v267
    %453 = vmatpush1.bf16.msra.mxu0 %v266
    %454 = vmatprep.subr.bf16.mxu0 0
    %455 = vmatpush1.bf16.msra.mxu0 0
    %456 = vmatprep.subr.bf16.mxu0 0
    %457 = vmatpush1.bf16.msra.mxu0 0
    %458 = vmatprep.subr.bf16.mxu0 0
    %459 = vmatpush1.bf16.msra.mxu0 0
    %460 = vmatprep.subr.bf16.mxu0 0
    %461 = vmatpush1.bf16.msra.mxu0 0
    %462 = vmatprep.subr.bf16.mxu0 0
    %463 = vmatpush1.bf16.msra.mxu0 0
    %464 = vmatprep.subr.bf16.mxu0 0
    %465 = vmatpush1.bf16.msra.mxu0 0
    %466 = vmatprep.subr.bf16.mxu0 0
    %467 = vmatpush1.bf16.msra.mxu0 0
    %468 = vmatprep.subr.bf16.mxu0 0
    %469 = vmatpush1.bf16.msra.mxu0 0
    %470 = vmatprep.subr.bf16.mxu0 0
    %471 = vmatpush1.bf16.msra.mxu0 0
    %472 = vmatprep.subr.bf16.mxu0 0
    %473 = vmatpush1.bf16.msra.mxu0 0
    %474 = vmatprep.subr.bf16.mxu0 0
    %475 = vmatpush1.bf16.msra.mxu0 0
    %476 = vmatprep.subr.bf16.mxu0 0
    %477 = vmatpush1.bf16.msra.mxu0 0
    %478 = vmatprep.mubr.bf16.mxu0 0
    %479 = vmatmul.mubr.bf16.gmra.mrb[0].mxu0 %v444
    %v480 = vpop.f32.mrb[0].mxu0
    %v481 = vadd.f32 %v229, %v480
    %v482 = vpop.f32.mrb[0].mxu0
    %v483 = vadd.f32 %v233, %v482
    %v484 = vpop.f32.mrb[0].mxu0
    %v485 = vpop.f32.mrb[0].mxu0
    %486 = vdwg.mxu0
    %v488 = vrot.slane %v481, 4
    %v490 = vadd.f32 %v327, %v488
    %v491 = vxor.u32 %v490, 2147483648
    %v492 = vmul.f32 %v491, 1.442695
    %v493 = vpow.pop %v492
    %v494 = vadd.f32 %v493, 1.0
    %v495 = vrcp.pop %v494
    %v496 = vmul.f32 1.0, %v495
    %v498 = vrot.slane %v483, 4
    %v500 = vmul.f32 %v496, %v498
    %v501 = vadd.f32 %v328, %v500
    %v502 = vtanh.pop %v501
    %v504 = vrot.slane %v502, 2
    %v506 = vsub.f32 %v435, %v504
    %v508 = vrot.slane %v506, 6
    %509 = vrot.lane.b32.xlu0 %v508, 64
    %v510 = vpop.permute.xlu0 %509
    %v512 = vmul.f32 %v496, %v510
    %514 = vrot.lane.b32.xlu0 %v512, 64
    %v515 = vpop.permute.xlu0 %514
    %v517 = vadd.f32 %v502, %v515
    %vm518 = vcmask 259076
    %519 = vst.msk [vmem:[#allocation2] sm:$0x30] %vm518, %v517
    %vm520 = vcmask 521476
    %521 = vst.msk [vmem:[#allocation2 + $0x6] sm:$0x30] %vm520, %v517
    %v522 = vpack.c.bf16 %v517, %v517
    %v524 = vrot.slane %v522, 2
    %v526 = vsel %vm276, %v524, 0
    %528 = vmatprep.subr.bf16.mxu0 %v261
    %529 = vmatpush1.bf16.msra.mxu0 %v260
    %530 = vmatprep.subr.bf16.mxu0 %v263
    %531 = vmatpush1.bf16.msra.mxu0 %v262
    %532 = vmatprep.subr.bf16.mxu0 %v265
    %533 = vmatpush1.bf16.msra.mxu0 %v264
    %534 = vmatprep.subr.bf16.mxu0 %v267
    %535 = vmatpush1.bf16.msra.mxu0 %v266
    %536 = vmatprep.subr.bf16.mxu0 0
    %537 = vmatpush1.bf16.msra.mxu0 0
    %538 = vmatprep.subr.bf16.mxu0 0
    %539 = vmatpush1.bf16.msra.mxu0 0
    %540 = vmatprep.subr.bf16.mxu0 0
    %541 = vmatpush1.bf16.msra.mxu0 0
    %542 = vmatprep.subr.bf16.mxu0 0
    %543 = vmatpush1.bf16.msra.mxu0 0
    %544 = vmatprep.subr.bf16.mxu0 0
    %545 = vmatpush1.bf16.msra.mxu0 0
    %546 = vmatprep.subr.bf16.mxu0 0
    %547 = vmatpush1.bf16.msra.mxu0 0
    %548 = vmatprep.subr.bf16.mxu0 0
    %549 = vmatpush1.bf16.msra.mxu0 0
    %550 = vmatprep.subr.bf16.mxu0 0
    %551 = vmatpush1.bf16.msra.mxu0 0
    %552 = vmatprep.subr.bf16.mxu0 0
    %553 = vmatpush1.bf16.msra.mxu0 0
    %554 = vmatprep.subr.bf16.mxu0 0
    %555 = vmatpush1.bf16.msra.mxu0 0
    %556 = vmatprep.subr.bf16.mxu0 0
    %557 = vmatpush1.bf16.msra.mxu0 0
    %558 = vmatprep.subr.bf16.mxu0 0
    %559 = vmatpush1.bf16.msra.mxu0 0
    %560 = vmatprep.mubr.bf16.mxu0 0
    %561 = vmatmul.mubr.bf16.gmra.mrb[0].mxu0 %v526
    %v562 = vpop.f32.mrb[0].mxu0
    %v563 = vadd.f32 %v229, %v562
    %v564 = vpop.f32.mrb[0].mxu0
    %v565 = vadd.f32 %v233, %v564
    %v566 = vpop.f32.mrb[0].mxu0
    %v567 = vpop.f32.mrb[0].mxu0
    %568 = vdwg.mxu0
    %v570 = vrot.slane %v563, 2
    %v572 = vadd.f32 %v403, %v570
    %v573 = vxor.u32 %v572, 2147483648
    %v574 = vmul.f32 %v573, 1.442695
    %v575 = vpow.pop %v574
    %v576 = vadd.f32 %v575, 1.0
    %v577 = vrcp.pop %v576
    %v578 = vmul.f32 1.0, %v577
    %v580 = vrot.slane %v565, 2
    %v582 = vmul.f32 %v578, %v580
    %v583 = vadd.f32 %v404, %v582
    %v584 = vtanh.pop %v583
    %v586 = vrot.slane %v584, 2
    %v588 = vsub.f32 %v517, %v586
    %v590 = vrot.slane %v588, 6
    %591 = vrot.lane.b32.xlu0 %v590, 64
    %v592 = vpop.permute.xlu0 %591
    %v594 = vmul.f32 %v578, %v592
    %596 = vrot.lane.b32.xlu0 %v594, 64
    %v597 = vpop.permute.xlu0 %596
    %v599 = vadd.f32 %v584, %v597
    %vm600 = vcmask 261126
    %601 = vst.msk [vmem:[#allocation2] sm:$0xc0] %vm600, %v599
    %vm602 = vcmask 523526
    %603 = vst.msk [vmem:[#allocation2 + $0x2] sm:$0xc0] %vm602, %v599
    %v604 = vpack.c.bf16 %v599, %v599
    %v606 = vrot.slane %v604, 3
    %v608 = vsel %vm276, %v606, 0
    %610 = vmatprep.subr.bf16.mxu0 %v261
    %611 = vmatpush1.bf16.msra.mxu0 %v260
    %612 = vmatprep.subr.bf16.mxu0 %v263
    %613 = vmatpush1.bf16.msra.mxu0 %v262
    %614 = vmatprep.subr.bf16.mxu0 %v265
    %615 = vmatpush1.bf16.msra.mxu0 %v264
    %616 = vmatprep.subr.bf16.mxu0 %v267
    %617 = vmatpush1.bf16.msra.mxu0 %v266
    %618 = vmatprep.subr.bf16.mxu0 0
    %619 = vmatpush1.bf16.msra.mxu0 0
    %620 = vmatprep.subr.bf16.mxu0 0
    %621 = vmatpush1.bf16.msra.mxu0 0
    %622 = vmatprep.subr.bf16.mxu0 0
    %623 = vmatpush1.bf16.msra.mxu0 0
    %624 = vmatprep.subr.bf16.mxu0 0
    %625 = vmatpush1.bf16.msra.mxu0 0
    %626 = vmatprep.subr.bf16.mxu0 0
    %627 = vmatpush1.bf16.msra.mxu0 0
    %628 = vmatprep.subr.bf16.mxu0 0
    %629 = vmatpush1.bf16.msra.mxu0 0
    %630 = vmatprep.subr.bf16.mxu0 0
    %631 = vmatpush1.bf16.msra.mxu0 0
    %632 = vmatprep.subr.bf16.mxu0 0
    %633 = vmatpush1.bf16.msra.mxu0 0
    %634 = vmatprep.subr.bf16.mxu0 0
    %635 = vmatpush1.bf16.msra.mxu0 0
    %636 = vmatprep.subr.bf16.mxu0 0
    %637 = vmatpush1.bf16.msra.mxu0 0
    %638 = vmatprep.subr.bf16.mxu0 0
    %639 = vmatpush1.bf16.msra.mxu0 0
    %640 = vmatprep.subr.bf16.mxu0 0
    %641 = vmatpush1.bf16.msra.mxu0 0
    %642 = vmatprep.mubr.bf16.mxu0 0
    %643 = vmatmul.mubr.bf16.gmra.mrb[0].mxu0 %v608
    %v644 = vpop.f32.mrb[0].mxu0
    %v645 = vadd.f32 %v229, %v644
    %v646 = vpop.f32.mrb[0].mxu0
    %v647 = vadd.f32 %v233, %v646
    %v648 = vpop.f32.mrb[0].mxu0
    %v649 = vpop.f32.mrb[0].mxu0
    %650 = vdwg.mxu0
    %v653 = vrot.slane %v207, 6
    %v654 = vrot.slane %v209, 6
    %v657 = vsel %vm90, %v211, %v653
    %v658 = vsel %vm91, %v213, %v654
    %v659 = vadd.f32 %v657, %v645
    %v660 = vxor.u32 %v659, 2147483648
    %v661 = vmul.f32 %v660, 1.442695
    %v662 = vpow.pop %v661
    %v663 = vadd.f32 %v662, 1.0
    %v664 = vrcp.pop %v663
    %v665 = vmul.f32 1.0, %v664
    %v666 = vmul.f32 %v665, %v647
    %v667 = vadd.f32 %v658, %v666
    %v668 = vtanh.pop %v667
    %v670 = vrot.slane %v668, 2
    %v672 = vsub.f32 %v599, %v670
    %v674 = vrot.slane %v672, 6
    %675 = vrot.lane.b32.xlu0 %v674, 64
    %v676 = vpop.permute.xlu0 %675
    %v678 = vmul.f32 %v665, %v676
    %680 = vrot.lane.b32.xlu0 %v678, 64
    %v681 = vpop.permute.xlu0 %680
    %v683 = vadd.f32 %v668, %v681
    %684 = vst.msk [vmem:[#allocation2 + $0x8] sm:$0x3] %vm350, %v683
    %685 = vst.msk [vmem:[#allocation2 + $0x6] sm:$0x3] %vm352, %v683
    %v686 = vpack.c.bf16 %v683, %v683
    %v688 = vsel %vm276, %v686, 0
    %690 = vmatprep.subr.bf16.mxu0 %v261
    %691 = vmatpush1.bf16.msra.mxu0 %v260
    %692 = vmatprep.subr.bf16.mxu0 %v263
    %693 = vmatpush1.bf16.msra.mxu0 %v262
    %694 = vmatprep.subr.bf16.mxu0 %v265
    %695 = vmatpush1.bf16.msra.mxu0 %v264
    %696 = vmatprep.subr.bf16.mxu0 %v267
    %697 = vmatpush1.bf16.msra.mxu0 %v266
    %698 = vmatprep.subr.bf16.mxu0 0
    %699 = vmatpush1.bf16.msra.mxu0 0
    %700 = vmatprep.subr.bf16.mxu0 0
    %701 = vmatpush1.bf16.msra.mxu0 0
    %702 = vmatprep.subr.bf16.mxu0 0
    %703 = vmatpush1.bf16.msra.mxu0 0
    %704 = vmatprep.subr.bf16.mxu0 0
    %705 = vmatpush1.bf16.msra.mxu0 0
    %706 = vmatprep.subr.bf16.mxu0 0
    %707 = vmatpush1.bf16.msra.mxu0 0
    %708 = vmatprep.subr.bf16.mxu0 0
    %709 = vmatpush1.bf16.msra.mxu0 0
    %710 = vmatprep.subr.bf16.mxu0 0
    %711 = vmatpush1.bf16.msra.mxu0 0
    %712 = vmatprep.subr.bf16.mxu0 0
    %713 = vmatpush1.bf16.msra.mxu0 0
    %714 = vmatprep.subr.bf16.mxu0 0
    %715 = vmatpush1.bf16.msra.mxu0 0
    %716 = vmatprep.subr.bf16.mxu0 0
    %717 = vmatpush1.bf16.msra.mxu0 0
    %718 = vmatprep.subr.bf16.mxu0 0
    %719 = vmatpush1.bf16.msra.mxu0 0
    %720 = vmatprep.subr.bf16.mxu0 0
    %721 = vmatpush1.bf16.msra.mxu0 0
    %722 = vmatprep.mubr.bf16.mxu0 0
    %723 = vmatmul.mubr.bf16.gmra.mrb[0].mxu0 %v688
    %v724 = vpop.f32.mrb[0].mxu0
    %v725 = vadd.f32 %v229, %v724
    %v726 = vpop.f32.mrb[0].mxu0
    %v727 = vadd.f32 %v233, %v726
    %v728 = vpop.f32.mrb[0].mxu0
    %v729 = vpop.f32.mrb[0].mxu0
    %730 = vdwg.mxu0
    %v731 = vrot.slane %v207, 2
    %v732 = vrot.slane %v209, 2
    %v735 = vsel %vm90, %v211, %v731
    %v736 = vsel %vm91, %v213, %v732
    %v738 = vrot.slane %v725, 6
    %v740 = vadd.f32 %v735, %v738
    %v741 = vxor.u32 %v740, 2147483648
    %v742 = vmul.f32 %v741, 1.442695
    %v743 = vpow.pop %v742
    %v744 = vadd.f32 %v743, 1.0
    %v745 = vrcp.pop %v744
    %v746 = vmul.f32 1.0, %v745
    %v748 = vrot.slane %v727, 6
    %v750 = vmul.f32 %v746, %v748
    %v751 = vadd.f32 %v736, %v750
    %v752 = vtanh.pop %v751
    %v754 = vrot.slane %v752, 2
    %v756 = vsub.f32 %v683, %v754
    %v758 = vrot.slane %v756, 6
    %759 = vrot.lane.b32.xlu0 %v758, 64
    %v760 = vpop.permute.xlu0 %759
    %v762 = vmul.f32 %v746, %v760
    %764 = vrot.lane.b32.xlu0 %v762, 64
    %v765 = vpop.permute.xlu0 %764
    %v767 = vadd.f32 %v752, %v765
    %768 = vst.msk [vmem:[#allocation2 + $0x8] sm:$0xc] %vm436, %v767
    %769 = vst.msk [vmem:[#allocation2 + $0x2] sm:$0xc] %vm438, %v767
    %v770 = vpack.c.bf16 %v767, %v767
    %v772 = vrot.slane %v770, 1
    %v774 = vsel %vm276, %v772, 0
    %776 = vmatprep.subr.bf16.mxu0 %v261
    %777 = vmatpush1.bf16.msra.mxu0 %v260
    %778 = vmatprep.subr.bf16.mxu0 %v263
    %779 = vmatpush1.bf16.msra.mxu0 %v262
    %780 = vmatprep.subr.bf16.mxu0 %v265
    %781 = vmatpush1.bf16.msra.mxu0 %v264
    %782 = vmatprep.subr.bf16.mxu0 %v267
    %783 = vmatpush1.bf16.msra.mxu0 %v266
    %784 = vmatprep.subr.bf16.mxu0 0
    %785 = vmatpush1.bf16.msra.mxu0 0
    %786 = vmatprep.subr.bf16.mxu0 0
    %787 = vmatpush1.bf16.msra.mxu0 0
    %788 = vmatprep.subr.bf16.mxu0 0
    %789 = vmatpush1.bf16.msra.mxu0 0
    %790 = vmatprep.subr.bf16.mxu0 0
    %791 = vmatpush1.bf16.msra.mxu0 0
    %792 = vmatprep.subr.bf16.mxu0 0
    %793 = vmatpush1.bf16.msra.mxu0 0
    %794 = vmatprep.subr.bf16.mxu0 0
    %795 = vmatpush1.bf16.msra.mxu0 0
    %796 = vmatprep.subr.bf16.mxu0 0
    %797 = vmatpush1.bf16.msra.mxu0 0
    %798 = vmatprep.subr.bf16.mxu0 0
    %799 = vmatpush1.bf16.msra.mxu0 0
    %800 = vmatprep.subr.bf16.mxu0 0
    %801 = vmatpush1.bf16.msra.mxu0 0
    %802 = vmatprep.subr.bf16.mxu0 0
    %803 = vmatpush1.bf16.msra.mxu0 0
    %804 = vmatprep.subr.bf16.mxu0 0
    %805 = vmatpush1.bf16.msra.mxu0 0
    %806 = vmatprep.subr.bf16.mxu0 0
    %807 = vmatpush1.bf16.msra.mxu0 0
    %808 = vmatprep.mubr.bf16.mxu0 0
    %809 = vmatmul.mubr.bf16.gmra.mrb[0].mxu0 %v774
    %v810 = vpop.f32.mrb[0].mxu0
    %v811 = vadd.f32 %v229, %v810
    %v812 = vpop.f32.mrb[0].mxu0
    %v813 = vadd.f32 %v233, %v812
    %v814 = vpop.f32.mrb[0].mxu0
    %v815 = vpop.f32.mrb[0].mxu0
    %816 = vdwg.mxu0
    %v818 = vrot.slane %v811, 4
    %v820 = vadd.f32 %v657, %v818
    %v821 = vxor.u32 %v820, 2147483648
    %v822 = vmul.f32 %v821, 1.442695
    %v823 = vpow.pop %v822
    %v824 = vadd.f32 %v823, 1.0
    %v825 = vrcp.pop %v824
    %v826 = vmul.f32 1.0, %v825
    %v828 = vrot.slane %v813, 4
    %v830 = vmul.f32 %v826, %v828
    %v831 = vadd.f32 %v658, %v830
    %v832 = vtanh.pop %v831
    %v834 = vrot.slane %v832, 2
    %v836 = vsub.f32 %v767, %v834
    %v838 = vrot.slane %v836, 6
    %839 = vrot.lane.b32.xlu0 %v838, 64
    %v840 = vpop.permute.xlu0 %839
    %v842 = vmul.f32 %v826, %v840
    %844 = vrot.lane.b32.xlu0 %v842, 64
    %v845 = vpop.permute.xlu0 %844
    %v847 = vadd.f32 %v832, %v845
    %848 = vst.msk [vmem:[#allocation2 + $0x8] sm:$0x30] %vm518, %v847
    %849 = vst.msk [vmem:[#allocation2 - $0x2] sm:$0x30] %vm520, %v847
    %v850 = vpack.c.bf16 %v847, %v847
    %v852 = vrot.slane %v850, 2
    %v854 = vsel %vm276, %v852, 0
    %856 = vmatprep.subr.bf16.mxu0 %v261
    %857 = vmatpush1.bf16.msra.mxu0 %v260
    %858 = vmatprep.subr.bf16.mxu0 %v263
    %859 = vmatpush1.bf16.msra.mxu0 %v262
    %860 = vmatprep.subr.bf16.mxu0 %v265
    %861 = vmatpush1.bf16.msra.mxu0 %v264
    %862 = vmatprep.subr.bf16.mxu0 %v267
    %863 = vmatpush1.bf16.msra.mxu0 %v266
    %864 = vmatprep.subr.bf16.mxu0 0
    %865 = vmatpush1.bf16.msra.mxu0 0
    %866 = vmatprep.subr.bf16.mxu0 0
    %867 = vmatpush1.bf16.msra.mxu0 0
    %868 = vmatprep.subr.bf16.mxu0 0
    %869 = vmatpush1.bf16.msra.mxu0 0
    %870 = vmatprep.subr.bf16.mxu0 0
    %871 = vmatpush1.bf16.msra.mxu0 0
    %872 = vmatprep.subr.bf16.mxu0 0
    %873 = vmatpush1.bf16.msra.mxu0 0
    %874 = vmatprep.subr.bf16.mxu0 0
    %875 = vmatpush1.bf16.msra.mxu0 0
    %876 = vmatprep.subr.bf16.mxu0 0
    %877 = vmatpush1.bf16.msra.mxu0 0
    %878 = vmatprep.subr.bf16.mxu0 0
    %879 = vmatpush1.bf16.msra.mxu0 0
    %880 = vmatprep.subr.bf16.mxu0 0
    %881 = vmatpush1.bf16.msra.mxu0 0
    %882 = vmatprep.subr.bf16.mxu0 0
    %883 = vmatpush1.bf16.msra.mxu0 0
    %884 = vmatprep.subr.bf16.mxu0 0
    %885 = vmatpush1.bf16.msra.mxu0 0
    %886 = vmatprep.subr.bf16.mxu0 0
    %887 = vmatpush1.bf16.msra.mxu0 0
    %888 = vmatprep.mubr.bf16.mxu0 0
    %889 = vmatmul.mubr.bf16.gmra.mrb[0].mxu0 %v854
    %v890 = vpop.f32.mrb[0].mxu0
    %v891 = vadd.f32 %v229, %v890
    %v892 = vpop.f32.mrb[0].mxu0
    %v893 = vadd.f32 %v233, %v892
    %v894 = vpop.f32.mrb[0].mxu0
    %v895 = vpop.f32.mrb[0].mxu0
    %896 = vdwg.mxu0
    %v898 = vrot.slane %v891, 2
    %v900 = vadd.f32 %v735, %v898
    %v901 = vxor.u32 %v900, 2147483648
    %v902 = vmul.f32 %v901, 1.442695
    %v903 = vpow.pop %v902
    %v904 = vadd.f32 %v903, 1.0
    %v905 = vrcp.pop %v904
    %v906 = vmul.f32 1.0, %v905
    %v908 = vrot.slane %v893, 2
    %v910 = vmul.f32 %v906, %v908
    %v911 = vadd.f32 %v736, %v910
    %v912 = vtanh.pop %v911
    %v914 = vrot.slane %v912, 2
    %v916 = vsub.f32 %v847, %v914
    %v918 = vrot.slane %v916, 6
    %919 = vrot.lane.b32.xlu0 %v918, 64
    %v920 = vpop.permute.xlu0 %919
    %v922 = vmul.f32 %v906, %v920
    %924 = vrot.lane.b32.xlu0 %v922, 64
    %v925 = vpop.permute.xlu0 %924
    %v927 = vadd.f32 %v912, %v925
    %928 = vst.msk [vmem:[#allocation2 + $0x8] sm:$0xc0] %vm600, %v927
    %929 = vst.msk [vmem:[#allocation2 - $0x6] sm:$0xc0] %vm602, %v927
    %v930 = vld [vmem:[#allocation2] sm:$0xff]
    %v931 = vld [vmem:[#allocation2 + $0x8] sm:$0xff]
    %v932 = vld [vmem:[#allocation8 + $0x50] sm:$0xff]
    %v933 = vld [vmem:[#allocation8 + $0x58] sm:$0xff]
    %v934 = vld [vmem:[#allocation8 + $0x60] sm:$0xff]
    %v935 = vld [vmem:[#allocation8 + $0x68] sm:$0xff]
    %v936 = vld [vmem:[#allocation8 + $0x70] sm:$0xff]
    %v937 = vld [vmem:[#allocation8 + $0x78] sm:$0xff]
    %v938 = vld [vmem:[#allocation8 + $0x80] sm:$0xff]
    %v939 = vld [vmem:[#allocation8 + $0x88] sm:$0xff]
    %v940 = vpack.c.bf16 %v931, %v930
    %s941 = scalar_lea.vmem [#allocation10], 32
    %v942 = vld [vmem:[%s941] ss:$8 sm:$0x3]
    %v944 = vlaneseq
    %v945 = vshrl.u32 %v944, 7
    %v946 = vsub.s32 0, %v945
    %v947 = vrot.slane %v942, %v946
    %v948 = vlaneseq
    %v949 = vshrl.u32 %v948, 7
    %v950 = vsub.s32 1, %v949
    %v951 = vrot.slane %v942, %v950
    %v962 = vunpack.c.l.b16 %v932
    %v963 = vunpack.c.h.b16 %v932
    %v964 = vunpack.c.l.b16 %v933
    %v965 = vunpack.c.h.b16 %v933
    %v966 = vunpack.c.l.b16 %v934
    %v967 = vunpack.c.h.b16 %v934
    %v968 = vunpack.c.l.b16 %v935
    %v969 = vunpack.c.h.b16 %v935
    %v970 = vunpack.c.l.b16 %v936
    %v971 = vunpack.c.h.b16 %v936
    %v972 = vunpack.c.l.b16 %v937
    %v973 = vunpack.c.h.b16 %v937
    %v974 = vunpack.c.l.b16 %v938
    %v975 = vunpack.c.h.b16 %v938
    %v976 = vunpack.c.l.b16 %v939
    %v977 = vunpack.c.h.b16 %v939
    %v978 = vpack.c.b16 %v964, %v962
    %v979 = vpack.c.b16 %v965, %v963
    %v980 = vpack.c.b16 %v968, %v966
    %v981 = vpack.c.b16 %v969, %v967
    %v982 = vpack.c.b16 %v972, %v970
    %v983 = vpack.c.b16 %v973, %v971
    %v984 = vpack.c.b16 %v976, %v974
    %v985 = vpack.c.b16 %v977, %v975
    %v995 = vsel %vm276, %v940, 0
    %997 = vmatprep.subr.bf16.mxu0 %v979
    %998 = vmatpush1.bf16.msra.mxu0 %v978
    %999 = vmatprep.subr.bf16.mxu0 %v981
    %1000 = vmatpush1.bf16.msra.mxu0 %v980
    %1001 = vmatprep.subr.bf16.mxu0 %v983
    %1002 = vmatpush1.bf16.msra.mxu0 %v982
    %1003 = vmatprep.subr.bf16.mxu0 %v985
    %1004 = vmatpush1.bf16.msra.mxu0 %v984
    %1005 = vmatprep.subr.bf16.mxu0 0
    %1006 = vmatpush1.bf16.msra.mxu0 0
    %1007 = vmatprep.subr.bf16.mxu0 0
    %1008 = vmatpush1.bf16.msra.mxu0 0
    %1009 = vmatprep.subr.bf16.mxu0 0
    %1010 = vmatpush1.bf16.msra.mxu0 0
    %1011 = vmatprep.subr.bf16.mxu0 0
    %1012 = vmatpush1.bf16.msra.mxu0 0
    %1013 = vmatprep.subr.bf16.mxu0 0
    %1014 = vmatpush1.bf16.msra.mxu0 0
    %1015 = vmatprep.subr.bf16.mxu0 0
    %1016 = vmatpush1.bf16.msra.mxu0 0
    %1017 = vmatprep.subr.bf16.mxu0 0
    %1018 = vmatpush1.bf16.msra.mxu0 0
    %1019 = vmatprep.subr.bf16.mxu0 0
    %1020 = vmatpush1.bf16.msra.mxu0 0
    %1021 = vmatprep.subr.bf16.mxu0 0
    %1022 = vmatpush1.bf16.msra.mxu0 0
    %1023 = vmatprep.subr.bf16.mxu0 0
    %1024 = vmatpush1.bf16.msra.mxu0 0
    %1025 = vmatprep.subr.bf16.mxu0 0
    %1026 = vmatpush1.bf16.msra.mxu0 0
    %1027 = vmatprep.subr.bf16.mxu0 0
    %1028 = vmatpush1.bf16.msra.mxu0 0
    %1029 = vmatprep.mubr.bf16.mxu0 0
    %1030 = vmatmul.mubr.bf16.gmra.mrb[0].mxu0 %v995
    %v1031 = vpop.f32.mrb[0].mxu0
    %v1032 = vadd.f32 %v947, %v1031
    %v1033 = vpop.f32.mrb[0].mxu0
    %v1034 = vadd.f32 %v951, %v1033
    %v1035 = vpop.f32.mrb[0].mxu0
    %v1036 = vadd.f32 %v947, %v1035
    %v1037 = vpop.f32.mrb[0].mxu0
    %v1038 = vadd.f32 %v951, %v1037
    %1039 = vdwg.mxu0
    %v1040 = vld [vmem:[#allocation8 + $0x90] sm:$0xff]
    %v1041 = vld [vmem:[#allocation8 + $0x98] sm:$0xff]
    %v1042 = vld [vmem:[#allocation8 + $0xa0] sm:$0xff]
    %v1043 = vld [vmem:[#allocation8 + $0xa8] sm:$0xff]
    %v1044 = vld [vmem:[#allocation8 + $0xb0] sm:$0xff]
    %v1045 = vld [vmem:[#allocation8 + $0xb8] sm:$0xff]
    %v1046 = vld [vmem:[#allocation8 + $0xc0] sm:$0xff]
    %v1047 = vld [vmem:[#allocation8 + $0xc8] sm:$0xff]
    %s1048 = scalar_lea.vmem [#allocation10], 48
    %v1049 = vld [vmem:[%s1048] ss:$8 sm:$0x3]
    %v1051 = vlaneseq
    %v1052 = vshrl.u32 %v1051, 7
    %v1053 = vsub.s32 0, %v1052
    %v1054 = vrot.slane %v1049, %v1053
    %v1055 = vlaneseq
    %v1056 = vshrl.u32 %v1055, 7
    %v1057 = vsub.s32 1, %v1056
    %v1058 = vrot.slane %v1049, %v1057
    %v1069 = vunpack.c.l.b16 %v1040
    %v1070 = vunpack.c.h.b16 %v1040
    %v1071 = vunpack.c.l.b16 %v1041
    %v1072 = vunpack.c.h.b16 %v1041
    %v1073 = vunpack.c.l.b16 %v1042
    %v1074 = vunpack.c.h.b16 %v1042
    %v1075 = vunpack.c.l.b16 %v1043
    %v1076 = vunpack.c.h.b16 %v1043
    %v1077 = vunpack.c.l.b16 %v1044
    %v1078 = vunpack.c.h.b16 %v1044
    %v1079 = vunpack.c.l.b16 %v1045
    %v1080 = vunpack.c.h.b16 %v1045
    %v1081 = vunpack.c.l.b16 %v1046
    %v1082 = vunpack.c.h.b16 %v1046
    %v1083 = vunpack.c.l.b16 %v1047
    %v1084 = vunpack.c.h.b16 %v1047
    %v1085 = vpack.c.b16 %v1071, %v1069
    %v1086 = vpack.c.b16 %v1072, %v1070
    %v1087 = vpack.c.b16 %v1075, %v1073
    %v1088 = vpack.c.b16 %v1076, %v1074
    %v1089 = vpack.c.b16 %v1079, %v1077
    %v1090 = vpack.c.b16 %v1080, %v1078
    %v1091 = vpack.c.b16 %v1083, %v1081
    %v1092 = vpack.c.b16 %v1084, %v1082
    %1101 = vmatprep.subr.bf16.mxu0 %v1086
    %1102 = vmatpush1.bf16.msra.mxu0 %v1085
    %1103 = vmatprep.subr.bf16.mxu0 %v1088
    %1104 = vmatpush1.bf16.msra.mxu0 %v1087
    %1105 = vmatprep.subr.bf16.mxu0 %v1090
    %1106 = vmatpush1.bf16.msra.mxu0 %v1089
    %1107 = vmatprep.subr.bf16.mxu0 %v1092
    %1108 = vmatpush1.bf16.msra.mxu0 %v1091
    %1109 = vmatprep.subr.bf16.mxu0 0
    %1110 = vmatpush1.bf16.msra.mxu0 0
    %1111 = vmatprep.subr.bf16.mxu0 0
    %1112 = vmatpush1.bf16.msra.mxu0 0
    %1113 = vmatprep.subr.bf16.mxu0 0
    %1114 = vmatpush1.bf16.msra.mxu0 0
    %1115 = vmatprep.subr.bf16.mxu0 0
    %1116 = vmatpush1.bf16.msra.mxu0 0
    %1117 = vmatprep.subr.bf16.mxu0 0
    %1118 = vmatpush1.bf16.msra.mxu0 0
    %1119 = vmatprep.subr.bf16.mxu0 0
    %1120 = vmatpush1.bf16.msra.mxu0 0
    %1121 = vmatprep.subr.bf16.mxu0 0
    %1122 = vmatpush1.bf16.msra.mxu0 0
    %1123 = vmatprep.subr.bf16.mxu0 0
    %1124 = vmatpush1.bf16.msra.mxu0 0
    %1125 = vmatprep.subr.bf16.mxu0 0
    %1126 = vmatpush1.bf16.msra.mxu0 0
    %1127 = vmatprep.subr.bf16.mxu0 0
    %1128 = vmatpush1.bf16.msra.mxu0 0
    %1129 = vmatprep.subr.bf16.mxu0 0
    %1130 = vmatpush1.bf16.msra.mxu0 0
    %1131 = vmatprep.subr.bf16.mxu0 0
    %1132 = vmatpush1.bf16.msra.mxu0 0
    %1133 = vmatprep.mubr.bf16.mxu0 0
    %1134 = vmatmul.mubr.bf16.gmra.mrb[0].mxu0 %v278
    %v1135 = vpop.f32.mrb[0].mxu0
    %v1136 = vadd.f32 %v1054, %v1135
    %v1137 = vpop.f32.mrb[0].mxu0
    %v1138 = vadd.f32 %v1058, %v1137
    %v1139 = vpop.f32.mrb[0].mxu0
    %v1140 = vpop.f32.mrb[0].mxu0
    %1141 = vdwg.mxu0
    %v1144 = vrot.slane %v1036, 6
    %v1145 = vrot.slane %v1038, 6
    %v1148 = vsel %vm90, %v1032, %v1144
    %v1149 = vsel %vm91, %v1034, %v1145
    %v1150 = vadd.f32 %v1148, %v1136
    %v1151 = vxor.u32 %v1150, 2147483648
    %v1152 = vmul.f32 %v1151, 1.442695
    %v1153 = vpow.pop %v1152
    %v1154 = vadd.f32 %v1153, 1.0
    %v1155 = vrcp.pop %v1154
    %v1156 = vmul.f32 1.0, %v1155
    %v1157 = vmul.f32 %v1156, %v1138
    %v1158 = vadd.f32 %v1149, %v1157
    %v1159 = vtanh.pop %v1158
    %v1160 = vsub.f32 0.0, %v1159
    %1162 = vrot.lane.b32.xlu0 %v1160, 64
    %v1163 = vpop.permute.xlu0 %1162
    %v1165 = vmul.f32 %v1156, %v1163
    %1167 = vrot.lane.b32.xlu0 %v1165, 64
    %v1168 = vpop.permute.xlu0 %1167
    %v1170 = vadd.f32 %v1159, %v1168
    %v1171 = vpack.c.bf16 %v1170, %v1170
    %v1173 = vsel %vm276, %v1171, 0
    %1175 = vmatprep.subr.bf16.mxu0 %v1086
    %1176 = vmatpush1.bf16.msra.mxu0 %v1085
    %1177 = vmatprep.subr.bf16.mxu0 %v1088
    %1178 = vmatpush1.bf16.msra.mxu0 %v1087
    %1179 = vmatprep.subr.bf16.mxu0 %v1090
    %1180 = vmatpush1.bf16.msra.mxu0 %v1089
    %1181 = vmatprep.subr.bf16.mxu0 %v1092
    %1182 = vmatpush1.bf16.msra.mxu0 %v1091
    %1183 = vmatprep.subr.bf16.mxu0 0
    %1184 = vmatpush1.bf16.msra.mxu0 0
    %1185 = vmatprep.subr.bf16.mxu0 0
    %1186 = vmatpush1.bf16.msra.mxu0 0
    %1187 = vmatprep.subr.bf16.mxu0 0
    %1188 = vmatpush1.bf16.msra.mxu0 0
    %1189 = vmatprep.subr.bf16.mxu0 0
    %1190 = vmatpush1.bf16.msra.mxu0 0
    %1191 = vmatprep.subr.bf16.mxu0 0
    %1192 = vmatpush1.bf16.msra.mxu0 0
    %1193 = vmatprep.subr.bf16.mxu0 0
    %1194 = vmatpush1.bf16.msra.mxu0 0
    %1195 = vmatprep.subr.bf16.mxu0 0
    %1196 = vmatpush1.bf16.msra.mxu0 0
    %1197 = vmatprep.subr.bf16.mxu0 0
    %1198 = vmatpush1.bf16.msra.mxu0 0
    %1199 = vmatprep.subr.bf16.mxu0 0
    %1200 = vmatpush1.bf16.msra.mxu0 0
    %1201 = vmatprep.subr.bf16.mxu0 0
    %1202 = vmatpush1.bf16.msra.mxu0 0
    %1203 = vmatprep.subr.bf16.mxu0 0
    %1204 = vmatpush1.bf16.msra.mxu0 0
    %1205 = vmatprep.subr.bf16.mxu0 0
    %1206 = vmatpush1.bf16.msra.mxu0 0
    %1207 = vmatprep.mubr.bf16.mxu0 0
    %1208 = vmatmul.mubr.bf16.gmra.mrb[0].mxu0 %v1173
    %v1209 = vpop.f32.mrb[0].mxu0
    %v1210 = vadd.f32 %v1054, %v1209
    %v1211 = vpop.f32.mrb[0].mxu0
    %v1212 = vadd.f32 %v1058, %v1211
    %v1213 = vpop.f32.mrb[0].mxu0
    %v1214 = vpop.f32.mrb[0].mxu0
    %1215 = vdwg.mxu0
    %v1216 = vrot.slane %v1036, 2
    %v1217 = vrot.slane %v1038, 2
    %v1220 = vsel %vm90, %v1032, %v1216
    %v1221 = vsel %vm91, %v1034, %v1217
    %v1223 = vrot.slane %v1210, 6
    %v1225 = vadd.f32 %v1220, %v1223
    %v1226 = vxor.u32 %v1225, 2147483648
    %v1227 = vmul.f32 %v1226, 1.442695
    %v1228 = vpow.pop %v1227
    %v1229 = vadd.f32 %v1228, 1.0
    %v1230 = vrcp.pop %v1229
    %v1231 = vmul.f32 1.0, %v1230
    %v1233 = vrot.slane %v1212, 6
    %v1235 = vmul.f32 %v1231, %v1233
    %v1236 = vadd.f32 %v1221, %v1235
    %v1237 = vtanh.pop %v1236
    %v1239 = vrot.slane %v1237, 2
    %v1241 = vsub.f32 %v1170, %v1239
    %v1243 = vrot.slane %v1241, 6
    %1244 = vrot.lane.b32.xlu0 %v1243, 64
    %v1245 = vpop.permute.xlu0 %1244
    %v1247 = vmul.f32 %v1231, %v1245
    %1249 = vrot.lane.b32.xlu0 %v1247, 64
    %v1250 = vpop.permute.xlu0 %1249
    %v1252 = vadd.f32 %v1237, %v1250
    %v1253 = vpack.c.bf16 %v1252, %v1252
    %v1255 = vrot.slane %v1253, 1
    %v1257 = vsel %vm276, %v1255, 0
    %1259 = vmatprep.subr.bf16.mxu0 %v1086
    %1260 = vmatpush1.bf16.msra.mxu0 %v1085
    %1261 = vmatprep.subr.bf16.mxu0 %v1088
    %1262 = vmatpush1.bf16.msra.mxu0 %v1087
    %1263 = vmatprep.subr.bf16.mxu0 %v1090
    %1264 = vmatpush1.bf16.msra.mxu0 %v1089
    %1265 = vmatprep.subr.bf16.mxu0 %v1092
    %1266 = vmatpush1.bf16.msra.mxu0 %v1091
    %1267 = vmatprep.subr.bf16.mxu0 0
    %1268 = vmatpush1.bf16.msra.mxu0 0
    %1269 = vmatprep.subr.bf16.mxu0 0
    %1270 = vmatpush1.bf16.msra.mxu0 0
    %1271 = vmatprep.subr.bf16.mxu0 0
    %1272 = vmatpush1.bf16.msra.mxu0 0
    %1273 = vmatprep.subr.bf16.mxu0 0
    %1274 = vmatpush1.bf16.msra.mxu0 0
    %1275 = vmatprep.subr.bf16.mxu0 0
    %1276 = vmatpush1.bf16.msra.mxu0 0
    %1277 = vmatprep.subr.bf16.mxu0 0
    %1278 = vmatpush1.bf16.msra.mxu0 0
    %1279 = vmatprep.subr.bf16.mxu0 0
    %1280 = vmatpush1.bf16.msra.mxu0 0
    %1281 = vmatprep.subr.bf16.mxu0 0
    %1282 = vmatpush1.bf16.msra.mxu0 0
    %1283 = vmatprep.subr.bf16.mxu0 0
    %1284 = vmatpush1.bf16.msra.mxu0 0
    %1285 = vmatprep.subr.bf16.mxu0 0
    %1286 = vmatpush1.bf16.msra.mxu0 0
    %1287 = vmatprep.subr.bf16.mxu0 0
    %1288 = vmatpush1.bf16.msra.mxu0 0
    %1289 = vmatprep.subr.bf16.mxu0 0
    %1290 = vmatpush1.bf16.msra.mxu0 0
    %1291 = vmatprep.mubr.bf16.mxu0 0
    %1292 = vmatmul.mubr.bf16.gmra.mrb[0].mxu0 %v1257
    %v1293 = vpop.f32.mrb[0].mxu0
    %v1294 = vadd.f32 %v1054, %v1293
    %v1295 = vpop.f32.mrb[0].mxu0
    %v1296 = vadd.f32 %v1058, %v1295
    %v1297 = vpop.f32.mrb[0].mxu0
    %v1298 = vpop.f32.mrb[0].mxu0
    %1299 = vdwg.mxu0
    %v1301 = vrot.slane %v1294, 4
    %v1303 = vadd.f32 %v1148, %v1301
    %v1304 = vxor.u32 %v1303, 2147483648
    %v1305 = vmul.f32 %v1304, 1.442695
    %v1306 = vpow.pop %v1305
    %v1307 = vadd.f32 %v1306, 1.0
    %v1308 = vrcp.pop %v1307
    %v1309 = vmul.f32 1.0, %v1308
    %v1311 = vrot.slane %v1296, 4
    %v1313 = vmul.f32 %v1309, %v1311
    %v1314 = vadd.f32 %v1149, %v1313
    %v1315 = vtanh.pop %v1314
    %v1317 = vrot.slane %v1315, 2
    %v1319 = vsub.f32 %v1252, %v1317
    %v1321 = vrot.slane %v1319, 6
    %1322 = vrot.lane.b32.xlu0 %v1321, 64
    %v1323 = vpop.permute.xlu0 %1322
    %v1325 = vmul.f32 %v1309, %v1323
    %1327 = vrot.lane.b32.xlu0 %v1325, 64
    %v1328 = vpop.permute.xlu0 %1327
    %v1330 = vadd.f32 %v1315, %v1328
    %v1331 = vpack.c.bf16 %v1330, %v1330
    %v1333 = vrot.slane %v1331, 2
    %v1335 = vsel %vm276, %v1333, 0
    %1337 = vmatprep.subr.bf16.mxu0 %v1086
    %1338 = vmatpush1.bf16.msra.mxu0 %v1085
    %1339 = vmatprep.subr.bf16.mxu0 %v1088
    %1340 = vmatpush1.bf16.msra.mxu0 %v1087
    %1341 = vmatprep.subr.bf16.mxu0 %v1090
    %1342 = vmatpush1.bf16.msra.mxu0 %v1089
    %1343 = vmatprep.subr.bf16.mxu0 %v1092
    %1344 = vmatpush1.bf16.msra.mxu0 %v1091
    %1345 = vmatprep.subr.bf16.mxu0 0
    %1346 = vmatpush1.bf16.msra.mxu0 0
    %1347 = vmatprep.subr.bf16.mxu0 0
    %1348 = vmatpush1.bf16.msra.mxu0 0
    %1349 = vmatprep.subr.bf16.mxu0 0
    %1350 = vmatpush1.bf16.msra.mxu0 0
    %1351 = vmatprep.subr.bf16.mxu0 0
    %1352 = vmatpush1.bf16.msra.mxu0 0
    %1353 = vmatprep.subr.bf16.mxu0 0
    %1354 = vmatpush1.bf16.msra.mxu0 0
    %1355 = vmatprep.subr.bf16.mxu0 0
    %1356 = vmatpush1.bf16.msra.mxu0 0
    %1357 = vmatprep.subr.bf16.mxu0 0
    %1358 = vmatpush1.bf16.msra.mxu0 0
    %1359 = vmatprep.subr.bf16.mxu0 0
    %1360 = vmatpush1.bf16.msra.mxu0 0
    %1361 = vmatprep.subr.bf16.mxu0 0
    %1362 = vmatpush1.bf16.msra.mxu0 0
    %1363 = vmatprep.subr.bf16.mxu0 0
    %1364 = vmatpush1.bf16.msra.mxu0 0
    %1365 = vmatprep.subr.bf16.mxu0 0
    %1366 = vmatpush1.bf16.msra.mxu0 0
    %1367 = vmatprep.subr.bf16.mxu0 0
    %1368 = vmatpush1.bf16.msra.mxu0 0
    %1369 = vmatprep.mubr.bf16.mxu0 0
    %1370 = vmatmul.mubr.bf16.gmra.mrb[0].mxu0 %v1335
    %v1371 = vpop.f32.mrb[0].mxu0
    %v1372 = vadd.f32 %v1054, %v1371
    %v1373 = vpop.f32.mrb[0].mxu0
    %v1374 = vadd.f32 %v1058, %v1373
    %v1375 = vpop.f32.mrb[0].mxu0
    %v1376 = vpop.f32.mrb[0].mxu0
    %1377 = vdwg.mxu0
    %v1379 = vrot.slane %v1372, 2
    %v1381 = vadd.f32 %v1220, %v1379
    %v1382 = vxor.u32 %v1381, 2147483648
    %v1383 = vmul.f32 %v1382, 1.442695
    %v1384 = vpow.pop %v1383
    %v1385 = vadd.f32 %v1384, 1.0
    %v1386 = vrcp.pop %v1385
    %v1387 = vmul.f32 1.0, %v1386
    %v1389 = vrot.slane %v1374, 2
    %v1391 = vmul.f32 %v1387, %v1389
    %v1392 = vadd.f32 %v1221, %v1391
    %v1393 = vtanh.pop %v1392
    %v1395 = vrot.slane %v1393, 2
    %v1397 = vsub.f32 %v1330, %v1395
    %v1399 = vrot.slane %v1397, 6
    %1400 = vrot.lane.b32.xlu0 %v1399, 64
    %v1401 = vpop.permute.xlu0 %1400
    %v1403 = vmul.f32 %v1387, %v1401
    %1405 = vrot.lane.b32.xlu0 %v1403, 64
    %v1406 = vpop.permute.xlu0 %1405
    %v1408 = vadd.f32 %v1393, %v1406
    %v1409 = vpack.c.bf16 %v1408, %v1408
    %v1411 = vrot.slane %v1409, 3
    %v1413 = vsel %vm276, %v1411, 0
    %1415 = vmatprep.subr.bf16.mxu0 %v1086
    %1416 = vmatpush1.bf16.msra.mxu0 %v1085
    %1417 = vmatprep.subr.bf16.mxu0 %v1088
    %1418 = vmatpush1.bf16.msra.mxu0 %v1087
    %1419 = vmatprep.subr.bf16.mxu0 %v1090
    %1420 = vmatpush1.bf16.msra.mxu0 %v1089
    %1421 = vmatprep.subr.bf16.mxu0 %v1092
    %1422 = vmatpush1.bf16.msra.mxu0 %v1091
    %1423 = vmatprep.subr.bf16.mxu0 0
    %1424 = vmatpush1.bf16.msra.mxu0 0
    %1425 = vmatprep.subr.bf16.mxu0 0
    %1426 = vmatpush1.bf16.msra.mxu0 0
    %1427 = vmatprep.subr.bf16.mxu0 0
    %1428 = vmatpush1.bf16.msra.mxu0 0
    %1429 = vmatprep.subr.bf16.mxu0 0
    %1430 = vmatpush1.bf16.msra.mxu0 0
    %1431 = vmatprep.subr.bf16.mxu0 0
    %1432 = vmatpush1.bf16.msra.mxu0 0
    %1433 = vmatprep.subr.bf16.mxu0 0
    %1434 = vmatpush1.bf16.msra.mxu0 0
    %1435 = vmatprep.subr.bf16.mxu0 0
    %1436 = vmatpush1.bf16.msra.mxu0 0
    %1437 = vmatprep.subr.bf16.mxu0 0
    %1438 = vmatpush1.bf16.msra.mxu0 0
    %1439 = vmatprep.subr.bf16.mxu0 0
    %1440 = vmatpush1.bf16.msra.mxu0 0
    %1441 = vmatprep.subr.bf16.mxu0 0
    %1442 = vmatpush1.bf16.msra.mxu0 0
    %1443 = vmatprep.subr.bf16.mxu0 0
    %1444 = vmatpush1.bf16.msra.mxu0 0
    %1445 = vmatprep.subr.bf16.mxu0 0
    %1446 = vmatpush1.bf16.msra.mxu0 0
    %1447 = vmatprep.mubr.bf16.mxu0 0
    %1448 = vmatmul.mubr.bf16.gmra.mrb[0].mxu0 %v1413
    %v1449 = vpop.f32.mrb[0].mxu0
    %v1450 = vadd.f32 %v1054, %v1449
    %v1451 = vpop.f32.mrb[0].mxu0
    %v1452 = vadd.f32 %v1058, %v1451
    %v1453 = vpop.f32.mrb[0].mxu0
    %v1454 = vpop.f32.mrb[0].mxu0
    %1455 = vdwg.mxu0
    %v1458 = vrot.slane %v1032, 6
    %v1459 = vrot.slane %v1034, 6
    %v1462 = vsel %vm90, %v1036, %v1458
    %v1463 = vsel %vm91, %v1038, %v1459
    %v1464 = vadd.f32 %v1462, %v1450
    %v1465 = vxor.u32 %v1464, 2147483648
    %v1466 = vmul.f32 %v1465, 1.442695
    %v1467 = vpow.pop %v1466
    %v1468 = vadd.f32 %v1467, 1.0
    %v1469 = vrcp.pop %v1468
    %v1470 = vmul.f32 1.0, %v1469
    %v1471 = vmul.f32 %v1470, %v1452
    %v1472 = vadd.f32 %v1463, %v1471
    %v1473 = vtanh.pop %v1472
    %v1475 = vrot.slane %v1473, 2
    %v1477 = vsub.f32 %v1408, %v1475
    %v1479 = vrot.slane %v1477, 6
    %1480 = vrot.lane.b32.xlu0 %v1479, 64
    %v1481 = vpop.permute.xlu0 %1480
    %v1483 = vmul.f32 %v1470, %v1481
    %1485 = vrot.lane.b32.xlu0 %v1483, 64
    %v1486 = vpop.permute.xlu0 %1485
    %v1488 = vadd.f32 %v1473, %v1486
    %v1489 = vpack.c.bf16 %v1488, %v1488
    %v1491 = vsel %vm276, %v1489, 0
    %1493 = vmatprep.subr.bf16.mxu0 %v1086
    %1494 = vmatpush1.bf16.msra.mxu0 %v1085
    %1495 = vmatprep.subr.bf16.mxu0 %v1088
    %1496 = vmatpush1.bf16.msra.mxu0 %v1087
    %1497 = vmatprep.subr.bf16.mxu0 %v1090
    %1498 = vmatpush1.bf16.msra.mxu0 %v1089
    %1499 = vmatprep.subr.bf16.mxu0 %v1092
    %1500 = vmatpush1.bf16.msra.mxu0 %v1091
    %1501 = vmatprep.subr.bf16.mxu0 0
    %1502 = vmatpush1.bf16.msra.mxu0 0
    %1503 = vmatprep.subr.bf16.mxu0 0
    %1504 = vmatpush1.bf16.msra.mxu0 0
    %1505 = vmatprep.subr.bf16.mxu0 0
    %1506 = vmatpush1.bf16.msra.mxu0 0
    %1507 = vmatprep.subr.bf16.mxu0 0
    %1508 = vmatpush1.bf16.msra.mxu0 0
    %1509 = vmatprep.subr.bf16.mxu0 0
    %1510 = vmatpush1.bf16.msra.mxu0 0
    %1511 = vmatprep.subr.bf16.mxu0 0
    %1512 = vmatpush1.bf16.msra.mxu0 0
    %1513 = vmatprep.subr.bf16.mxu0 0
    %1514 = vmatpush1.bf16.msra.mxu0 0
    %1515 = vmatprep.subr.bf16.mxu0 0
    %1516 = vmatpush1.bf16.msra.mxu0 0
    %1517 = vmatprep.subr.bf16.mxu0 0
    %1518 = vmatpush1.bf16.msra.mxu0 0
    %1519 = vmatprep.subr.bf16.mxu0 0
    %1520 = vmatpush1.bf16.msra.mxu0 0
    %1521 = vmatprep.subr.bf16.mxu0 0
    %1522 = vmatpush1.bf16.msra.mxu0 0
    %1523 = vmatprep.subr.bf16.mxu0 0
    %1524 = vmatpush1.bf16.msra.mxu0 0
    %1525 = vmatprep.mubr.bf16.mxu0 0
    %1526 = vmatmul.mubr.bf16.gmra.mrb[0].mxu0 %v1491
    %v1527 = vpop.f32.mrb[0].mxu0
    %v1528 = vadd.f32 %v1054, %v1527
    %v1529 = vpop.f32.mrb[0].mxu0
    %v1530 = vadd.f32 %v1058, %v1529
    %v1531 = vpop.f32.mrb[0].mxu0
    %v1532 = vpop.f32.mrb[0].mxu0
    %1533 = vdwg.mxu0
    %v1534 = vrot.slane %v1032, 2
    %v1535 = vrot.slane %v1034, 2
    %v1538 = vsel %vm90, %v1036, %v1534
    %v1539 = vsel %vm91, %v1038, %v1535
    %v1541 = vrot.slane %v1528, 6
    %v1543 = vadd.f32 %v1538, %v1541
    %v1544 = vxor.u32 %v1543, 2147483648
    %v1545 = vmul.f32 %v1544, 1.442695
    %v1546 = vpow.pop %v1545
    %v1547 = vadd.f32 %v1546, 1.0
    %v1548 = vrcp.pop %v1547
    %v1549 = vmul.f32 1.0, %v1548
    %v1551 = vrot.slane %v1530, 6
    %v1553 = vmul.f32 %v1549, %v1551
    %v1554 = vadd.f32 %v1539, %v1553
    %v1555 = vtanh.pop %v1554
    %v1557 = vrot.slane %v1555, 2
    %v1559 = vsub.f32 %v1488, %v1557
    %v1561 = vrot.slane %v1559, 6
    %1562 = vrot.lane.b32.xlu0 %v1561, 64
    %v1563 = vpop.permute.xlu0 %1562
    %v1565 = vmul.f32 %v1549, %v1563
    %1567 = vrot.lane.b32.xlu0 %v1565, 64
    %v1568 = vpop.permute.xlu0 %1567
    %v1570 = vadd.f32 %v1555, %v1568
    %v1571 = vpack.c.bf16 %v1570, %v1570
    %v1573 = vrot.slane %v1571, 1
    %v1575 = vsel %vm276, %v1573, 0
    %1577 = vmatprep.subr.bf16.mxu0 %v1086
    %1578 = vmatpush1.bf16.msra.mxu0 %v1085
    %1579 = vmatprep.subr.bf16.mxu0 %v1088
    %1580 = vmatpush1.bf16.msra.mxu0 %v1087
    %1581 = vmatprep.subr.bf16.mxu0 %v1090
    %1582 = vmatpush1.bf16.msra.mxu0 %v1089
    %1583 = vmatprep.subr.bf16.mxu0 %v1092
    %1584 = vmatpush1.bf16.msra.mxu0 %v1091
    %1585 = vmatprep.subr.bf16.mxu0 0
    %1586 = vmatpush1.bf16.msra.mxu0 0
    %1587 = vmatprep.subr.bf16.mxu0 0
    %1588 = vmatpush1.bf16.msra.mxu0 0
    %1589 = vmatprep.subr.bf16.mxu0 0
    %1590 = vmatpush1.bf16.msra.mxu0 0
    %1591 = vmatprep.subr.bf16.mxu0 0
    %1592 = vmatpush1.bf16.msra.mxu0 0
    %1593 = vmatprep.subr.bf16.mxu0 0
    %1594 = vmatpush1.bf16.msra.mxu0 0
    %1595 = vmatprep.subr.bf16.mxu0 0
    %1596 = vmatpush1.bf16.msra.mxu0 0
    %1597 = vmatprep.subr.bf16.mxu0 0
    %1598 = vmatpush1.bf16.msra.mxu0 0
    %1599 = vmatprep.subr.bf16.mxu0 0
    %1600 = vmatpush1.bf16.msra.mxu0 0
    %1601 = vmatprep.subr.bf16.mxu0 0
    %1602 = vmatpush1.bf16.msra.mxu0 0
    %1603 = vmatprep.subr.bf16.mxu0 0
    %1604 = vmatpush1.bf16.msra.mxu0 0
    %1605 = vmatprep.subr.bf16.mxu0 0
    %1606 = vmatpush1.bf16.msra.mxu0 0
    %1607 = vmatprep.subr.bf16.mxu0 0
    %1608 = vmatpush1.bf16.msra.mxu0 0
    %1609 = vmatprep.mubr.bf16.mxu0 0
    %1610 = vmatmul.mubr.bf16.gmra.mrb[0].mxu0 %v1575
    %v1611 = vpop.f32.mrb[0].mxu0
    %v1612 = vadd.f32 %v1054, %v1611
    %v1613 = vpop.f32.mrb[0].mxu0
    %v1614 = vadd.f32 %v1058, %v1613
    %v1615 = vpop.f32.mrb[0].mxu0
    %v1616 = vpop.f32.mrb[0].mxu0
    %1617 = vdwg.mxu0
    %v1619 = vrot.slane %v1612, 4
    %v1621 = vadd.f32 %v1462, %v1619
    %v1622 = vxor.u32 %v1621, 2147483648
    %v1623 = vmul.f32 %v1622, 1.442695
    %v1624 = vpow.pop %v1623
    %v1625 = vadd.f32 %v1624, 1.0
    %v1626 = vrcp.pop %v1625
    %v1627 = vmul.f32 1.0, %v1626
    %v1629 = vrot.slane %v1614, 4
    %v1631 = vmul.f32 %v1627, %v1629
    %v1632 = vadd.f32 %v1463, %v1631
    %v1633 = vtanh.pop %v1632
    %v1635 = vrot.slane %v1633, 2
    %v1637 = vsub.f32 %v1570, %v1635
    %v1639 = vrot.slane %v1637, 6
    %1640 = vrot.lane.b32.xlu0 %v1639, 64
    %v1641 = vpop.permute.xlu0 %1640
    %v1643 = vmul.f32 %v1627, %v1641
    %1645 = vrot.lane.b32.xlu0 %v1643, 64
    %v1646 = vpop.permute.xlu0 %1645
    %v1648 = vadd.f32 %v1633, %v1646
    %v1649 = vpack.c.bf16 %v1648, %v1648
    %v1651 = vrot.slane %v1649, 2
    %v1653 = vsel %vm276, %v1651, 0
    %1655 = vmatprep.subr.bf16.mxu0 %v1086
    %1656 = vmatpush1.bf16.msra.mxu0 %v1085
    %1657 = vmatprep.subr.bf16.mxu0 %v1088
    %1658 = vmatpush1.bf16.msra.mxu0 %v1087
    %1659 = vmatprep.subr.bf16.mxu0 %v1090
    %1660 = vmatpush1.bf16.msra.mxu0 %v1089
    %1661 = vmatprep.subr.bf16.mxu0 %v1092
    %1662 = vmatpush1.bf16.msra.mxu0 %v1091
    %1663 = vmatprep.subr.bf16.mxu0 0
    %1664 = vmatpush1.bf16.msra.mxu0 0
    %1665 = vmatprep.subr.bf16.mxu0 0
    %1666 = vmatpush1.bf16.msra.mxu0 0
    %1667 = vmatprep.subr.bf16.mxu0 0
    %1668 = vmatpush1.bf16.msra.mxu0 0
    %1669 = vmatprep.subr.bf16.mxu0 0
    %1670 = vmatpush1.bf16.msra.mxu0 0
    %1671 = vmatprep.subr.bf16.mxu0 0
    %1672 = vmatpush1.bf16.msra.mxu0 0
    %1673 = vmatprep.subr.bf16.mxu0 0
    %1674 = vmatpush1.bf16.msra.mxu0 0
    %1675 = vmatprep.subr.bf16.mxu0 0
    %1676 = vmatpush1.bf16.msra.mxu0 0
    %1677 = vmatprep.subr.bf16.mxu0 0
    %1678 = vmatpush1.bf16.msra.mxu0 0
    %1679 = vmatprep.subr.bf16.mxu0 0
    %1680 = vmatpush1.bf16.msra.mxu0 0
    %1681 = vmatprep.subr.bf16.mxu0 0
    %1682 = vmatpush1.bf16.msra.mxu0 0
    %1683 = vmatprep.subr.bf16.mxu0 0
    %1684 = vmatpush1.bf16.msra.mxu0 0
    %1685 = vmatprep.subr.bf16.mxu0 0
    %1686 = vmatpush1.bf16.msra.mxu0 0
    %1687 = vmatprep.mubr.bf16.mxu0 0
    %1688 = vmatmul.mubr.bf16.gmra.mrb[0].mxu0 %v1653
    %v1689 = vpop.f32.mrb[0].mxu0
    %v1690 = vadd.f32 %v1054, %v1689
    %v1691 = vpop.f32.mrb[0].mxu0
    %v1692 = vadd.f32 %v1058, %v1691
    %v1693 = vpop.f32.mrb[0].mxu0
    %v1694 = vpop.f32.mrb[0].mxu0
    %1695 = vdwg.mxu0
    %v1697 = vrot.slane %v1690, 2
    %v1699 = vadd.f32 %v1538, %v1697
    %v1700 = vxor.u32 %v1699, 2147483648
    %v1701 = vmul.f32 %v1700, 1.442695
    %v1702 = vpow.pop %v1701
    %v1703 = vadd.f32 %v1702, 1.0
    %v1704 = vrcp.pop %v1703
    %v1705 = vmul.f32 1.0, %v1704
    %v1707 = vrot.slane %v1692, 2
    %v1709 = vmul.f32 %v1705, %v1707
    %v1710 = vadd.f32 %v1539, %v1709
    %v1711 = vtanh.pop %v1710
    %v1713 = vrot.slane %v1711, 2
    %v1715 = vsub.f32 %v1648, %v1713
    %v1717 = vrot.slane %v1715, 6
    %1718 = vrot.lane.b32.xlu0 %v1717, 64
    %v1719 = vpop.permute.xlu0 %1718
    %v1721 = vmul.f32 %v1705, %v1719
    %1723 = vrot.lane.b32.xlu0 %v1721, 64
    %v1724 = vpop.permute.xlu0 %1723
    %v1726 = vadd.f32 %v1711, %v1724
    %1728 = vrot.lane.b32.xlu0 %v1726, 64
    %v1729 = vpop.permute.xlu0 %1728
    %v1731 = vsel %vm276, %v927, %v1729
    %v1732 = vld [vmem:[#allocation8 + $0xd0] sm:$0xf]
    %v1733 = vld [vmem:[#allocation8 + $0xd8] sm:$0xf]
    %v1734 = vld [vmem:[#allocation8 + $0xe0] sm:$0xf]
    %v1735 = vld [vmem:[#allocation8 + $0xe8] sm:$0xf]
    %v1736 = vld [vmem:[#allocation8 + $0xf0] sm:$0xf]
    %v1737 = vld [vmem:[#allocation8 + $0xf8] sm:$0xf]
    %v1738 = vld [vmem:[#allocation8 + $0x100] sm:$0xf]
    %v1739 = vld [vmem:[#allocation8 + $0x108] sm:$0xf]
    %v1740 = vld [vmem:[#allocation8 + $0x110] sm:$0xf]
    %v1741 = vld [vmem:[#allocation8 + $0x118] sm:$0xf]
    %v1742 = vld [vmem:[#allocation8 + $0x120] sm:$0xf]
    %v1743 = vld [vmem:[#allocation8 + $0x128] sm:$0xf]
    %v1744 = vld [vmem:[#allocation8 + $0x130] sm:$0xf]
    %v1745 = vld [vmem:[#allocation8 + $0x138] sm:$0xf]
    %v1746 = vld [vmem:[#allocation8 + $0x140] sm:$0xf]
    %v1747 = vld [vmem:[#allocation8 + $0x148] sm:$0xf]
    %v1748 = vpack.c.bf16 %v1731, %v1731
    %v1749 = vld [vmem:[#allocation10 + $0x40] ss:$0 sm:$0xff]
    %v1751 = vrot.slane %v1748, 3
    %v1769 = vunpack.c.l.b16 %v1732
    %v1770 = vunpack.c.l.b16 %v1733
    %v1771 = vunpack.c.l.b16 %v1734
    %v1772 = vunpack.c.l.b16 %v1735
    %v1773 = vunpack.c.l.b16 %v1736
    %v1774 = vunpack.c.l.b16 %v1737
    %v1775 = vunpack.c.l.b16 %v1738
    %v1776 = vunpack.c.l.b16 %v1739
    %v1777 = vunpack.c.l.b16 %v1740
    %v1778 = vunpack.c.l.b16 %v1741
    %v1779 = vunpack.c.l.b16 %v1742
    %v1780 = vunpack.c.l.b16 %v1743
    %v1781 = vunpack.c.l.b16 %v1744
    %v1782 = vunpack.c.l.b16 %v1745
    %v1783 = vunpack.c.l.b16 %v1746
    %v1784 = vunpack.c.l.b16 %v1747
    %v1785 = vpack.c.b16 %v1770, %v1769
    %v1786 = vpack.c.b16 %v1772, %v1771
    %v1787 = vpack.c.b16 %v1774, %v1773
    %v1788 = vpack.c.b16 %v1776, %v1775
    %v1789 = vpack.c.b16 %v1778, %v1777
    %v1790 = vpack.c.b16 %v1780, %v1779
    %v1791 = vpack.c.b16 %v1782, %v1781
    %v1792 = vpack.c.b16 %v1784, %v1783
    %1801 = vmatprep.subr.bf16.mxu0 0
    %1802 = vmatpush1.bf16.msra.mxu0 %v1785
    %1803 = vmatprep.subr.bf16.mxu0 0
    %1804 = vmatpush1.bf16.msra.mxu0 %v1786
    %1805 = vmatprep.subr.bf16.mxu0 0
    %1806 = vmatpush1.bf16.msra.mxu0 %v1787
    %1807 = vmatprep.subr.bf16.mxu0 0
    %1808 = vmatpush1.bf16.msra.mxu0 %v1788
    %1809 = vmatprep.subr.bf16.mxu0 0
    %1810 = vmatpush1.bf16.msra.mxu0 %v1789
    %1811 = vmatprep.subr.bf16.mxu0 0
    %1812 = vmatpush1.bf16.msra.mxu0 %v1790
    %1813 = vmatprep.subr.bf16.mxu0 0
    %1814 = vmatpush1.bf16.msra.mxu0 %v1791
    %1815 = vmatprep.subr.bf16.mxu0 0
    %1816 = vmatpush1.bf16.msra.mxu0 %v1792
    %1817 = vmatprep.subr.bf16.mxu0 0
    %1818 = vmatpush1.bf16.msra.mxu0 0
    %1819 = vmatprep.subr.bf16.mxu0 0
    %1820 = vmatpush1.bf16.msra.mxu0 0
    %1821 = vmatprep.subr.bf16.mxu0 0
    %1822 = vmatpush1.bf16.msra.mxu0 0
    %1823 = vmatprep.subr.bf16.mxu0 0
    %1824 = vmatpush1.bf16.msra.mxu0 0
    %1825 = vmatprep.subr.bf16.mxu0 0
    %1826 = vmatpush1.bf16.msra.mxu0 0
    %1827 = vmatprep.subr.bf16.mxu0 0
    %1828 = vmatpush1.bf16.msra.mxu0 0
    %1829 = vmatprep.subr.bf16.mxu0 0
    %1830 = vmatpush1.bf16.msra.mxu0 0
    %1831 = vmatprep.subr.bf16.mxu0 0
    %1832 = vmatpush1.bf16.msra.mxu0 0
    %1833 = vmatprep.mubr.bf16.mxu0 0
    %1834 = vmatmul.mubr.bf16.gmra.mrb[0].mxu0 %v1751
    %v1835 = vpop.f32.mrb[0].mxu0
    %v1836 = vadd.f32 %v1749, %v1835
    %v1837 = vpop.f32.mrb[0].mxu0
    %v1838 = vpop.f32.mrb[0].mxu0
    %v1839 = vpop.f32.mrb[0].mxu0
    %1840 = vdwg.mxu0
    %vm1841 = vcmask 123904
    %1842 = vst.msk [vmem:[#allocation11] sm:$0x3] %vm1841, %v1836
    %1844 = vrot.lane.b32.xlu0 %v1836, 112
    %v1845 = vpop.permute.xlu0 %1844
    %1847 = vst.msk [vmem:[#allocation12] sm:$0x3] %vm1841, %v1845
    %v1848 = vld [vmem:[#allocation8 + $0x150] sm:$0xf]
    %v1849 = vld [vmem:[#allocation8 + $0x158] sm:$0xf]
    %v1850 = vpack.c.bf16 %v1836, %v1836
    %v1851 = vld [vmem:[#allocation10 + $0x50] ss:$0 sm:$0xff]
    %v1854 = vunpack.c.l.b16 %v1848
    %v1855 = vunpack.c.l.b16 %v1849
    %v1856 = vpack.c.b16 %v1855, %v1854
    %vm1858 = vcmask 130048
    %v1860 = vsel %vm1858, %v1850, 0
    %1862 = vmatprep.subr.bf16.mxu0 0
    %1863 = vmatpush1.bf16.msra.mxu0 %v1856
    %1864 = vmatprep.subr.bf16.mxu0 0
    %1865 = vmatpush1.bf16.msra.mxu0 0
    %1866 = vmatprep.subr.bf16.mxu0 0
    %1867 = vmatpush1.bf16.msra.mxu0 0
    %1868 = vmatprep.subr.bf16.mxu0 0
    %1869 = vmatpush1.bf16.msra.mxu0 0
    %1870 = vmatprep.subr.bf16.mxu0 0
    %1871 = vmatpush1.bf16.msra.mxu0 0
    %1872 = vmatprep.subr.bf16.mxu0 0
    %1873 = vmatpush1.bf16.msra.mxu0 0
    %1874 = vmatprep.subr.bf16.mxu0 0
    %1875 = vmatpush1.bf16.msra.mxu0 0
    %1876 = vmatprep.subr.bf16.mxu0 0
    %1877 = vmatpush1.bf16.msra.mxu0 0
    %1878 = vmatprep.subr.bf16.mxu0 0
    %1879 = vmatpush1.bf16.msra.mxu0 0
    %1880 = vmatprep.subr.bf16.mxu0 0
    %1881 = vmatpush1.bf16.msra.mxu0 0
    %1882 = vmatprep.subr.bf16.mxu0 0
    %1883 = vmatpush1.bf16.msra.mxu0 0
    %1884 = vmatprep.subr.bf16.mxu0 0
    %1885 = vmatpush1.bf16.msra.mxu0 0
    %1886 = vmatprep.subr.bf16.mxu0 0
    %1887 = vmatpush1.bf16.msra.mxu0 0
    %1888 = vmatprep.subr.bf16.mxu0 0
    %1889 = vmatpush1.bf16.msra.mxu0 0
    %1890 = vmatprep.subr.bf16.mxu0 0
    %1891 = vmatpush1.bf16.msra.mxu0 0
    %1892 = vmatprep.subr.bf16.mxu0 0
    %1893 = vmatpush1.bf16.msra.mxu0 0
    %1894 = vmatprep.mubr.bf16.mxu0 0
    %1895 = vmatmul.mubr.bf16.gmra.mrb[0].mxu0 %v1860
    %v1896 = vpop.f32.mrb[0].mxu0
    %v1897 = vadd.f32 %v1851, %v1896
    %v1898 = vpop.f32.mrb[0].mxu0
    %v1899 = vpop.f32.mrb[0].mxu0
    %v1900 = vpop.f32.mrb[0].mxu0
    %1901 = vdwg.mxu0
    %v1903 = vrot.slane %v1897, 7
    %1904 = vrot.lane.b32.xlu0 %v1903, 96
    %v1905 = vpop.permute.xlu0 %1904
    %vm1907 = vcmask 1040384
    %v1908 = vsel %vm1907, %v1897, %v1905
    %v1909 = vrot.slane %v1897, 1
    %1911 = vrot.lane.b32.xlu0 %v1897, 96
    %v1912 = vpop.permute.xlu0 %1911
    %v1914 = vsel %vm1907, %v1909, %v1912
    %1916 = vrot.lane.b32.xlu0 %v1914, 32
    %v1917 = vpop.permute.xlu0 %1916
    %vm1919 = vcmask 261120
    %v1920 = vsel %vm1919, %v1908, %v1917
    %1922 = vrot.lane.b32.xlu0 %v1908, 64
    %v1923 = vpop.permute.xlu0 %1922
    %1925 = vrot.lane.b32.xlu0 %v1914, 96
    %v1926 = vpop.permute.xlu0 %1925
    %v1928 = vsel %vm1919, %v1923, %v1926
    %v1929 = vld [vmem:[#allocation8 + $0x160] sm:$0xff]
    %v1930 = vld [vmem:[#allocation8 + $0x168] sm:$0xff]
    %s1931 = scalar_lea.vmem [#allocation10], 96
    %v1932 = vld [vmem:[%s1931] ss:$8 sm:$0x3]
    %v1934 = vlaneseq
    %v1935 = vshrl.u32 %v1934, 7
    %v1936 = vsub.s32 0, %v1935
    %v1937 = vrot.slane %v1932, %v1936
    %v1938 = vlaneseq
    %v1939 = vshrl.u32 %v1938, 7
    %v1940 = vsub.s32 1, %v1939
    %v1941 = vrot.slane %v1932, %v1940
    %v1946 = vunpack.c.l.b16 %v1929
    %v1947 = vunpack.c.h.b16 %v1929
    %v1948 = vunpack.c.l.b16 %v1930
    %v1949 = vunpack.c.h.b16 %v1930
    %v1950 = vpack.c.b16 %v1948, %v1946
    %v1951 = vpack.c.b16 %v1949, %v1947
    %1954 = vmatprep.subr.bf16.mxu0 %v1951
    %1955 = vmatpush1.bf16.msra.mxu0 %v1950
    %1956 = vmatprep.subr.bf16.mxu0 0
    %1957 = vmatpush1.bf16.msra.mxu0 0
    %1958 = vmatprep.subr.bf16.mxu0 0
    %1959 = vmatpush1.bf16.msra.mxu0 0
    %1960 = vmatprep.subr.bf16.mxu0 0
    %1961 = vmatpush1.bf16.msra.mxu0 0
    %1962 = vmatprep.subr.bf16.mxu0 0
    %1963 = vmatpush1.bf16.msra.mxu0 0
    %1964 = vmatprep.subr.bf16.mxu0 0
    %1965 = vmatpush1.bf16.msra.mxu0 0
    %1966 = vmatprep.subr.bf16.mxu0 0
    %1967 = vmatpush1.bf16.msra.mxu0 0
    %1968 = vmatprep.subr.bf16.mxu0 0
    %1969 = vmatpush1.bf16.msra.mxu0 0
    %1970 = vmatprep.subr.bf16.mxu0 0
    %1971 = vmatpush1.bf16.msra.mxu0 0
    %1972 = vmatprep.subr.bf16.mxu0 0
    %1973 = vmatpush1.bf16.msra.mxu0 0
    %1974 = vmatprep.subr.bf16.mxu0 0
    %1975 = vmatpush1.bf16.msra.mxu0 0
    %1976 = vmatprep.subr.bf16.mxu0 0
    %1977 = vmatpush1.bf16.msra.mxu0 0
    %1978 = vmatprep.subr.bf16.mxu0 0
    %1979 = vmatpush1.bf16.msra.mxu0 0
    %1980 = vmatprep.subr.bf16.mxu0 0
    %1981 = vmatpush1.bf16.msra.mxu0 0
    %1982 = vmatprep.subr.bf16.mxu0 0
    %1983 = vmatpush1.bf16.msra.mxu0 0
    %1984 = vmatprep.subr.bf16.mxu0 0
    %1985 = vmatpush1.bf16.msra.mxu0 0
    %1986 = vmatprep.mubr.bf16.mxu0 0
    %1987 = vmatmul.mubr.bf16.gmra.mrb[0].mxu0 %v1860
    %v1988 = vpop.f32.mrb[0].mxu0
    %v1989 = vadd.f32 %v1937, %v1988
    %v1990 = vpop.f32.mrb[0].mxu0
    %v1991 = vadd.f32 %v1941, %v1990
    %v1992 = vpop.f32.mrb[0].mxu0
    %v1993 = vpop.f32.mrb[0].mxu0
    %1994 = vdwg.mxu0
    %v1995 = vld [vmem:[#allocation8 + $0x170] sm:$0xff]
    %v1996 = vld [vmem:[#allocation8 + $0x178] sm:$0xff]
    %v1997 = vld [vmem:[#allocation8 + $0x180] sm:$0xff]
    %v1998 = vld [vmem:[#allocation8 + $0x188] sm:$0xff]
    %v1999 = vld [vmem:[#allocation8 + $0x190] sm:$0xff]
    %v2000 = vld [vmem:[#allocation8 + $0x198] sm:$0xff]
    %v2001 = vld [vmem:[#allocation8 + $0x1a0] sm:$0xff]
    %v2002 = vld [vmem:[#allocation8 + $0x1a8] sm:$0xff]
    %s2003 = scalar_lea.vmem [#allocation10], 112
    %v2004 = vld [vmem:[%s2003] ss:$8 sm:$0x3]
    %v2005 = vpack.c.bf16 %v1920, %v1920
    %v2007 = vlaneseq
    %v2008 = vshrl.u32 %v2007, 7
    %v2009 = vsub.s32 0, %v2008
    %v2010 = vrot.slane %v2004, %v2009
    %v2011 = vlaneseq
    %v2012 = vshrl.u32 %v2011, 7
    %v2013 = vsub.s32 1, %v2012
    %v2014 = vrot.slane %v2004, %v2013
    %v2025 = vunpack.c.l.b16 %v1995
    %v2026 = vunpack.c.h.b16 %v1995
    %v2027 = vunpack.c.l.b16 %v1996
    %v2028 = vunpack.c.h.b16 %v1996
    %v2029 = vunpack.c.l.b16 %v1997
    %v2030 = vunpack.c.h.b16 %v1997
    %v2031 = vunpack.c.l.b16 %v1998
    %v2032 = vunpack.c.h.b16 %v1998
    %v2033 = vunpack.c.l.b16 %v1999
    %v2034 = vunpack.c.h.b16 %v1999
    %v2035 = vunpack.c.l.b16 %v2000
    %v2036 = vunpack.c.h.b16 %v2000
    %v2037 = vunpack.c.l.b16 %v2001
    %v2038 = vunpack.c.h.b16 %v2001
    %v2039 = vunpack.c.l.b16 %v2002
    %v2040 = vunpack.c.h.b16 %v2002
    %v2041 = vpack.c.b16 %v2027, %v2025
    %v2042 = vpack.c.b16 %v2028, %v2026
    %v2043 = vpack.c.b16 %v2031, %v2029
    %v2044 = vpack.c.b16 %v2032, %v2030
    %v2045 = vpack.c.b16 %v2035, %v2033
    %v2046 = vpack.c.b16 %v2036, %v2034
    %v2047 = vpack.c.b16 %v2039, %v2037
    %v2048 = vpack.c.b16 %v2040, %v2038
    %v2058 = vsel %vm276, %v2005, 0
    %2060 = vmatprep.subr.bf16.mxu0 %v2042
    %2061 = vmatpush1.bf16.msra.mxu0 %v2041
    %2062 = vmatprep.subr.bf16.mxu0 %v2044
    %2063 = vmatpush1.bf16.msra.mxu0 %v2043
    %2064 = vmatprep.subr.bf16.mxu0 %v2046
    %2065 = vmatpush1.bf16.msra.mxu0 %v2045
    %2066 = vmatprep.subr.bf16.mxu0 %v2048
    %2067 = vmatpush1.bf16.msra.mxu0 %v2047
    %2068 = vmatprep.subr.bf16.mxu0 0
    %2069 = vmatpush1.bf16.msra.mxu0 0
    %2070 = vmatprep.subr.bf16.mxu0 0
    %2071 = vmatpush1.bf16.msra.mxu0 0
    %2072 = vmatprep.subr.bf16.mxu0 0
    %2073 = vmatpush1.bf16.msra.mxu0 0
    %2074 = vmatprep.subr.bf16.mxu0 0
    %2075 = vmatpush1.bf16.msra.mxu0 0
    %2076 = vmatprep.subr.bf16.mxu0 0
    %2077 = vmatpush1.bf16.msra.mxu0 0
    %2078 = vmatprep.subr.bf16.mxu0 0
    %2079 = vmatpush1.bf16.msra.mxu0 0
    %2080 = vmatprep.subr.bf16.mxu0 0
    %2081 = vmatpush1.bf16.msra.mxu0 0
    %2082 = vmatprep.subr.bf16.mxu0 0
    %2083 = vmatpush1.bf16.msra.mxu0 0
    %2084 = vmatprep.subr.bf16.mxu0 0
    %2085 = vmatpush1.bf16.msra.mxu0 0
    %2086 = vmatprep.subr.bf16.mxu0 0
    %2087 = vmatpush1.bf16.msra.mxu0 0
    %2088 = vmatprep.subr.bf16.mxu0 0
    %2089 = vmatpush1.bf16.msra.mxu0 0
    %2090 = vmatprep.subr.bf16.mxu0 0
    %2091 = vmatpush1.bf16.msra.mxu0 0
    %2092 = vmatprep.mubr.bf16.mxu0 0
    %2093 = vmatmul.mubr.bf16.gmra.mrb[0].mxu0 %v2058
    %v2094 = vpop.f32.mrb[0].mxu0
    %v2095 = vadd.f32 %v2010, %v2094
    %v2096 = vpop.f32.mrb[0].mxu0
    %v2097 = vadd.f32 %v2014, %v2096
    %v2098 = vpop.f32.mrb[0].mxu0
    %v2099 = vpop.f32.mrb[0].mxu0
    %2100 = vdwg.mxu0
    %v2101 = vadd.f32 %v1989, %v2095
    %v2102 = vxor.u32 %v2101, 2147483648
    %v2103 = vmul.f32 %v2102, 1.442695
    %v2104 = vpow.pop %v2103
    %v2105 = vadd.f32 %v2104, 1.0
    %v2106 = vrcp.pop %v2105
    %v2107 = vmul.f32 1.0, %v2106
    %v2108 = vmul.f32 %v2107, %v2097
    %v2109 = vadd.f32 %v1991, %v2108
    %v2110 = vtanh.pop %v2109
    %v2111 = vsub.f32 %v1920, %v2110
    %2113 = vrot.lane.b32.xlu0 %v2111, 64
    %v2114 = vpop.permute.xlu0 %2113
    %v2116 = vmul.f32 %v2107, %v2114
    %2118 = vrot.lane.b32.xlu0 %v2116, 64
    %v2119 = vpop.permute.xlu0 %2118
    %v2121 = vadd.f32 %v2110, %v2119
    %2122 = vst.msk [vmem:[#allocation3] sm:$0x3] %vm350, %v2121
    %2123 = vst.msk [vmem:[#allocation3 + $0xe] sm:$0x3] %vm352, %v2121
    %v2124 = vpack.c.bf16 %v2121, %v2121
    %v2126 = vsel %vm276, %v2124, 0
    %2128 = vmatprep.subr.bf16.mxu0 %v2042
    %2129 = vmatpush1.bf16.msra.mxu0 %v2041
    %2130 = vmatprep.subr.bf16.mxu0 %v2044
    %2131 = vmatpush1.bf16.msra.mxu0 %v2043
    %2132 = vmatprep.subr.bf16.mxu0 %v2046
    %2133 = vmatpush1.bf16.msra.mxu0 %v2045
    %2134 = vmatprep.subr.bf16.mxu0 %v2048
    %2135 = vmatpush1.bf16.msra.mxu0 %v2047
    %2136 = vmatprep.subr.bf16.mxu0 0
    %2137 = vmatpush1.bf16.msra.mxu0 0
    %2138 = vmatprep.subr.bf16.mxu0 0
    %2139 = vmatpush1.bf16.msra.mxu0 0
    %2140 = vmatprep.subr.bf16.mxu0 0
    %2141 = vmatpush1.bf16.msra.mxu0 0
    %2142 = vmatprep.subr.bf16.mxu0 0
    %2143 = vmatpush1.bf16.msra.mxu0 0
    %2144 = vmatprep.subr.bf16.mxu0 0
    %2145 = vmatpush1.bf16.msra.mxu0 0
    %2146 = vmatprep.subr.bf16.mxu0 0
    %2147 = vmatpush1.bf16.msra.mxu0 0
    %2148 = vmatprep.subr.bf16.mxu0 0
    %2149 = vmatpush1.bf16.msra.mxu0 0
    %2150 = vmatprep.subr.bf16.mxu0 0
    %2151 = vmatpush1.bf16.msra.mxu0 0
    %2152 = vmatprep.subr.bf16.mxu0 0
    %2153 = vmatpush1.bf16.msra.mxu0 0
    %2154 = vmatprep.subr.bf16.mxu0 0
    %2155 = vmatpush1.bf16.msra.mxu0 0
    %2156 = vmatprep.subr.bf16.mxu0 0
    %2157 = vmatpush1.bf16.msra.mxu0 0
    %2158 = vmatprep.subr.bf16.mxu0 0
    %2159 = vmatpush1.bf16.msra.mxu0 0
    %2160 = vmatprep.mubr.bf16.mxu0 0
    %2161 = vmatmul.mubr.bf16.gmra.mrb[0].mxu0 %v2126
    %v2162 = vpop.f32.mrb[0].mxu0
    %v2163 = vadd.f32 %v2010, %v2162
    %v2164 = vpop.f32.mrb[0].mxu0
    %v2165 = vadd.f32 %v2014, %v2164
    %v2166 = vpop.f32.mrb[0].mxu0
    %v2167 = vpop.f32.mrb[0].mxu0
    %2168 = vdwg.mxu0
    %v2169 = vadd.f32 %v1989, %v2163
    %v2170 = vxor.u32 %v2169, 2147483648
    %v2171 = vmul.f32 %v2170, 1.442695
    %v2172 = vpow.pop %v2171
    %v2173 = vadd.f32 %v2172, 1.0
    %v2174 = vrcp.pop %v2173
    %v2175 = vmul.f32 1.0, %v2174
    %v2176 = vmul.f32 %v2175, %v2165
    %v2177 = vadd.f32 %v1991, %v2176
    %v2178 = vtanh.pop %v2177
    %v2179 = vsub.f32 %v2121, %v2178
    %2181 = vrot.lane.b32.xlu0 %v2179, 64
    %v2182 = vpop.permute.xlu0 %2181
    %v2184 = vmul.f32 %v2175, %v2182
    %2186 = vrot.lane.b32.xlu0 %v2184, 64
    %v2187 = vpop.permute.xlu0 %2186
    %v2189 = vadd.f32 %v2178, %v2187
    %2190 = vst.msk [vmem:[#allocation3 + $0x2] sm:$0x3] %vm350, %v2189
    %2191 = vst.msk [vmem:[#allocation3 + $0xc] sm:$0x3] %vm352, %v2189
    %v2192 = vpack.c.bf16 %v2189, %v2189
    %v2194 = vsel %vm276, %v2192, 0
    %2196 = vmatprep.subr.bf16.mxu0 %v2042
    %2197 = vmatpush1.bf16.msra.mxu0 %v2041
    %2198 = vmatprep.subr.bf16.mxu0 %v2044
    %2199 = vmatpush1.bf16.msra.mxu0 %v2043
    %2200 = vmatprep.subr.bf16.mxu0 %v2046
    %2201 = vmatpush1.bf16.msra.mxu0 %v2045
    %2202 = vmatprep.subr.bf16.mxu0 %v2048
    %2203 = vmatpush1.bf16.msra.mxu0 %v2047
    %2204 = vmatprep.subr.bf16.mxu0 0
    %2205 = vmatpush1.bf16.msra.mxu0 0
    %2206 = vmatprep.subr.bf16.mxu0 0
    %2207 = vmatpush1.bf16.msra.mxu0 0
    %2208 = vmatprep.subr.bf16.mxu0 0
    %2209 = vmatpush1.bf16.msra.mxu0 0
    %2210 = vmatprep.subr.bf16.mxu0 0
    %2211 = vmatpush1.bf16.msra.mxu0 0
    %2212 = vmatprep.subr.bf16.mxu0 0
    %2213 = vmatpush1.bf16.msra.mxu0 0
    %2214 = vmatprep.subr.bf16.mxu0 0
    %2215 = vmatpush1.bf16.msra.mxu0 0
    %2216 = vmatprep.subr.bf16.mxu0 0
    %2217 = vmatpush1.bf16.msra.mxu0 0
    %2218 = vmatprep.subr.bf16.mxu0 0
    %2219 = vmatpush1.bf16.msra.mxu0 0
    %2220 = vmatprep.subr.bf16.mxu0 0
    %2221 = vmatpush1.bf16.msra.mxu0 0
    %2222 = vmatprep.subr.bf16.mxu0 0
    %2223 = vmatpush1.bf16.msra.mxu0 0
    %2224 = vmatprep.subr.bf16.mxu0 0
    %2225 = vmatpush1.bf16.msra.mxu0 0
    %2226 = vmatprep.subr.bf16.mxu0 0
    %2227 = vmatpush1.bf16.msra.mxu0 0
    %2228 = vmatprep.mubr.bf16.mxu0 0
    %2229 = vmatmul.mubr.bf16.gmra.mrb[0].mxu0 %v2194
    %v2230 = vpop.f32.mrb[0].mxu0
    %v2231 = vadd.f32 %v2010, %v2230
    %v2232 = vpop.f32.mrb[0].mxu0
    %v2233 = vadd.f32 %v2014, %v2232
    %v2234 = vpop.f32.mrb[0].mxu0
    %v2235 = vpop.f32.mrb[0].mxu0
    %2236 = vdwg.mxu0
    %v2237 = vadd.f32 %v1989, %v2231
    %v2238 = vxor.u32 %v2237, 2147483648
    %v2239 = vmul.f32 %v2238, 1.442695
    %v2240 = vpow.pop %v2239
    %v2241 = vadd.f32 %v2240, 1.0
    %v2242 = vrcp.pop %v2241
    %v2243 = vmul.f32 1.0, %v2242
    %v2244 = vmul.f32 %v2243, %v2233
    %v2245 = vadd.f32 %v1991, %v2244
    %v2246 = vtanh.pop %v2245
    %v2247 = vsub.f32 %v2189, %v2246
    %2249 = vrot.lane.b32.xlu0 %v2247, 64
    %v2250 = vpop.permute.xlu0 %2249
    %v2252 = vmul.f32 %v2243, %v2250
    %2254 = vrot.lane.b32.xlu0 %v2252, 64
    %v2255 = vpop.permute.xlu0 %2254
    %v2257 = vadd.f32 %v2246, %v2255
    %2258 = vst.msk [vmem:[#allocation3 + $0x4] sm:$0x3] %vm350, %v2257
    %2259 = vst.msk [vmem:[#allocation3 + $0xa] sm:$0x3] %vm352, %v2257
    %v2260 = vpack.c.bf16 %v2257, %v2257
    %v2262 = vsel %vm276, %v2260, 0
    %2264 = vmatprep.subr.bf16.mxu0 %v2042
    %2265 = vmatpush1.bf16.msra.mxu0 %v2041
    %2266 = vmatprep.subr.bf16.mxu0 %v2044
    %2267 = vmatpush1.bf16.msra.mxu0 %v2043
    %2268 = vmatprep.subr.bf16.mxu0 %v2046
    %2269 = vmatpush1.bf16.msra.mxu0 %v2045
    %2270 = vmatprep.subr.bf16.mxu0 %v2048
    %2271 = vmatpush1.bf16.msra.mxu0 %v2047
    %2272 = vmatprep.subr.bf16.mxu0 0
    %2273 = vmatpush1.bf16.msra.mxu0 0
    %2274 = vmatprep.subr.bf16.mxu0 0
    %2275 = vmatpush1.bf16.msra.mxu0 0
    %2276 = vmatprep.subr.bf16.mxu0 0
    %2277 = vmatpush1.bf16.msra.mxu0 0
    %2278 = vmatprep.subr.bf16.mxu0 0
    %2279 = vmatpush1.bf16.msra.mxu0 0
    %2280 = vmatprep.subr.bf16.mxu0 0
    %2281 = vmatpush1.bf16.msra.mxu0 0
    %2282 = vmatprep.subr.bf16.mxu0 0
    %2283 = vmatpush1.bf16.msra.mxu0 0
    %2284 = vmatprep.subr.bf16.mxu0 0
    %2285 = vmatpush1.bf16.msra.mxu0 0
    %2286 = vmatprep.subr.bf16.mxu0 0
    %2287 = vmatpush1.bf16.msra.mxu0 0
    %2288 = vmatprep.subr.bf16.mxu0 0
    %2289 = vmatpush1.bf16.msra.mxu0 0
    %2290 = vmatprep.subr.bf16.mxu0 0
    %2291 = vmatpush1.bf16.msra.mxu0 0
    %2292 = vmatprep.subr.bf16.mxu0 0
    %2293 = vmatpush1.bf16.msra.mxu0 0
    %2294 = vmatprep.subr.bf16.mxu0 0
    %2295 = vmatpush1.bf16.msra.mxu0 0
    %2296 = vmatprep.mubr.bf16.mxu0 0
    %2297 = vmatmul.mubr.bf16.gmra.mrb[0].mxu0 %v2262
    %v2298 = vpop.f32.mrb[0].mxu0
    %v2299 = vadd.f32 %v2010, %v2298
    %v2300 = vpop.f32.mrb[0].mxu0
    %v2301 = vadd.f32 %v2014, %v2300
    %v2302 = vpop.f32.mrb[0].mxu0
    %v2303 = vpop.f32.mrb[0].mxu0
    %2304 = vdwg.mxu0
    %v2305 = vadd.f32 %v1989, %v2299
    %v2306 = vxor.u32 %v2305, 2147483648
    %v2307 = vmul.f32 %v2306, 1.442695
    %v2308 = vpow.pop %v2307
    %v2309 = vadd.f32 %v2308, 1.0
    %v2310 = vrcp.pop %v2309
    %v2311 = vmul.f32 1.0, %v2310
    %v2312 = vmul.f32 %v2311, %v2301
    %v2313 = vadd.f32 %v1991, %v2312
    %v2314 = vtanh.pop %v2313
    %v2315 = vsub.f32 %v2257, %v2314
    %2317 = vrot.lane.b32.xlu0 %v2315, 64
    %v2318 = vpop.permute.xlu0 %2317
    %v2320 = vmul.f32 %v2311, %v2318
    %2322 = vrot.lane.b32.xlu0 %v2320, 64
    %v2323 = vpop.permute.xlu0 %2322
    %v2325 = vadd.f32 %v2314, %v2323
    %2326 = vst.msk [vmem:[#allocation3 + $0x6] sm:$0x3] %vm350, %v2325
    %2327 = vst.msk [vmem:[#allocation3 + $0x8] sm:$0x3] %vm352, %v2325
    %v2328 = vpack.c.bf16 %v2325, %v2325
    %v2330 = vsel %vm276, %v2328, 0
    %2332 = vmatprep.subr.bf16.mxu0 %v2042
    %2333 = vmatpush1.bf16.msra.mxu0 %v2041
    %2334 = vmatprep.subr.bf16.mxu0 %v2044
    %2335 = vmatpush1.bf16.msra.mxu0 %v2043
    %2336 = vmatprep.subr.bf16.mxu0 %v2046
    %2337 = vmatpush1.bf16.msra.mxu0 %v2045
    %2338 = vmatprep.subr.bf16.mxu0 %v2048
    %2339 = vmatpush1.bf16.msra.mxu0 %v2047
    %2340 = vmatprep.subr.bf16.mxu0 0
    %2341 = vmatpush1.bf16.msra.mxu0 0
    %2342 = vmatprep.subr.bf16.mxu0 0
    %2343 = vmatpush1.bf16.msra.mxu0 0
    %2344 = vmatprep.subr.bf16.mxu0 0
    %2345 = vmatpush1.bf16.msra.mxu0 0
    %2346 = vmatprep.subr.bf16.mxu0 0
    %2347 = vmatpush1.bf16.msra.mxu0 0
    %2348 = vmatprep.subr.bf16.mxu0 0
    %2349 = vmatpush1.bf16.msra.mxu0 0
    %2350 = vmatprep.subr.bf16.mxu0 0
    %2351 = vmatpush1.bf16.msra.mxu0 0
    %2352 = vmatprep.subr.bf16.mxu0 0
    %2353 = vmatpush1.bf16.msra.mxu0 0
    %2354 = vmatprep.subr.bf16.mxu0 0
    %2355 = vmatpush1.bf16.msra.mxu0 0
    %2356 = vmatprep.subr.bf16.mxu0 0
    %2357 = vmatpush1.bf16.msra.mxu0 0
    %2358 = vmatprep.subr.bf16.mxu0 0
    %2359 = vmatpush1.bf16.msra.mxu0 0
    %2360 = vmatprep.subr.bf16.mxu0 0
    %2361 = vmatpush1.bf16.msra.mxu0 0
    %2362 = vmatprep.subr.bf16.mxu0 0
    %2363 = vmatpush1.bf16.msra.mxu0 0
    %2364 = vmatprep.mubr.bf16.mxu0 0
    %2365 = vmatmul.mubr.bf16.gmra.mrb[0].mxu0 %v2330
    %v2366 = vpop.f32.mrb[0].mxu0
    %v2367 = vadd.f32 %v2010, %v2366
    %v2368 = vpop.f32.mrb[0].mxu0
    %v2369 = vadd.f32 %v2014, %v2368
    %v2370 = vpop.f32.mrb[0].mxu0
    %v2371 = vpop.f32.mrb[0].mxu0
    %2372 = vdwg.mxu0
    %v2373 = vadd.f32 %v1989, %v2367
    %v2374 = vxor.u32 %v2373, 2147483648
    %v2375 = vmul.f32 %v2374, 1.442695
    %v2376 = vpow.pop %v2375
    %v2377 = vadd.f32 %v2376, 1.0
    %v2378 = vrcp.pop %v2377
    %v2379 = vmul.f32 1.0, %v2378
    %v2380 = vmul.f32 %v2379, %v2369
    %v2381 = vadd.f32 %v1991, %v2380
    %v2382 = vtanh.pop %v2381
    %v2383 = vsub.f32 %v2325, %v2382
    %2385 = vrot.lane.b32.xlu0 %v2383, 64
    %v2386 = vpop.permute.xlu0 %2385
    %v2388 = vmul.f32 %v2379, %v2386
    %2390 = vrot.lane.b32.xlu0 %v2388, 64
    %v2391 = vpop.permute.xlu0 %2390
    %v2393 = vadd.f32 %v2382, %v2391
    %2394 = vst.msk [vmem:[#allocation3 + $0x8] sm:$0x3] %vm350, %v2393
    %2395 = vst.msk [vmem:[#allocation3 + $0x6] sm:$0x3] %vm352, %v2393
    %v2396 = vpack.c.bf16 %v2393, %v2393
    %v2398 = vsel %vm276, %v2396, 0
    %2400 = vmatprep.subr.bf16.mxu0 %v2042
    %2401 = vmatpush1.bf16.msra.mxu0 %v2041
    %2402 = vmatprep.subr.bf16.mxu0 %v2044
    %2403 = vmatpush1.bf16.msra.mxu0 %v2043
    %2404 = vmatprep.subr.bf16.mxu0 %v2046
    %2405 = vmatpush1.bf16.msra.mxu0 %v2045
    %2406 = vmatprep.subr.bf16.mxu0 %v2048
    %2407 = vmatpush1.bf16.msra.mxu0 %v2047
    %2408 = vmatprep.subr.bf16.mxu0 0
    %2409 = vmatpush1.bf16.msra.mxu0 0
    %2410 = vmatprep.subr.bf16.mxu0 0
    %2411 = vmatpush1.bf16.msra.mxu0 0
    %2412 = vmatprep.subr.bf16.mxu0 0
    %2413 = vmatpush1.bf16.msra.mxu0 0
    %2414 = vmatprep.subr.bf16.mxu0 0
    %2415 = vmatpush1.bf16.msra.mxu0 0
    %2416 = vmatprep.subr.bf16.mxu0 0
    %2417 = vmatpush1.bf16.msra.mxu0 0
    %2418 = vmatprep.subr.bf16.mxu0 0
    %2419 = vmatpush1.bf16.msra.mxu0 0
    %2420 = vmatprep.subr.bf16.mxu0 0
    %2421 = vmatpush1.bf16.msra.mxu0 0
    %2422 = vmatprep.subr.bf16.mxu0 0
    %2423 = vmatpush1.bf16.msra.mxu0 0
    %2424 = vmatprep.subr.bf16.mxu0 0
    %2425 = vmatpush1.bf16.msra.mxu0 0
    %2426 = vmatprep.subr.bf16.mxu0 0
    %2427 = vmatpush1.bf16.msra.mxu0 0
    %2428 = vmatprep.subr.bf16.mxu0 0
    %2429 = vmatpush1.bf16.msra.mxu0 0
    %2430 = vmatprep.subr.bf16.mxu0 0
    %2431 = vmatpush1.bf16.msra.mxu0 0
    %2432 = vmatprep.mubr.bf16.mxu0 0
    %2433 = vmatmul.mubr.bf16.gmra.mrb[0].mxu0 %v2398
    %v2434 = vpop.f32.mrb[0].mxu0
    %v2435 = vadd.f32 %v2010, %v2434
    %v2436 = vpop.f32.mrb[0].mxu0
    %v2437 = vadd.f32 %v2014, %v2436
    %v2438 = vpop.f32.mrb[0].mxu0
    %v2439 = vpop.f32.mrb[0].mxu0
    %2440 = vdwg.mxu0
    %v2441 = vadd.f32 %v1989, %v2435
    %v2442 = vxor.u32 %v2441, 2147483648
    %v2443 = vmul.f32 %v2442, 1.442695
    %v2444 = vpow.pop %v2443
    %v2445 = vadd.f32 %v2444, 1.0
    %v2446 = vrcp.pop %v2445
    %v2447 = vmul.f32 1.0, %v2446
    %v2448 = vmul.f32 %v2447, %v2437
    %v2449 = vadd.f32 %v1991, %v2448
    %v2450 = vtanh.pop %v2449
    %v2451 = vsub.f32 %v2393, %v2450
    %2453 = vrot.lane.b32.xlu0 %v2451, 64
    %v2454 = vpop.permute.xlu0 %2453
    %v2456 = vmul.f32 %v2447, %v2454
    %2458 = vrot.lane.b32.xlu0 %v2456, 64
    %v2459 = vpop.permute.xlu0 %2458
    %v2461 = vadd.f32 %v2450, %v2459
    %2462 = vst.msk [vmem:[#allocation3 + $0xa] sm:$0x3] %vm350, %v2461
    %2463 = vst.msk [vmem:[#allocation3 + $0x4] sm:$0x3] %vm352, %v2461
    %v2464 = vpack.c.bf16 %v2461, %v2461
    %v2466 = vsel %vm276, %v2464, 0
    %2468 = vmatprep.subr.bf16.mxu0 %v2042
    %2469 = vmatpush1.bf16.msra.mxu0 %v2041
    %2470 = vmatprep.subr.bf16.mxu0 %v2044
    %2471 = vmatpush1.bf16.msra.mxu0 %v2043
    %2472 = vmatprep.subr.bf16.mxu0 %v2046
    %2473 = vmatpush1.bf16.msra.mxu0 %v2045
    %2474 = vmatprep.subr.bf16.mxu0 %v2048
    %2475 = vmatpush1.bf16.msra.mxu0 %v2047
    %2476 = vmatprep.subr.bf16.mxu0 0
    %2477 = vmatpush1.bf16.msra.mxu0 0
    %2478 = vmatprep.subr.bf16.mxu0 0
    %2479 = vmatpush1.bf16.msra.mxu0 0
    %2480 = vmatprep.subr.bf16.mxu0 0
    %2481 = vmatpush1.bf16.msra.mxu0 0
    %2482 = vmatprep.subr.bf16.mxu0 0
    %2483 = vmatpush1.bf16.msra.mxu0 0
    %2484 = vmatprep.subr.bf16.mxu0 0
    %2485 = vmatpush1.bf16.msra.mxu0 0
    %2486 = vmatprep.subr.bf16.mxu0 0
    %2487 = vmatpush1.bf16.msra.mxu0 0
    %2488 = vmatprep.subr.bf16.mxu0 0
    %2489 = vmatpush1.bf16.msra.mxu0 0
    %2490 = vmatprep.subr.bf16.mxu0 0
    %2491 = vmatpush1.bf16.msra.mxu0 0
    %2492 = vmatprep.subr.bf16.mxu0 0
    %2493 = vmatpush1.bf16.msra.mxu0 0
    %2494 = vmatprep.subr.bf16.mxu0 0
    %2495 = vmatpush1.bf16.msra.mxu0 0
    %2496 = vmatprep.subr.bf16.mxu0 0
    %2497 = vmatpush1.bf16.msra.mxu0 0
    %2498 = vmatprep.subr.bf16.mxu0 0
    %2499 = vmatpush1.bf16.msra.mxu0 0
    %2500 = vmatprep.mubr.bf16.mxu0 0
    %2501 = vmatmul.mubr.bf16.gmra.mrb[0].mxu0 %v2466
    %v2502 = vpop.f32.mrb[0].mxu0
    %v2503 = vadd.f32 %v2010, %v2502
    %v2504 = vpop.f32.mrb[0].mxu0
    %v2505 = vadd.f32 %v2014, %v2504
    %v2506 = vpop.f32.mrb[0].mxu0
    %v2507 = vpop.f32.mrb[0].mxu0
    %2508 = vdwg.mxu0
    %v2509 = vadd.f32 %v1989, %v2503
    %v2510 = vxor.u32 %v2509, 2147483648
    %v2511 = vmul.f32 %v2510, 1.442695
    %v2512 = vpow.pop %v2511
    %v2513 = vadd.f32 %v2512, 1.0
    %v2514 = vrcp.pop %v2513
    %v2515 = vmul.f32 1.0, %v2514
    %v2516 = vmul.f32 %v2515, %v2505
    %v2517 = vadd.f32 %v1991, %v2516
    %v2518 = vtanh.pop %v2517
    %v2519 = vsub.f32 %v2461, %v2518
    %2521 = vrot.lane.b32.xlu0 %v2519, 64
    %v2522 = vpop.permute.xlu0 %2521
    %v2524 = vmul.f32 %v2515, %v2522
    %2526 = vrot.lane.b32.xlu0 %v2524, 64
    %v2527 = vpop.permute.xlu0 %2526
    %v2529 = vadd.f32 %v2518, %v2527
    %2530 = vst.msk [vmem:[#allocation3 + $0xc] sm:$0x3] %vm350, %v2529
    %2531 = vst.msk [vmem:[#allocation3 + $0x2] sm:$0x3] %vm352, %v2529
    %v2532 = vpack.c.bf16 %v2529, %v2529
    %v2534 = vsel %vm276, %v2532, 0
    %2536 = vmatprep.subr.bf16.mxu0 %v2042
    %2537 = vmatpush1.bf16.msra.mxu0 %v2041
    %2538 = vmatprep.subr.bf16.mxu0 %v2044
    %2539 = vmatpush1.bf16.msra.mxu0 %v2043
    %2540 = vmatprep.subr.bf16.mxu0 %v2046
    %2541 = vmatpush1.bf16.msra.mxu0 %v2045
    %2542 = vmatprep.subr.bf16.mxu0 %v2048
    %2543 = vmatpush1.bf16.msra.mxu0 %v2047
    %2544 = vmatprep.subr.bf16.mxu0 0
    %2545 = vmatpush1.bf16.msra.mxu0 0
    %2546 = vmatprep.subr.bf16.mxu0 0
    %2547 = vmatpush1.bf16.msra.mxu0 0
    %2548 = vmatprep.subr.bf16.mxu0 0
    %2549 = vmatpush1.bf16.msra.mxu0 0
    %2550 = vmatprep.subr.bf16.mxu0 0
    %2551 = vmatpush1.bf16.msra.mxu0 0
    %2552 = vmatprep.subr.bf16.mxu0 0
    %2553 = vmatpush1.bf16.msra.mxu0 0
    %2554 = vmatprep.subr.bf16.mxu0 0
    %2555 = vmatpush1.bf16.msra.mxu0 0
    %2556 = vmatprep.subr.bf16.mxu0 0
    %2557 = vmatpush1.bf16.msra.mxu0 0
    %2558 = vmatprep.subr.bf16.mxu0 0
    %2559 = vmatpush1.bf16.msra.mxu0 0
    %2560 = vmatprep.subr.bf16.mxu0 0
    %2561 = vmatpush1.bf16.msra.mxu0 0
    %2562 = vmatprep.subr.bf16.mxu0 0
    %2563 = vmatpush1.bf16.msra.mxu0 0
    %2564 = vmatprep.subr.bf16.mxu0 0
    %2565 = vmatpush1.bf16.msra.mxu0 0
    %2566 = vmatprep.subr.bf16.mxu0 0
    %2567 = vmatpush1.bf16.msra.mxu0 0
    %2568 = vmatprep.mubr.bf16.mxu0 0
    %2569 = vmatmul.mubr.bf16.gmra.mrb[0].mxu0 %v2534
    %v2570 = vpop.f32.mrb[0].mxu0
    %v2571 = vadd.f32 %v2010, %v2570
    %v2572 = vpop.f32.mrb[0].mxu0
    %v2573 = vadd.f32 %v2014, %v2572
    %v2574 = vpop.f32.mrb[0].mxu0
    %v2575 = vpop.f32.mrb[0].mxu0
    %2576 = vdwg.mxu0
    %v2577 = vadd.f32 %v1989, %v2571
    %v2578 = vxor.u32 %v2577, 2147483648
    %v2579 = vmul.f32 %v2578, 1.442695
    %v2580 = vpow.pop %v2579
    %v2581 = vadd.f32 %v2580, 1.0
    %v2582 = vrcp.pop %v2581
    %v2583 = vmul.f32 1.0, %v2582
    %v2584 = vmul.f32 %v2583, %v2573
    %v2585 = vadd.f32 %v1991, %v2584
    %v2586 = vtanh.pop %v2585
    %v2587 = vsub.f32 %v2529, %v2586
    %2589 = vrot.lane.b32.xlu0 %v2587, 64
    %v2590 = vpop.permute.xlu0 %2589
    %v2592 = vmul.f32 %v2583, %v2590
    %2594 = vrot.lane.b32.xlu0 %v2592, 64
    %v2595 = vpop.permute.xlu0 %2594
    %v2597 = vadd.f32 %v2586, %v2595
    %2598 = vst.msk [vmem:[#allocation3 + $0xe] sm:$0x3] %vm350, %v2597
    %2599 = vst.msk [vmem:[#allocation3] sm:$0x3] %vm352, %v2597
    %v2600 = vld [vmem:[#allocation3] sm:$0xff]
    %v2601 = vld [vmem:[#allocation3 + $0x8] sm:$0xff]
    %v2602 = vld [vmem:[#allocation8 + $0x200] sm:$0xf]
    %v2603 = vld [vmem:[#allocation8 + $0x208] sm:$0xf]
    %v2604 = vld [vmem:[#allocation8 + $0x210] sm:$0xf]
    %v2605 = vld [vmem:[#allocation8 + $0x218] sm:$0xf]
    %v2606 = vld [vmem:[#allocation8 + $0x220] sm:$0xf]
    %v2607 = vld [vmem:[#allocation8 + $0x228] sm:$0xf]
    %v2608 = vld [vmem:[#allocation8 + $0x230] sm:$0xf]
    %v2609 = vld [vmem:[#allocation8 + $0x238] sm:$0xf]
    %v2610 = vpack.c.bf16 %v2601, %v2600
    %v2611 = vld [vmem:[#allocation10 + $0xa0] ss:$0 sm:$0xff]
    %v2620 = vunpack.c.l.b16 %v2602
    %v2621 = vunpack.c.l.b16 %v2603
    %v2622 = vunpack.c.l.b16 %v2604
    %v2623 = vunpack.c.l.b16 %v2605
    %v2624 = vunpack.c.l.b16 %v2606
    %v2625 = vunpack.c.l.b16 %v2607
    %v2626 = vunpack.c.l.b16 %v2608
    %v2627 = vunpack.c.l.b16 %v2609
    %v2628 = vpack.c.b16 %v2621, %v2620
    %v2629 = vpack.c.b16 %v2623, %v2622
    %v2630 = vpack.c.b16 %v2625, %v2624
    %v2631 = vpack.c.b16 %v2627, %v2626
    %v2637 = vsel %vm276, %v2610, 0
    %2639 = vmatprep.subr.bf16.mxu0 0
    %2640 = vmatpush1.bf16.msra.mxu0 %v2628
    %2641 = vmatprep.subr.bf16.mxu0 0
    %2642 = vmatpush1.bf16.msra.mxu0 %v2629
    %2643 = vmatprep.subr.bf16.mxu0 0
    %2644 = vmatpush1.bf16.msra.mxu0 %v2630
    %2645 = vmatprep.subr.bf16.mxu0 0
    %2646 = vmatpush1.bf16.msra.mxu0 %v2631
    %2647 = vmatprep.subr.bf16.mxu0 0
    %2648 = vmatpush1.bf16.msra.mxu0 0
    %2649 = vmatprep.subr.bf16.mxu0 0
    %2650 = vmatpush1.bf16.msra.mxu0 0
    %2651 = vmatprep.subr.bf16.mxu0 0
    %2652 = vmatpush1.bf16.msra.mxu0 0
    %2653 = vmatprep.subr.bf16.mxu0 0
    %2654 = vmatpush1.bf16.msra.mxu0 0
    %2655 = vmatprep.subr.bf16.mxu0 0
    %2656 = vmatpush1.bf16.msra.mxu0 0
    %2657 = vmatprep.subr.bf16.mxu0 0
    %2658 = vmatpush1.bf16.msra.mxu0 0
    %2659 = vmatprep.subr.bf16.mxu0 0
    %2660 = vmatpush1.bf16.msra.mxu0 0
    %2661 = vmatprep.subr.bf16.mxu0 0
    %2662 = vmatpush1.bf16.msra.mxu0 0
    %2663 = vmatprep.subr.bf16.mxu0 0
    %2664 = vmatpush1.bf16.msra.mxu0 0
    %2665 = vmatprep.subr.bf16.mxu0 0
    %2666 = vmatpush1.bf16.msra.mxu0 0
    %2667 = vmatprep.subr.bf16.mxu0 0
    %2668 = vmatpush1.bf16.msra.mxu0 0
    %2669 = vmatprep.subr.bf16.mxu0 0
    %2670 = vmatpush1.bf16.msra.mxu0 0
    %2671 = vmatprep.mubr.bf16.mxu0 0
    %2672 = vmatmul.mubr.bf16.gmra.mrb[0].mxu0 %v2637
    %v2673 = vpop.f32.mrb[0].mxu0
    %v2674 = vadd.f32 %v2611, %v2673
    %v2675 = vpop.f32.mrb[0].mxu0
    %v2676 = vpop.f32.mrb[0].mxu0
    %v2677 = vadd.f32 %v2611, %v2676
    %v2678 = vpop.f32.mrb[0].mxu0
    %2679 = vdwg.mxu0
    %vm2680 = vcmask 91136
    %2681 = vst.msk [vmem:[#allocation14] sm:$0x3] %vm2680, %v2674
    %2683 = vrot.lane.b32.xlu0 %v2674, 12
    %v2684 = vpop.permute.xlu0 %2683
    %vm2686 = vcmask 191586
    %2687 = vst.msk [vmem:[#allocation14 - $0x2] sm:$0xc] %vm2686, %v2684
    %2688 = vrot.lane.b32.xlu0 %v2674, 24
    %v2689 = vpop.permute.xlu0 %2688
    %vm2691 = vcmask 292036
    %2692 = vst.msk [vmem:[#allocation14 - $0x4] sm:$0x30] %vm2691, %v2689
    %2693 = vrot.lane.b32.xlu0 %v2674, 36
    %v2694 = vpop.permute.xlu0 %2693
    %vm2696 = vcmask 392486
    %2697 = vst.msk [vmem:[#allocation14 - $0x6] sm:$0xc0] %vm2696, %v2694
    %2699 = vrot.lane.b32.xlu0 %v2677, 48
    %v2700 = vpop.permute.xlu0 %2699
    %vm2702 = vcmask 484736
    %2703 = vst.msk [vmem:[#allocation14] sm:$0x3] %vm2702, %v2700
    %2704 = vrot.lane.b32.xlu0 %v2677, 60
    %v2705 = vpop.permute.xlu0 %2704
    %vm2707 = vcmask 585186
    %2708 = vst.msk [vmem:[#allocation14 - $0x2] sm:$0xc] %vm2707, %v2705
    %2709 = vrot.lane.b32.xlu0 %v2677, 72
    %v2710 = vpop.permute.xlu0 %2709
    %vm2712 = vcmask 685636
    %2713 = vst.msk [vmem:[#allocation14 - $0x4] sm:$0x30] %vm2712, %v2710
    %2714 = vrot.lane.b32.xlu0 %v2677, 84
    %v2715 = vpop.permute.xlu0 %2714
    %vm2717 = vcmask 786086
    %2718 = vst.msk [vmem:[#allocation14 - $0x6] sm:$0xc0] %vm2717, %v2715
    %v2719 = vld [vmem:[#allocation8 + $0x1b0] sm:$0xff]
    %v2720 = vld [vmem:[#allocation8 + $0x1b8] sm:$0xff]
    %s2721 = scalar_lea.vmem [#allocation10], 128
    %v2722 = vld [vmem:[%s2721] ss:$8 sm:$0x3]
    %v2724 = vlaneseq
    %v2725 = vshrl.u32 %v2724, 7
    %v2726 = vsub.s32 0, %v2725
    %v2727 = vrot.slane %v2722, %v2726
    %v2728 = vlaneseq
    %v2729 = vshrl.u32 %v2728, 7
    %v2730 = vsub.s32 1, %v2729
    %v2731 = vrot.slane %v2722, %v2730
    %v2736 = vunpack.c.l.b16 %v2719
    %v2737 = vunpack.c.h.b16 %v2719
    %v2738 = vunpack.c.l.b16 %v2720
    %v2739 = vunpack.c.h.b16 %v2720
    %v2740 = vpack.c.b16 %v2738, %v2736
    %v2741 = vpack.c.b16 %v2739, %v2737
    %2744 = vmatprep.subr.bf16.mxu0 %v2741
    %2745 = vmatpush1.bf16.msra.mxu0 %v2740
    %2746 = vmatprep.subr.bf16.mxu0 0
    %2747 = vmatpush1.bf16.msra.mxu0 0
    %2748 = vmatprep.subr.bf16.mxu0 0
    %2749 = vmatpush1.bf16.msra.mxu0 0
    %2750 = vmatprep.subr.bf16.mxu0 0
    %2751 = vmatpush1.bf16.msra.mxu0 0
    %2752 = vmatprep.subr.bf16.mxu0 0
    %2753 = vmatpush1.bf16.msra.mxu0 0
    %2754 = vmatprep.subr.bf16.mxu0 0
    %2755 = vmatpush1.bf16.msra.mxu0 0
    %2756 = vmatprep.subr.bf16.mxu0 0
    %2757 = vmatpush1.bf16.msra.mxu0 0
    %2758 = vmatprep.subr.bf16.mxu0 0
    %2759 = vmatpush1.bf16.msra.mxu0 0
    %2760 = vmatprep.subr.bf16.mxu0 0
    %2761 = vmatpush1.bf16.msra.mxu0 0
    %2762 = vmatprep.subr.bf16.mxu0 0
    %2763 = vmatpush1.bf16.msra.mxu0 0
    %2764 = vmatprep.subr.bf16.mxu0 0
    %2765 = vmatpush1.bf16.msra.mxu0 0
    %2766 = vmatprep.subr.bf16.mxu0 0
    %2767 = vmatpush1.bf16.msra.mxu0 0
    %2768 = vmatprep.subr.bf16.mxu0 0
    %2769 = vmatpush1.bf16.msra.mxu0 0
    %2770 = vmatprep.subr.bf16.mxu0 0
    %2771 = vmatpush1.bf16.msra.mxu0 0
    %2772 = vmatprep.subr.bf16.mxu0 0
    %2773 = vmatpush1.bf16.msra.mxu0 0
    %2774 = vmatprep.subr.bf16.mxu0 0
    %2775 = vmatpush1.bf16.msra.mxu0 0
    %2776 = vmatprep.mubr.bf16.mxu0 0
    %2777 = vmatmul.mubr.bf16.gmra.mrb[0].mxu0 %v1860
    %v2778 = vpop.f32.mrb[0].mxu0
    %v2779 = vadd.f32 %v2727, %v2778
    %v2780 = vpop.f32.mrb[0].mxu0
    %v2781 = vadd.f32 %v2731, %v2780
    %v2782 = vpop.f32.mrb[0].mxu0
    %v2783 = vpop.f32.mrb[0].mxu0
    %2784 = vdwg.mxu0
    %v2785 = vld [vmem:[#allocation8 + $0x1c0] sm:$0xff]
    %v2786 = vld [vmem:[#allocation8 + $0x1c8] sm:$0xff]
    %v2787 = vld [vmem:[#allocation8 + $0x1d0] sm:$0xff]
    %v2788 = vld [vmem:[#allocation8 + $0x1d8] sm:$0xff]
    %v2789 = vld [vmem:[#allocation8 + $0x1e0] sm:$0xff]
    %v2790 = vld [vmem:[#allocation8 + $0x1e8] sm:$0xff]
    %v2791 = vld [vmem:[#allocation8 + $0x1f0] sm:$0xff]
    %v2792 = vld [vmem:[#allocation8 + $0x1f8] sm:$0xff]
    %s2793 = scalar_lea.vmem [#allocation10], 144
    %v2794 = vld [vmem:[%s2793] ss:$8 sm:$0x3]
    %v2795 = vpack.c.bf16 %v1928, %v1928
    %v2797 = vlaneseq
    %v2798 = vshrl.u32 %v2797, 7
    %v2799 = vsub.s32 0, %v2798
    %v2800 = vrot.slane %v2794, %v2799
    %v2801 = vlaneseq
    %v2802 = vshrl.u32 %v2801, 7
    %v2803 = vsub.s32 1, %v2802
    %v2804 = vrot.slane %v2794, %v2803
    %v2815 = vunpack.c.l.b16 %v2785
    %v2816 = vunpack.c.h.b16 %v2785
    %v2817 = vunpack.c.l.b16 %v2786
    %v2818 = vunpack.c.h.b16 %v2786
    %v2819 = vunpack.c.l.b16 %v2787
    %v2820 = vunpack.c.h.b16 %v2787
    %v2821 = vunpack.c.l.b16 %v2788
    %v2822 = vunpack.c.h.b16 %v2788
    %v2823 = vunpack.c.l.b16 %v2789
    %v2824 = vunpack.c.h.b16 %v2789
    %v2825 = vunpack.c.l.b16 %v2790
    %v2826 = vunpack.c.h.b16 %v2790
    %v2827 = vunpack.c.l.b16 %v2791
    %v2828 = vunpack.c.h.b16 %v2791
    %v2829 = vunpack.c.l.b16 %v2792
    %v2830 = vunpack.c.h.b16 %v2792
    %v2831 = vpack.c.b16 %v2817, %v2815
    %v2832 = vpack.c.b16 %v2818, %v2816
    %v2833 = vpack.c.b16 %v2821, %v2819
    %v2834 = vpack.c.b16 %v2822, %v2820
    %v2835 = vpack.c.b16 %v2825, %v2823
    %v2836 = vpack.c.b16 %v2826, %v2824
    %v2837 = vpack.c.b16 %v2829, %v2827
    %v2838 = vpack.c.b16 %v2830, %v2828
    %v2848 = vsel %vm276, %v2795, 0
    %2850 = vmatprep.subr.bf16.mxu0 %v2832
    %2851 = vmatpush1.bf16.msra.mxu0 %v2831
    %2852 = vmatprep.subr.bf16.mxu0 %v2834
    %2853 = vmatpush1.bf16.msra.mxu0 %v2833
    %2854 = vmatprep.subr.bf16.mxu0 %v2836
    %2855 = vmatpush1.bf16.msra.mxu0 %v2835
    %2856 = vmatprep.subr.bf16.mxu0 %v2838
    %2857 = vmatpush1.bf16.msra.mxu0 %v2837
    %2858 = vmatprep.subr.bf16.mxu0 0
    %2859 = vmatpush1.bf16.msra.mxu0 0
    %2860 = vmatprep.subr.bf16.mxu0 0
    %2861 = vmatpush1.bf16.msra.mxu0 0
    %2862 = vmatprep.subr.bf16.mxu0 0
    %2863 = vmatpush1.bf16.msra.mxu0 0
    %2864 = vmatprep.subr.bf16.mxu0 0
    %2865 = vmatpush1.bf16.msra.mxu0 0
    %2866 = vmatprep.subr.bf16.mxu0 0
    %2867 = vmatpush1.bf16.msra.mxu0 0
    %2868 = vmatprep.subr.bf16.mxu0 0
    %2869 = vmatpush1.bf16.msra.mxu0 0
    %2870 = vmatprep.subr.bf16.mxu0 0
    %2871 = vmatpush1.bf16.msra.mxu0 0
    %2872 = vmatprep.subr.bf16.mxu0 0
    %2873 = vmatpush1.bf16.msra.mxu0 0
    %2874 = vmatprep.subr.bf16.mxu0 0
    %2875 = vmatpush1.bf16.msra.mxu0 0
    %2876 = vmatprep.subr.bf16.mxu0 0
    %2877 = vmatpush1.bf16.msra.mxu0 0
    %2878 = vmatprep.subr.bf16.mxu0 0
    %2879 = vmatpush1.bf16.msra.mxu0 0
    %2880 = vmatprep.subr.bf16.mxu0 0
    %2881 = vmatpush1.bf16.msra.mxu0 0
    %2882 = vmatprep.mubr.bf16.mxu0 0
    %2883 = vmatmul.mubr.bf16.gmra.mrb[0].mxu0 %v2848
    %v2884 = vpop.f32.mrb[0].mxu0
    %v2885 = vadd.f32 %v2800, %v2884
    %v2886 = vpop.f32.mrb[0].mxu0
    %v2887 = vadd.f32 %v2804, %v2886
    %v2888 = vpop.f32.mrb[0].mxu0
    %v2889 = vpop.f32.mrb[0].mxu0
    %2890 = vdwg.mxu0
    %v2891 = vadd.f32 %v2779, %v2885
    %v2892 = vxor.u32 %v2891, 2147483648
    %v2893 = vmul.f32 %v2892, 1.442695
    %v2894 = vpow.pop %v2893
    %v2895 = vadd.f32 %v2894, 1.0
    %v2896 = vrcp.pop %v2895
    %v2897 = vmul.f32 1.0, %v2896
    %v2898 = vmul.f32 %v2897, %v2887
    %v2899 = vadd.f32 %v2781, %v2898
    %v2900 = vtanh.pop %v2899
    %v2901 = vsub.f32 %v1928, %v2900
    %2903 = vrot.lane.b32.xlu0 %v2901, 64
    %v2904 = vpop.permute.xlu0 %2903
    %v2906 = vmul.f32 %v2897, %v2904
    %2908 = vrot.lane.b32.xlu0 %v2906, 64
    %v2909 = vpop.permute.xlu0 %2908
    %v2911 = vadd.f32 %v2900, %v2909
    %2912 = vst.msk [vmem:[#allocation4] sm:$0x3] %vm350, %v2911
    %2913 = vst.msk [vmem:[#allocation4 + $0x6] sm:$0x3] %vm352, %v2911
    %v2914 = vpack.c.bf16 %v2911, %v2911
    %v2916 = vsel %vm276, %v2914, 0
    %2918 = vmatprep.subr.bf16.mxu0 %v2832
    %2919 = vmatpush1.bf16.msra.mxu0 %v2831
    %2920 = vmatprep.subr.bf16.mxu0 %v2834
    %2921 = vmatpush1.bf16.msra.mxu0 %v2833
    %2922 = vmatprep.subr.bf16.mxu0 %v2836
    %2923 = vmatpush1.bf16.msra.mxu0 %v2835
    %2924 = vmatprep.subr.bf16.mxu0 %v2838
    %2925 = vmatpush1.bf16.msra.mxu0 %v2837
    %2926 = vmatprep.subr.bf16.mxu0 0
    %2927 = vmatpush1.bf16.msra.mxu0 0
    %2928 = vmatprep.subr.bf16.mxu0 0
    %2929 = vmatpush1.bf16.msra.mxu0 0
    %2930 = vmatprep.subr.bf16.mxu0 0
    %2931 = vmatpush1.bf16.msra.mxu0 0
    %2932 = vmatprep.subr.bf16.mxu0 0
    %2933 = vmatpush1.bf16.msra.mxu0 0
    %2934 = vmatprep.subr.bf16.mxu0 0
    %2935 = vmatpush1.bf16.msra.mxu0 0
    %2936 = vmatprep.subr.bf16.mxu0 0
    %2937 = vmatpush1.bf16.msra.mxu0 0
    %2938 = vmatprep.subr.bf16.mxu0 0
    %2939 = vmatpush1.bf16.msra.mxu0 0
    %2940 = vmatprep.subr.bf16.mxu0 0
    %2941 = vmatpush1.bf16.msra.mxu0 0
    %2942 = vmatprep.subr.bf16.mxu0 0
    %2943 = vmatpush1.bf16.msra.mxu0 0
    %2944 = vmatprep.subr.bf16.mxu0 0
    %2945 = vmatpush1.bf16.msra.mxu0 0
    %2946 = vmatprep.subr.bf16.mxu0 0
    %2947 = vmatpush1.bf16.msra.mxu0 0
    %2948 = vmatprep.subr.bf16.mxu0 0
    %2949 = vmatpush1.bf16.msra.mxu0 0
    %2950 = vmatprep.mubr.bf16.mxu0 0
    %2951 = vmatmul.mubr.bf16.gmra.mrb[0].mxu0 %v2916
    %v2952 = vpop.f32.mrb[0].mxu0
    %v2953 = vadd.f32 %v2800, %v2952
    %v2954 = vpop.f32.mrb[0].mxu0
    %v2955 = vadd.f32 %v2804, %v2954
    %v2956 = vpop.f32.mrb[0].mxu0
    %v2957 = vpop.f32.mrb[0].mxu0
    %2958 = vdwg.mxu0
    %v2959 = vadd.f32 %v2779, %v2953
    %v2960 = vxor.u32 %v2959, 2147483648
    %v2961 = vmul.f32 %v2960, 1.442695
    %v2962 = vpow.pop %v2961
    %v2963 = vadd.f32 %v2962, 1.0
    %v2964 = vrcp.pop %v2963
    %v2965 = vmul.f32 1.0, %v2964
    %v2966 = vmul.f32 %v2965, %v2955
    %v2967 = vadd.f32 %v2781, %v2966
    %v2968 = vtanh.pop %v2967
    %v2969 = vsub.f32 %v2911, %v2968
    %2971 = vrot.lane.b32.xlu0 %v2969, 64
    %v2972 = vpop.permute.xlu0 %2971
    %v2974 = vmul.f32 %v2965, %v2972
    %2976 = vrot.lane.b32.xlu0 %v2974, 64
    %v2977 = vpop.permute.xlu0 %2976
    %v2979 = vadd.f32 %v2968, %v2977
    %2980 = vst.msk [vmem:[#allocation4 + $0x2] sm:$0x3] %vm350, %v2979
    %2981 = vst.msk [vmem:[#allocation4 + $0x4] sm:$0x3] %vm352, %v2979
    %v2982 = vpack.c.bf16 %v2979, %v2979
    %v2984 = vsel %vm276, %v2982, 0
    %2986 = vmatprep.subr.bf16.mxu0 %v2832
    %2987 = vmatpush1.bf16.msra.mxu0 %v2831
    %2988 = vmatprep.subr.bf16.mxu0 %v2834
    %2989 = vmatpush1.bf16.msra.mxu0 %v2833
    %2990 = vmatprep.subr.bf16.mxu0 %v2836
    %2991 = vmatpush1.bf16.msra.mxu0 %v2835
    %2992 = vmatprep.subr.bf16.mxu0 %v2838
    %2993 = vmatpush1.bf16.msra.mxu0 %v2837
    %2994 = vmatprep.subr.bf16.mxu0 0
    %2995 = vmatpush1.bf16.msra.mxu0 0
    %2996 = vmatprep.subr.bf16.mxu0 0
    %2997 = vmatpush1.bf16.msra.mxu0 0
    %2998 = vmatprep.subr.bf16.mxu0 0
    %2999 = vmatpush1.bf16.msra.mxu0 0
    %3000 = vmatprep.subr.bf16.mxu0 0
    %3001 = vmatpush1.bf16.msra.mxu0 0
    %3002 = vmatprep.subr.bf16.mxu0 0
    %3003 = vmatpush1.bf16.msra.mxu0 0
    %3004 = vmatprep.subr.bf16.mxu0 0
    %3005 = vmatpush1.bf16.msra.mxu0 0
    %3006 = vmatprep.subr.bf16.mxu0 0
    %3007 = vmatpush1.bf16.msra.mxu0 0
    %3008 = vmatprep.subr.bf16.mxu0 0
    %3009 = vmatpush1.bf16.msra.mxu0 0
    %3010 = vmatprep.subr.bf16.mxu0 0
    %3011 = vmatpush1.bf16.msra.mxu0 0
    %3012 = vmatprep.subr.bf16.mxu0 0
    %3013 = vmatpush1.bf16.msra.mxu0 0
    %3014 = vmatprep.subr.bf16.mxu0 0
    %3015 = vmatpush1.bf16.msra.mxu0 0
    %3016 = vmatprep.subr.bf16.mxu0 0
    %3017 = vmatpush1.bf16.msra.mxu0 0
    %3018 = vmatprep.mubr.bf16.mxu0 0
    %3019 = vmatmul.mubr.bf16.gmra.mrb[0].mxu0 %v2984
    %v3020 = vpop.f32.mrb[0].mxu0
    %v3021 = vadd.f32 %v2800, %v3020
    %v3022 = vpop.f32.mrb[0].mxu0
    %v3023 = vadd.f32 %v2804, %v3022
    %v3024 = vpop.f32.mrb[0].mxu0
    %v3025 = vpop.f32.mrb[0].mxu0
    %3026 = vdwg.mxu0
    %v3027 = vadd.f32 %v2779, %v3021
    %v3028 = vxor.u32 %v3027, 2147483648
    %v3029 = vmul.f32 %v3028, 1.442695
    %v3030 = vpow.pop %v3029
    %v3031 = vadd.f32 %v3030, 1.0
    %v3032 = vrcp.pop %v3031
    %v3033 = vmul.f32 1.0, %v3032
    %v3034 = vmul.f32 %v3033, %v3023
    %v3035 = vadd.f32 %v2781, %v3034
    %v3036 = vtanh.pop %v3035
    %v3037 = vsub.f32 %v2979, %v3036
    %3039 = vrot.lane.b32.xlu0 %v3037, 64
    %v3040 = vpop.permute.xlu0 %3039
    %v3042 = vmul.f32 %v3033, %v3040
    %3044 = vrot.lane.b32.xlu0 %v3042, 64
    %v3045 = vpop.permute.xlu0 %3044
    %v3047 = vadd.f32 %v3036, %v3045
    %3048 = vst.msk [vmem:[#allocation4 + $0x4] sm:$0x3] %vm350, %v3047
    %3049 = vst.msk [vmem:[#allocation4 + $0x2] sm:$0x3] %vm352, %v3047
    %v3050 = vpack.c.bf16 %v3047, %v3047
    %v3052 = vsel %vm276, %v3050, 0
    %3054 = vmatprep.subr.bf16.mxu0 %v2832
    %3055 = vmatpush1.bf16.msra.mxu0 %v2831
    %3056 = vmatprep.subr.bf16.mxu0 %v2834
    %3057 = vmatpush1.bf16.msra.mxu0 %v2833
    %3058 = vmatprep.subr.bf16.mxu0 %v2836
    %3059 = vmatpush1.bf16.msra.mxu0 %v2835
    %3060 = vmatprep.subr.bf16.mxu0 %v2838
    %3061 = vmatpush1.bf16.msra.mxu0 %v2837
    %3062 = vmatprep.subr.bf16.mxu0 0
    %3063 = vmatpush1.bf16.msra.mxu0 0
    %3064 = vmatprep.subr.bf16.mxu0 0
    %3065 = vmatpush1.bf16.msra.mxu0 0
    %3066 = vmatprep.subr.bf16.mxu0 0
    %3067 = vmatpush1.bf16.msra.mxu0 0
    %3068 = vmatprep.subr.bf16.mxu0 0
    %3069 = vmatpush1.bf16.msra.mxu0 0
    %3070 = vmatprep.subr.bf16.mxu0 0
    %3071 = vmatpush1.bf16.msra.mxu0 0
    %3072 = vmatprep.subr.bf16.mxu0 0
    %3073 = vmatpush1.bf16.msra.mxu0 0
    %3074 = vmatprep.subr.bf16.mxu0 0
    %3075 = vmatpush1.bf16.msra.mxu0 0
    %3076 = vmatprep.subr.bf16.mxu0 0
    %3077 = vmatpush1.bf16.msra.mxu0 0
    %3078 = vmatprep.subr.bf16.mxu0 0
    %3079 = vmatpush1.bf16.msra.mxu0 0
    %3080 = vmatprep.subr.bf16.mxu0 0
    %3081 = vmatpush1.bf16.msra.mxu0 0
    %3082 = vmatprep.subr.bf16.mxu0 0
    %3083 = vmatpush1.bf16.msra.mxu0 0
    %3084 = vmatprep.subr.bf16.mxu0 0
    %3085 = vmatpush1.bf16.msra.mxu0 0
    %3086 = vmatprep.mubr.bf16.mxu0 0
    %3087 = vmatmul.mubr.bf16.gmra.mrb[0].mxu0 %v3052
    %v3088 = vpop.f32.mrb[0].mxu0
    %v3089 = vadd.f32 %v2800, %v3088
    %v3090 = vpop.f32.mrb[0].mxu0
    %v3091 = vadd.f32 %v2804, %v3090
    %v3092 = vpop.f32.mrb[0].mxu0
    %v3093 = vpop.f32.mrb[0].mxu0
    %3094 = vdwg.mxu0
    %v3095 = vadd.f32 %v2779, %v3089
    %v3096 = vxor.u32 %v3095, 2147483648
    %v3097 = vmul.f32 %v3096, 1.442695
    %v3098 = vpow.pop %v3097
    %v3099 = vadd.f32 %v3098, 1.0
    %v3100 = vrcp.pop %v3099
    %v3101 = vmul.f32 1.0, %v3100
    %v3102 = vmul.f32 %v3101, %v3091
    %v3103 = vadd.f32 %v2781, %v3102
    %v3104 = vtanh.pop %v3103
    %v3105 = vsub.f32 %v3047, %v3104
    %3107 = vrot.lane.b32.xlu0 %v3105, 64
    %v3108 = vpop.permute.xlu0 %3107
    %v3110 = vmul.f32 %v3101, %v3108
    %3112 = vrot.lane.b32.xlu0 %v3110, 64
    %v3113 = vpop.permute.xlu0 %3112
    %v3115 = vadd.f32 %v3104, %v3113
    %3116 = vst.msk [vmem:[#allocation4 + $0x6] sm:$0x3] %vm350, %v3115
    %3117 = vst.msk [vmem:[#allocation4] sm:$0x3] %vm352, %v3115
    %v3118 = vld [vmem:[#allocation4] sm:$0xff]
    %v3119 = vld [vmem:[#allocation8 + $0x240] sm:$0xf]
    %v3120 = vld [vmem:[#allocation8 + $0x248] sm:$0xf]
    %v3121 = vld [vmem:[#allocation8 + $0x250] sm:$0xf]
    %v3122 = vld [vmem:[#allocation8 + $0x258] sm:$0xf]
    %v3123 = vld [vmem:[#allocation8 + $0x260] sm:$0xf]
    %v3124 = vld [vmem:[#allocation8 + $0x268] sm:$0xf]
    %v3125 = vld [vmem:[#allocation8 + $0x270] sm:$0xf]
    %v3126 = vld [vmem:[#allocation8 + $0x278] sm:$0xf]
    %v3127 = vpack.c.bf16 %v3118, %v3118
    %v3128 = vld [vmem:[#allocation10 + $0xb0] ss:$0 sm:$0xff]
    %v3137 = vunpack.c.l.b16 %v3119
    %v3138 = vunpack.c.l.b16 %v3120
    %v3139 = vunpack.c.l.b16 %v3121
    %v3140 = vunpack.c.l.b16 %v3122
    %v3141 = vunpack.c.l.b16 %v3123
    %v3142 = vunpack.c.l.b16 %v3124
    %v3143 = vunpack.c.l.b16 %v3125
    %v3144 = vunpack.c.l.b16 %v3126
    %v3145 = vpack.c.b16 %v3138, %v3137
    %v3146 = vpack.c.b16 %v3140, %v3139
    %v3147 = vpack.c.b16 %v3142, %v3141
    %v3148 = vpack.c.b16 %v3144, %v3143
    %v3154 = vsel %vm276, %v3127, 0
    %3156 = vmatprep.subr.bf16.mxu0 0
    %3157 = vmatpush1.bf16.msra.mxu0 %v3145
    %3158 = vmatprep.subr.bf16.mxu0 0
    %3159 = vmatpush1.bf16.msra.mxu0 %v3146
    %3160 = vmatprep.subr.bf16.mxu0 0
    %3161 = vmatpush1.bf16.msra.mxu0 %v3147
    %3162 = vmatprep.subr.bf16.mxu0 0
    %3163 = vmatpush1.bf16.msra.mxu0 %v3148
    %3164 = vmatprep.subr.bf16.mxu0 0
    %3165 = vmatpush1.bf16.msra.mxu0 0
    %3166 = vmatprep.subr.bf16.mxu0 0
    %3167 = vmatpush1.bf16.msra.mxu0 0
    %3168 = vmatprep.subr.bf16.mxu0 0
    %3169 = vmatpush1.bf16.msra.mxu0 0
    %3170 = vmatprep.subr.bf16.mxu0 0
    %3171 = vmatpush1.bf16.msra.mxu0 0
    %3172 = vmatprep.subr.bf16.mxu0 0
    %3173 = vmatpush1.bf16.msra.mxu0 0
    %3174 = vmatprep.subr.bf16.mxu0 0
    %3175 = vmatpush1.bf16.msra.mxu0 0
    %3176 = vmatprep.subr.bf16.mxu0 0
    %3177 = vmatpush1.bf16.msra.mxu0 0
    %3178 = vmatprep.subr.bf16.mxu0 0
    %3179 = vmatpush1.bf16.msra.mxu0 0
    %3180 = vmatprep.subr.bf16.mxu0 0
    %3181 = vmatpush1.bf16.msra.mxu0 0
    %3182 = vmatprep.subr.bf16.mxu0 0
    %3183 = vmatpush1.bf16.msra.mxu0 0
    %3184 = vmatprep.subr.bf16.mxu0 0
    %3185 = vmatpush1.bf16.msra.mxu0 0
    %3186 = vmatprep.subr.bf16.mxu0 0
    %3187 = vmatpush1.bf16.msra.mxu0 0
    %3188 = vmatprep.mubr.bf16.mxu0 0
    %3189 = vmatmul.mubr.bf16.gmra.mrb[0].mxu0 %v3154
    %v3190 = vpop.f32.mrb[0].mxu0
    %v3191 = vadd.f32 %v3128, %v3190
    %v3192 = vpop.f32.mrb[0].mxu0
    %v3193 = vpop.f32.mrb[0].mxu0
    %v3194 = vpop.f32.mrb[0].mxu0
    %3195 = vdwg.mxu0
    %3196 = vst.msk [vmem:[#allocation15] sm:$0x3] %vm2680, %v3191
    %3198 = vrot.lane.b32.xlu0 %v3191, 12
    %v3199 = vpop.permute.xlu0 %3198
    %3201 = vst.msk [vmem:[#allocation15 - $0x2] sm:$0xc] %vm2686, %v3199
    %3202 = vrot.lane.b32.xlu0 %v3191, 24
    %v3203 = vpop.permute.xlu0 %3202
    %3205 = vst.msk [vmem:[#allocation15 - $0x4] sm:$0x30] %vm2691, %v3203
    %3206 = vrot.lane.b32.xlu0 %v3191, 36
    %v3207 = vpop.permute.xlu0 %3206
    %3209 = vst.msk [vmem:[#allocation15 - $0x6] sm:$0xc0] %vm2696, %v3207
    // Predicated region
    $region26: #{tpu_custom_call.1} parent=1 // pred_check
      _
    $region27: #{tpu_custom_call.1} parent=1 // pred_check_branch
      %3211 = sbr.rel (0) target = $region29
    $region28: #{tpu_custom_call.1} parent=1 // pred_region
      %s3213 = ssub.s32 32, 32
      %3214 = vsyncadd [#allocation7], %s3213
      %s3216 = sshll.u32 [#allocation11], 4
      %s3217 = int_to_ptr.vmem [resolvable:$true] %s3216
      %3219 = dma.vmem_to_hbm [thread:$0]  %s3217, 32, %s3, [#allocation7]
    $region29: #{tpu_custom_call.1} parent=1 // pred_fallthru
      _
    // Predicated region
    $region30: #{tpu_custom_call.1} parent=1 // pred_check
      _
    $region31: #{tpu_custom_call.1} parent=1 // pred_check_branch
      %3221 = sbr.rel (0) target = $region33
    $region32: #{tpu_custom_call.1} parent=1 // pred_region
      %s3223 = ssub.s32 32, 32
      %3224 = vsyncadd [#allocation13], %s3223
      %s3226 = sshll.u32 [#allocation12], 4
      %s3227 = int_to_ptr.vmem [resolvable:$true] %s3226
      %3229 = dma.vmem_to_hbm [thread:$0]  %s3227, 32, %s4, [#allocation13]
    $region33: #{tpu_custom_call.1} parent=1 // pred_fallthru
      _
    // Predicated region
    $region34: #{tpu_custom_call.1} parent=1 // pred_check
      _
    $region35: #{tpu_custom_call.1} parent=1 // pred_check_branch
      %3231 = sbr.rel (0) target = $region37
    $region36: #{tpu_custom_call.1} parent=1 // pred_region
      %s3233 = ssub.s32 32, 32
      %3234 = vsyncadd [#allocation13], %s3233
      %s3236 = sshll.u32 [#allocation14], 4
      %s3237 = int_to_ptr.vmem [resolvable:$true] %s3236
      %3239 = dma.vmem_to_hbm [thread:$0]  %s3237, 32, %s5, [#allocation13]
    $region37: #{tpu_custom_call.1} parent=1 // pred_fallthru
      _
    // Predicated region
    $region38: #{tpu_custom_call.1} parent=1 // pred_check
      _
    $region39: #{tpu_custom_call.1} parent=1 // pred_check_branch
      %3241 = sbr.rel (0) target = $region41
    $region40: #{tpu_custom_call.1} parent=1 // pred_region
      %s3243 = ssub.s32 32, 32
      %3244 = vsyncadd [#allocation16], %s3243
      %s3246 = sshll.u32 [#allocation15], 4
      %s3247 = int_to_ptr.vmem [resolvable:$true] %s3246
      %3249 = dma.vmem_to_hbm [thread:$0]  %s3247, 32, %s6, [#allocation16]
    $region41: #{tpu_custom_call.1} parent=1 // pred_fallthru
      _
    // Predicated region
    $region42: #{tpu_custom_call.1} parent=1 // pred_check
      _
    $region43: #{tpu_custom_call.1} parent=1 // pred_check_branch
      %3251 = sbr.rel (0) target = $region45
    $region44: #{tpu_custom_call.1} parent=1 // pred_region
      %3252 = dma.done [#allocation7], 32
    $region45: #{tpu_custom_call.1} parent=1 // pred_fallthru
      _
    // Predicated region
    $region46: #{tpu_custom_call.1} parent=1 // pred_check
      _
    $region47: #{tpu_custom_call.1} parent=1 // pred_check_branch
      %3254 = sbr.rel (0) target = $region49
    $region48: #{tpu_custom_call.1} parent=1 // pred_region
      %3255 = dma.done [#allocation13], 32
    $region49: #{tpu_custom_call.1} parent=1 // pred_fallthru
      _
    // Predicated region
    $region50: #{tpu_custom_call.1} parent=1 // pred_check
      _
    $region51: #{tpu_custom_call.1} parent=1 // pred_check_branch
      %3257 = sbr.rel (0) target = $region53
    $region52: #{tpu_custom_call.1} parent=1 // pred_region
      %3258 = dma.done [#allocation13], 32
    $region53: #{tpu_custom_call.1} parent=1 // pred_fallthru
      _
    // Predicated region
    $region54: #{tpu_custom_call.1} parent=1 // pred_check
      _
    $region55: #{tpu_custom_call.1} parent=1 // pred_check_branch
      %3260 = sbr.rel (0) target = $region57
    $region56: #{tpu_custom_call.1} parent=1 // pred_region
      %3261 = dma.done [#allocation16], 32
    $region57: #{tpu_custom_call.1} parent=1 // pred_fallthru
      _
    %3262 = vsyncpa [#allocation6], 1
    %3263 = vsyncpa [#allocation9], 1
    %3264 = vsyncpa [#allocation7], 1
    %3265 = vsyncpa [#allocation13], 1
    %3266 = vsyncpa [#allocation16], 1

</llo_original>
